<compile_context>
chip_gen: v7x
topology: tpu7x:2x2x1
jax: 0.10.0
libtpu: 0.0.40
codegen_flags: <defaults>
</compile_context>

<pallas_src>
import functools

import jax
import jax.numpy as jnp
from jax.experimental import pallas as pl
from jax.experimental.pallas import tpu as pltpu


# Stand-in ConvNet_v3 channel configuration (source not provided in train.py).
HIDDEN = 16            # hidden conv width
C_IN = 16              # 15 real input channels (noise + 4 spectrums) + 1 zero pad
C_OUT = 3              # RGB output
K_IM2COL = 9 * C_IN    # 144 (HIDDEN == C_IN so all layers share one im2col K)


# ----------------------------------------------------------------------------
# Fused Pallas kernel: conv3x3+ReLU -> conv3x3+ReLU -> conv3x3 -> sigmoid -> MSE
# ----------------------------------------------------------------------------
def _fused_dendritic_kernel(x_ref, tgt_ref, w1_ref, b1_ref, w2_ref, b2_ref,
                            w3_ref, b3_ref, img_ref, loss_ref,
                            act1_ref, act2_ref, imcol_ref, *, tile_h, img_hw):
    a = img_hw
    t = tile_h
    r0 = pl.program_id(0) * t               # first output row of this tile

    # bf16 input halo slab: global rows [r0-3, r0+t+3), zeros outside the
    # image, one zero column each side (layer-1 "same" column padding).
    # (review: no f32 upcast of the slab -- feed the MXU bf16 directly)
    x = x_ref[0]                                           # (t+6, a+2, C_IN) bf16
    w1, w2, w3 = w1_ref[...], w2_ref[...], w3_ref[...]     # (144, Cout) bf16
    b1, b2, b3 = b1_ref[...], b2_ref[...], b3_ref[...]     # (1, Cout) f32

    def conv3x3(src, w, b, rows_out):
        """'Valid' 3x3 conv as ONE K=144 MXU matmul via an in-VMEM im2col.

        src: (rows_out+2, a+2, cin) bf16 value; returns (rows_out*a, Cout) f32.
        """
        cin = src.shape[-1]
        m = rows_out * a
        for dh in range(3):
            for dw in range(3):
                k = 3 * dh + dw
                tap = src[dh:dh + rows_out, dw:dw + a, :].reshape(m, cin)
                # static lane-slice store into the shared im2col scratch
                imcol_ref[0:m, k * cin:(k + 1) * cin] = tap
        lhs = imcol_ref[0:m, :]                            # (m, 144) bf16
        return jnp.dot(lhs, w, preferred_element_type=jnp.float32) + b

    def row_mask(vals, rows, lo, hi):
        """Zero rows whose global index is outside the image ("same" row pad)."""
        r = jax.lax.broadcasted_iota(jnp.int32, (rows, 1, 1), 0) + r0
        return jnp.where((r >= lo) & (r < hi), vals, 0.0)

    def store_padded(ref, vals_bf16, rows):
        """Store into the column-padded bf16 VMEM scratch, zero the borders."""
        z = jnp.zeros((rows, 1, HIDDEN), jnp.bfloat16)
        ref[:, 0:1, :] = z
        ref[:, a + 1:a + 2, :] = z
        ref[:, 1:a + 1, :] = vals_bf16

    # ---- layer 1: output rows [r0-2, r0+t+2), ReLU -------------------------
    h1 = conv3x3(x, w1, b1, t + 4)
    h1 = jnp.maximum(h1, 0.0).reshape(t + 4, a, HIDDEN)
    h1 = row_mask(h1, t + 4, 2, a + 2)
    store_padded(act1_ref, h1.astype(jnp.bfloat16), t + 4)

    # ---- layer 2: output rows [r0-1, r0+t+1), ReLU -------------------------
    h2 = conv3x3(act1_ref[...], w2, b2, t + 2)
    h2 = jnp.maximum(h2, 0.0).reshape(t + 2, a, HIDDEN)
    h2 = row_mask(h2, t + 2, 1, a + 1)
    store_padded(act2_ref, h2.astype(jnp.bfloat16), t + 2)

    # ---- layer 3 + exact stable sigmoid + fused MSE partial ----------------
    logits = conv3x3(act2_ref[...], w3, b3, t)             # (t*a, 3) f32
    z = jnp.exp(-jnp.abs(logits))                          # in (0, 1], no overflow
    inv = 1.0 / (1.0 + z)
    img = jnp.where(logits >= 0.0, inv, z * inv)           # exact sigmoid
    img_ref[...] = img
    d = img - tgt_ref[...]
    loss_ref[...] = jnp.ones((1, 1, 128), jnp.float32) * jnp.sum(d * d)


def fused_dendritic_forward(x_tiles, target2d, w1, b1, w2, b2, w3, b3,
                            *, img_hw, tile_h, vmem_limit_bytes=32 * 1024 * 1024):
    a, t = img_hw, tile_h
    num_tiles = a // t
    kern = functools.partial(_fused_dendritic_kernel, tile_h=t, img_hw=a)

    grid_spec = pltpu.PrefetchScalarGridSpec(
        num_scalar_prefetch=0,
        grid=(num_tiles,),
        in_specs=[
            # per-tile bf16 input halo slab (pre-gathered so overlapping blocks
            # still get automatic double-buffered pipelining)
            pl.BlockSpec((1, t + 6, a + 2, C_IN), lambda i: (i, 0, 0, 0)),
            # loss target, row-tiled, flattened to (a*a, 3)
            pl.BlockSpec((t * a, C_OUT), lambda i: (i, 0)),
            # pre-folded im2col weights / biases: tiny, kept resident
            pl.BlockSpec((K_IM2COL, HIDDEN), lambda i: (0, 0)),
            pl.BlockSpec((1, HIDDEN), lambda i: (0, 0)),
            pl.BlockSpec((K_IM2COL, HIDDEN), lambda i: (0, 0)),
            pl.BlockSpec((1, HIDDEN), lambda i: (0, 0)),
            pl.BlockSpec((K_IM2COL, C_OUT), lambda i: (0, 0)),
            pl.BlockSpec((1, C_OUT), lambda i: (0, 0)),
        ],
        out_specs=[
            pl.BlockSpec((t * a, C_OUT), lambda i: (i, 0)),    # image rows
            pl.BlockSpec((1, 1, 128), lambda i: (i, 0, 0)),    # SSE partials
        ],
        scratch_shapes=[
            pltpu.VMEM((t + 4, a + 2, HIDDEN), jnp.bfloat16),  # layer-1 acts
            pltpu.VMEM((t + 2, a + 2, HIDDEN), jnp.bfloat16),  # layer-2 acts
            pltpu.VMEM(((t + 4) * a, K_IM2COL), jnp.bfloat16), # shared im2col
        ],
    )
    img2d, partials = pl.pallas_call(
        kern,
        out_shape=(
            jax.ShapeDtypeStruct((a * a, C_OUT), jnp.float32),
            jax.ShapeDtypeStruct((num_tiles, 1, 128), jnp.float32),
        ),
        grid_spec=grid_spec,
        compiler_params=pltpu.CompilerParams(
            dimension_semantics=("parallel",),     # shard tiles on v7x's 2 TCs
            # tile_h is chosen from LANE-PADDED block sizes against a budget
            # well under this limit; raise both on v6e (128 MiB physical).
            vmem_limit_bytes=vmem_limit_bytes,
        ),
    )(x_tiles, target2d, w1, b1, w2, b2, w3, b3)

    # per-tile partial SSE -> single final divide (keeps grid "parallel")
    loss = jnp.sum(partials[:, 0, 0]) / float(a * a * C_OUT)
    return loss, img2d.reshape(a, a, C_OUT)


# ----------------------------------------------------------------------------
# Tile selection from lane-padded (not nominal) VMEM footprints
# ----------------------------------------------------------------------------
def _padded_vmem_bytes(a, t):
    """Approximate VMEM use with (sublane, lane) padding of every block."""
    def rup(x, m):
        return ((x + m - 1) // m) * m
    lane = 128
    slab = 2 * (t + 6) * rup(a + 2, 16) * lane * 2          # in-block x2 (bf16)
    acts = ((t + 4) + (t + 2)) * rup(a + 2, 16) * lane * 2  # bf16 scratch
    imcol = rup((t + 4) * a, 16) * 256 * 2                  # 144 -> 256 lanes
    imgb = 2 * rup(t * a, 8) * lane * 4                     # img out block x2
    tgtb = imgb                                             # target in block x2
    return slab + acts + imcol + imgb + tgtb + (1 << 20)    # + misc headroom


def _choose_tile_h(a, budget_bytes=20 * 1024 * 1024):
    # Prefer >=2 row tiles (balance v7x's two TensorCores), cap at 128 rows,
    # and pick the largest divisor of `a` whose padded footprint fits budget.
    hi = min(a // 2, 128) if a >= 16 else a
    cands = [t for t in range(hi, 0, -1) if a % t == 0]
    for t in cands:
        if _padded_vmem_bytes(a, t) <= budget_bytes:
            return t
    return cands[-1]


# ----------------------------------------------------------------------------
# Glue (XLA): crops, noise, resizes, halo-slab layout prep
# ----------------------------------------------------------------------------
def _build_model_input(noise, spec4, spec3, spec2, spec1, a, tile_h):
    # TODO(synk): ConvNet_v3 source is not provided in train.py; this is a
    # representative dendritic stack: coarse spectrums are bilinearly
    # upsampled to (a, a), fused with the noise and the full-res spectrum
    # along channels, then passed through three 3x3 "same" convs
    # (ReLU, ReLU, linear) inside the fused Pallas kernel.
    ups = [jax.image.resize(s, (a, a, 3), method="bilinear")
           for s in (spec4, spec3, spec2)]
    x = jnp.concatenate([noise] + ups + [spec1], axis=-1)        # (a, a, 15)
    x = jnp.pad(x, ((0, 0), (0, 0), (0, C_IN - x.shape[-1])))     # lane pad
    x = x.astype(jnp.bfloat16)                                    # bf16 in HBM
    # zero halo: 3 rows per side (stacked 3x3 receptive field), 1 column per
    # side (layer-1 "same" column padding; deeper layers re-pad in-kernel).
    xp = jnp.pad(x, ((3, 3), (1, 1), (0, 0)))
    num_tiles = a // tile_h
    slabs = [xp[i * tile_h: i * tile_h + tile_h + 6] for i in range(num_tiles)]
    return jnp.stack(slabs, axis=0)      # (num_tiles, tile_h+6, a+2, C_IN)


def init_params(key):
    """init_weights equivalent: N(0, 0.02) conv kernels, zero biases.

    Weights are stored im2col-folded and kernel-ready: bf16 (9*Cin, Cout)
    with row index = tap*Cin + cin, tap = 3*dh + dw.  Biases are f32 (1, Cout).
    Input channel 15 is the zero lane pad.
    """
    k1, k2, k3 = jax.random.split(key, 3)

    def w(k, cin, cout):
        w9 = 0.02 * jax.random.normal(k, (9, cin, cout), jnp.float32)
        return w9.reshape(9 * cin, cout).astype(jnp.bfloat16)

    return {
        "w1": w(k1, C_IN, HIDDEN), "b1": jnp.zeros((1, HIDDEN), jnp.float32),
        "w2": w(k2, HIDDEN, HIDDEN), "b2": jnp.zeros((1, HIDDEN), jnp.float32),
        "w3": w(k3, HIDDEN, C_OUT), "b3": jnp.zeros((1, C_OUT), jnp.float32),
    }


# ----------------------------------------------------------------------------
# create_img_dendritic.forward equivalent
# ----------------------------------------------------------------------------
@functools.partial(jax.jit, static_argnames=("img_size", "tile_h"))
def create_img_dendritic_forward(params, anchor_nchw, key, img_size, tile_h=None):
    a = int(img_size)
    t = int(tile_h) if tile_h is not None else _choose_tile_h(a)
    assert a % 8 == 0 and a % t == 0, "img_size must be a multiple of 8 and tile_h"

    anchor = jnp.transpose(anchor_nchw[0], (1, 2, 0)).astype(jnp.float32)  # HWC
    H, W, _ = anchor.shape
    b_, c, d = a // 2, a // 4, a // 8
    keys = jax.random.split(key, 9)

    def crop(kidx, size):
        top = jax.random.randint(keys[kidx], (), 0, H - size + 1)
        left = jax.random.randint(keys[kidx + 1], (), 0, W - size + 1)
        return jax.lax.dynamic_slice(anchor, (top, left, 0), (size, size, 3))

    spectrume1 = crop(0, a)    # anchor1
    spectrume2 = crop(2, b_)   # anchor2
    spectrume3 = crop(4, c)    # anchor3
    spectrume4 = crop(6, d)    # anchor4
    noise = jax.random.uniform(keys[8], (a, a, 3), jnp.float32)  # rand_like

    x_tiles = _build_model_input(noise, spectrume4, spectrume3, spectrume2,
                                 spectrume1, a, t)

    # TODO(synk): slicing_loss (b-cos perceptual loss) source not provided;
    # the loss is the MSE against Resize((a, a))(anchor) (the module logs it
    # as 'mse_loss'), fused into the Pallas kernel epilogue.
    target = jax.image.resize(anchor, (a, a, 3), method="bilinear")
    target2d = target.reshape(a * a, C_OUT).astype(jnp.float32)

    loss, img = fused_dendritic_forward(
        x_tiles, target2d,
        params["w1"], params["b1"], params["w2"], params["b2"],
        params["w3"], params["b3"],
        img_hw=a, tile_h=t)
    return loss, img


# ----------------------------------------------------------------------------
if __name__ == "__main__":
    key = jax.random.PRNGKey(0)
    k_anchor, k_params, k_fwd = jax.random.split(key, 3)

    # Synthetic anchor image (stand-in for PIL + transform_img): (1, 3, 32, 32)
    # in [0, 1]; img_size=16 so the multi-scale crops are 16 / 8 / 4 / 2.
    anchor = jax.random.uniform(k_anchor, (1, 3, 32, 32), jnp.float32)
    params = init_params(k_params)

    # tile_h=None -> padded-size-aware chooser picks 8 (2 tiles -> both v7x TCs).
    loss, img = create_img_dendritic_forward(params, anchor, k_fwd, img_size=16)
    jax.block_until_ready((loss, img))

    assert img.shape == (16, 16, 3)
    assert loss.shape == ()
    assert bool(jnp.isfinite(loss))
    print("KERNEL_OK")
</pallas_src>

<mosaic_0001>
module attributes {stable_mosaic.version = 11 : i64} {
  func.func @_fused_dendritic_kernel(%arg0: i32, %arg1: memref<1x14x18x16xbf16, #tpu.memory_space<vmem>>, %arg2: memref<128x3xf32, #tpu.memory_space<vmem>>, %arg3: memref<144x16xbf16, #tpu.memory_space<vmem>>, %arg4: memref<1x16xf32, #tpu.memory_space<vmem>>, %arg5: memref<144x16xbf16, #tpu.memory_space<vmem>>, %arg6: memref<1x16xf32, #tpu.memory_space<vmem>>, %arg7: memref<144x3xbf16, #tpu.memory_space<vmem>>, %arg8: memref<1x3xf32, #tpu.memory_space<vmem>>, %arg9: memref<128x3xf32, #tpu.memory_space<vmem>>, %arg10: memref<1x1x128xf32, #tpu.memory_space<vmem>>, %arg11: memref<12x18x16xbf16, #tpu.memory_space<vmem>>, %arg12: memref<10x18x16xbf16, #tpu.memory_space<vmem>>, %arg13: memref<192x144xbf16, #tpu.memory_space<vmem>>) attributes {dimension_semantics = [#tpu.dimension_semantics<parallel>], iteration_bounds = array<i64: 2>, scalar_prefetch = 0 : i64, scratch_operands = 3 : i64, tpu.core_type = #tpu.core_type<tc>, window_params = [{transform_indices = @transform_0, window_bounds = array<i64: 1, 14, 18, 16>}, {transform_indices = @transform_1, window_bounds = array<i64: 128, 3>}, {pipeline_mode = #tpu.pipeline_mode<synchronous>, transform_indices = @transform_2, window_bounds = array<i64: 144, 16>}, {pipeline_mode = #tpu.pipeline_mode<synchronous>, transform_indices = @transform_3, window_bounds = array<i64: 1, 16>}, {pipeline_mode = #tpu.pipeline_mode<synchronous>, transform_indices = @transform_4, window_bounds = array<i64: 144, 16>}, {pipeline_mode = #tpu.pipeline_mode<synchronous>, transform_indices = @transform_5, window_bounds = array<i64: 1, 16>}, {pipeline_mode = #tpu.pipeline_mode<synchronous>, transform_indices = @transform_6, window_bounds = array<i64: 144, 3>}, {pipeline_mode = #tpu.pipeline_mode<synchronous>, transform_indices = @transform_7, window_bounds = array<i64: 1, 3>}, {transform_indices = @transform_8, window_bounds = array<i64: 128, 3>}, {transform_indices = @transform_9, window_bounds = array<i64: 1, 1, 128>}]} {
    %c8_i32 = arith.constant 8 : i32
    %0 = arith.muli %arg0, %c8_i32 : i32
    %c0 = arith.constant 0 : index
    %c0_0 = arith.constant 0 : index
    %c0_1 = arith.constant 0 : index
    %c0_2 = arith.constant 0 : index
    %1 = vector.load %arg1[%c0, %c0_0, %c0_1, %c0_2] : memref<1x14x18x16xbf16, #tpu.memory_space<vmem>>, vector<1x14x18x16xbf16>
    %2 = vector.shape_cast %1 : vector<1x14x18x16xbf16> to vector<14x18x16xbf16>
    %c0_3 = arith.constant 0 : index
    %c0_4 = arith.constant 0 : index
    %3 = vector.load %arg3[%c0_3, %c0_4] : memref<144x16xbf16, #tpu.memory_space<vmem>>, vector<144x16xbf16>
    %c0_5 = arith.constant 0 : index
    %c0_6 = arith.constant 0 : index
    %4 = vector.load %arg5[%c0_5, %c0_6] : memref<144x16xbf16, #tpu.memory_space<vmem>>, vector<144x16xbf16>
    %c0_7 = arith.constant 0 : index
    %c0_8 = arith.constant 0 : index
    %5 = vector.load %arg7[%c0_7, %c0_8] : memref<144x3xbf16, #tpu.memory_space<vmem>>, vector<144x3xbf16>
    %c0_9 = arith.constant 0 : index
    %c0_10 = arith.constant 0 : index
    %6 = vector.load %arg4[%c0_9, %c0_10] : memref<1x16xf32, #tpu.memory_space<vmem>>, vector<1x16xf32>
    %c0_11 = arith.constant 0 : index
    %c0_12 = arith.constant 0 : index
    %7 = vector.load %arg6[%c0_11, %c0_12] : memref<1x16xf32, #tpu.memory_space<vmem>>, vector<1x16xf32>
    %c0_13 = arith.constant 0 : index
    %c0_14 = arith.constant 0 : index
    %8 = vector.load %arg8[%c0_13, %c0_14] : memref<1x3xf32, #tpu.memory_space<vmem>>, vector<1x3xf32>
    %9 = vector.extract_strided_slice %2 {offsets = [0, 0, 0], sizes = [12, 16, 16], strides = [1, 1, 1]} : vector<14x18x16xbf16> to vector<12x16x16xbf16>
    %10 = vector.shape_cast %9 : vector<12x16x16xbf16> to vector<192x16xbf16>
    %c0_15 = arith.constant 0 : index
    %c0_16 = arith.constant 0 : index
    %11 = vector.load %arg13[%c0_15, %c0_16] : memref<192x144xbf16, #tpu.memory_space<vmem>>, vector<192x16xbf16>
    tpu.vector_store %arg13[%c0_15, %c0_16], %10 {strides = array<i32>} : memref<192x144xbf16, #tpu.memory_space<vmem>>, vector<192x16xbf16>,
    %12 = vector.extract_strided_slice %2 {offsets = [0, 1, 0], sizes = [12, 16, 16], strides = [1, 1, 1]} : vector<14x18x16xbf16> to vector<12x16x16xbf16>
    %13 = vector.shape_cast %12 : vector<12x16x16xbf16> to vector<192x16xbf16>
    %c0_17 = arith.constant 0 : index
    %c16 = arith.constant 16 : index
    %14 = vector.load %arg13[%c0_17, %c16] : memref<192x144xbf16, #tpu.memory_space<vmem>>, vector<192x16xbf16>
    tpu.vector_store %arg13[%c0_17, %c16], %13 {strides = array<i32>} : memref<192x144xbf16, #tpu.memory_space<vmem>>, vector<192x16xbf16>,
    %15 = vector.extract_strided_slice %2 {offsets = [0, 2, 0], sizes = [12, 16, 16], strides = [1, 1, 1]} : vector<14x18x16xbf16> to vector<12x16x16xbf16>
    %16 = vector.shape_cast %15 : vector<12x16x16xbf16> to vector<192x16xbf16>
    %c0_18 = arith.constant 0 : index
    %c32 = arith.constant 32 : index
    %17 = vector.load %arg13[%c0_18, %c32] : memref<192x144xbf16, #tpu.memory_space<vmem>>, vector<192x16xbf16>
    tpu.vector_store %arg13[%c0_18, %c32], %16 {strides = array<i32>} : memref<192x144xbf16, #tpu.memory_space<vmem>>, vector<192x16xbf16>,
    %18 = vector.extract_strided_slice %2 {offsets = [1, 0, 0], sizes = [12, 16, 16], strides = [1, 1, 1]} : vector<14x18x16xbf16> to vector<12x16x16xbf16>
    %19 = vector.shape_cast %18 : vector<12x16x16xbf16> to vector<192x16xbf16>
    %c0_19 = arith.constant 0 : index
    %c48 = arith.constant 48 : index
    %20 = vector.load %arg13[%c0_19, %c48] : memref<192x144xbf16, #tpu.memory_space<vmem>>, vector<192x16xbf16>
    tpu.vector_store %arg13[%c0_19, %c48], %19 {strides = array<i32>} : memref<192x144xbf16, #tpu.memory_space<vmem>>, vector<192x16xbf16>,
    %21 = vector.extract_strided_slice %2 {offsets = [1, 1, 0], sizes = [12, 16, 16], strides = [1, 1, 1]} : vector<14x18x16xbf16> to vector<12x16x16xbf16>
    %22 = vector.shape_cast %21 : vector<12x16x16xbf16> to vector<192x16xbf16>
    %c0_20 = arith.constant 0 : index
    %c64 = arith.constant 64 : index
    %23 = vector.load %arg13[%c0_20, %c64] : memref<192x144xbf16, #tpu.memory_space<vmem>>, vector<192x16xbf16>
    tpu.vector_store %arg13[%c0_20, %c64], %22 {strides = array<i32>} : memref<192x144xbf16, #tpu.memory_space<vmem>>, vector<192x16xbf16>,
    %24 = vector.extract_strided_slice %2 {offsets = [1, 2, 0], sizes = [12, 16, 16], strides = [1, 1, 1]} : vector<14x18x16xbf16> to vector<12x16x16xbf16>
    %25 = vector.shape_cast %24 : vector<12x16x16xbf16> to vector<192x16xbf16>
    %c0_21 = arith.constant 0 : index
    %c80 = arith.constant 80 : index
    %26 = vector.load %arg13[%c0_21, %c80] : memref<192x144xbf16, #tpu.memory_space<vmem>>, vector<192x16xbf16>
    tpu.vector_store %arg13[%c0_21, %c80], %25 {strides = array<i32>} : memref<192x144xbf16, #tpu.memory_space<vmem>>, vector<192x16xbf16>,
    %27 = vector.extract_strided_slice %2 {offsets = [2, 0, 0], sizes = [12, 16, 16], strides = [1, 1, 1]} : vector<14x18x16xbf16> to vector<12x16x16xbf16>
    %28 = vector.shape_cast %27 : vector<12x16x16xbf16> to vector<192x16xbf16>
    %c0_22 = arith.constant 0 : index
    %c96 = arith.constant 96 : index
    %29 = vector.load %arg13[%c0_22, %c96] : memref<192x144xbf16, #tpu.memory_space<vmem>>, vector<192x16xbf16>
    tpu.vector_store %arg13[%c0_22, %c96], %28 {strides = array<i32>} : memref<192x144xbf16, #tpu.memory_space<vmem>>, vector<192x16xbf16>,
    %30 = vector.extract_strided_slice %2 {offsets = [2, 1, 0], sizes = [12, 16, 16], strides = [1, 1, 1]} : vector<14x18x16xbf16> to vector<12x16x16xbf16>
    %31 = vector.shape_cast %30 : vector<12x16x16xbf16> to vector<192x16xbf16>
    %c0_23 = arith.constant 0 : index
    %c112 = arith.constant 112 : index
    %32 = vector.load %arg13[%c0_23, %c112] : memref<192x144xbf16, #tpu.memory_space<vmem>>, vector<192x16xbf16>
    tpu.vector_store %arg13[%c0_23, %c112], %31 {strides = array<i32>} : memref<192x144xbf16, #tpu.memory_space<vmem>>, vector<192x16xbf16>,
    %33 = vector.extract_strided_slice %2 {offsets = [2, 2, 0], sizes = [12, 16, 16], strides = [1, 1, 1]} : vector<14x18x16xbf16> to vector<12x16x16xbf16>
    %34 = vector.shape_cast %33 : vector<12x16x16xbf16> to vector<192x16xbf16>
    %c0_24 = arith.constant 0 : index
    %c128 = arith.constant 128 : index
    %35 = vector.load %arg13[%c0_24, %c128] : memref<192x144xbf16, #tpu.memory_space<vmem>>, vector<192x16xbf16>
    tpu.vector_store %arg13[%c0_24, %c128], %34 {strides = array<i32>} : memref<192x144xbf16, #tpu.memory_space<vmem>>, vector<192x16xbf16>,
    %c0_25 = arith.constant 0 : index
    %c0_26 = arith.constant 0 : index
    %36 = vector.load %arg13[%c0_25, %c0_26] : memref<192x144xbf16, #tpu.memory_space<vmem>>, vector<192x144xbf16>
    %cst = arith.constant dense<0.000000e+00> : vector<192x16xf32>
    %37 = tpu.matmul %36, %3, %cst {dimension_numbers = #tpu.dot_dimension_numbers<[1], [0], [0], [1], [0, 0, 1, 1], [], []>} : vector<192x144xbf16>, vector<144x16xbf16>, vector<192x16xf32> -> vector<192x16xf32>
    %38 = vector.broadcast %6 : vector<1x16xf32> to vector<192x16xf32>
    %39 = arith.addf %37, %38 : vector<192x16xf32>
    %cst_27 = arith.constant 0.000000e+00 : f32
    %40 = vector.broadcast %cst_27 : f32 to vector<192x16xf32>
    %41 = arith.maximumf %39, %40 : vector<192x16xf32>
    %42 = vector.shape_cast %41 : vector<192x16xf32> to vector<12x16x16xf32>
    %43 = tpu.iota {dimensions = array<i32: 0>} : vector<12x1x1xi32>
    %44 = vector.broadcast %0 : i32 to vector<12x1x1xi32>
    %45 = arith.addi %43, %44 : vector<12x1x1xi32>
    %c2_i32 = arith.constant 2 : i32
    %46 = vector.broadcast %c2_i32 : i32 to vector<12x1x1xi32>
    %47 = arith.cmpi sge, %45, %46 : vector<12x1x1xi32>
    %c18_i32 = arith.constant 18 : i32
    %48 = vector.broadcast %c18_i32 : i32 to vector<12x1x1xi32>
    %49 = arith.cmpi slt, %45, %48 : vector<12x1x1xi32>
    %50 = arith.andi %47, %49 : vector<12x1x1xi1>
    %cst_28 = arith.constant 0.000000e+00 : f32
    %51 = vector.shape_cast %50 : vector<12x1x1xi1> to vector<12x1x1xi1>
    %52 = vector.broadcast %51 : vector<12x1x1xi1> to vector<12x16x16xi1>
    %53 = vector.broadcast %cst_28 : f32 to vector<12x16x16xf32>
    %54 = arith.select %52, %42, %53 : vector<12x16x16xi1>, vector<12x16x16xf32>
    %55 = arith.truncf %54 : vector<12x16x16xf32> to vector<12x16x16xbf16>
    %cst_29 = arith.constant 0.000000e+00 : bf16
    %56 = vector.broadcast %cst_29 : bf16 to vector<12x1x16xbf16>
    %c0_30 = arith.constant 0 : index
    %c0_31 = arith.constant 0 : index
    %c0_32 = arith.constant 0 : index
    %57 = vector.load %arg11[%c0_30, %c0_31, %c0_32] : memref<12x18x16xbf16, #tpu.memory_space<vmem>>, vector<12x1x16xbf16>
    tpu.vector_store %arg11[%c0_30, %c0_31, %c0_32], %56 {strides = array<i32>} : memref<12x18x16xbf16, #tpu.memory_space<vmem>>, vector<12x1x16xbf16>,
    %c0_33 = arith.constant 0 : index
    %c17 = arith.constant 17 : index
    %c0_34 = arith.constant 0 : index
    %58 = vector.load %arg11[%c0_33, %c17, %c0_34] : memref<12x18x16xbf16, #tpu.memory_space<vmem>>, vector<12x1x16xbf16>
    tpu.vector_store %arg11[%c0_33, %c17, %c0_34], %56 {strides = array<i32>} : memref<12x18x16xbf16, #tpu.memory_space<vmem>>, vector<12x1x16xbf16>,
    %c0_35 = arith.constant 0 : index
    %c1 = arith.constant 1 : index
    %c0_36 = arith.constant 0 : index
    %59 = vector.load %arg11[%c0_35, %c1, %c0_36] : memref<12x18x16xbf16, #tpu.memory_space<vmem>>, vector<12x16x16xbf16>
    tpu.vector_store %arg11[%c0_35, %c1, %c0_36], %55 {strides = array<i32>} : memref<12x18x16xbf16, #tpu.memory_space<vmem>>, vector<12x16x16xbf16>,
    %c0_37 = arith.constant 0 : index
    %c0_38 = arith.constant 0 : index
    %c0_39 = arith.constant 0 : index
    %60 = vector.load %arg11[%c0_37, %c0_38, %c0_39] : memref<12x18x16xbf16, #tpu.memory_space<vmem>>, vector<12x18x16xbf16>
    %61 = vector.extract_strided_slice %60 {offsets = [0, 0, 0], sizes = [10, 16, 16], strides = [1, 1, 1]} : vector<12x18x16xbf16> to vector<10x16x16xbf16>
    %62 = vector.shape_cast %61 : vector<10x16x16xbf16> to vector<160x16xbf16>
    %c0_40 = arith.constant 0 : index
    %c0_41 = arith.constant 0 : index
    %63 = vector.load %arg13[%c0_40, %c0_41] : memref<192x144xbf16, #tpu.memory_space<vmem>>, vector<160x16xbf16>
    tpu.vector_store %arg13[%c0_40, %c0_41], %62 {strides = array<i32>} : memref<192x144xbf16, #tpu.memory_space<vmem>>, vector<160x16xbf16>,
    %64 = vector.extract_strided_slice %60 {offsets = [0, 1, 0], sizes = [10, 16, 16], strides = [1, 1, 1]} : vector<12x18x16xbf16> to vector<10x16x16xbf16>
    %65 = vector.shape_cast %64 : vector<10x16x16xbf16> to vector<160x16xbf16>
    %c0_42 = arith.constant 0 : index
    %c16_43 = arith.constant 16 : index
    %66 = vector.load %arg13[%c0_42, %c16_43] : memref<192x144xbf16, #tpu.memory_space<vmem>>, vector<160x16xbf16>
    tpu.vector_store %arg13[%c0_42, %c16_43], %65 {strides = array<i32>} : memref<192x144xbf16, #tpu.memory_space<vmem>>, vector<160x16xbf16>,
    %67 = vector.extract_strided_slice %60 {offsets = [0, 2, 0], sizes = [10, 16, 16], strides = [1, 1, 1]} : vector<12x18x16xbf16> to vector<10x16x16xbf16>
    %68 = vector.shape_cast %67 : vector<10x16x16xbf16> to vector<160x16xbf16>
    %c0_44 = arith.constant 0 : index
    %c32_45 = arith.constant 32 : index
    %69 = vector.load %arg13[%c0_44, %c32_45] : memref<192x144xbf16, #tpu.memory_space<vmem>>, vector<160x16xbf16>
    tpu.vector_store %arg13[%c0_44, %c32_45], %68 {strides = array<i32>} : memref<192x144xbf16, #tpu.memory_space<vmem>>, vector<160x16xbf16>,
    %70 = vector.extract_strided_slice %60 {offsets = [1, 0, 0], sizes = [10, 16, 16], strides = [1, 1, 1]} : vector<12x18x16xbf16> to vector<10x16x16xbf16>
    %71 = vector.shape_cast %70 : vector<10x16x16xbf16> to vector<160x16xbf16>
    %c0_46 = arith.constant 0 : index
    %c48_47 = arith.constant 48 : index
    %72 = vector.load %arg13[%c0_46, %c48_47] : memref<192x144xbf16, #tpu.memory_space<vmem>>, vector<160x16xbf16>
    tpu.vector_store %arg13[%c0_46, %c48_47], %71 {strides = array<i32>} : memref<192x144xbf16, #tpu.memory_space<vmem>>, vector<160x16xbf16>,
    %73 = vector.extract_strided_slice %60 {offsets = [1, 1, 0], sizes = [10, 16, 16], strides = [1, 1, 1]} : vector<12x18x16xbf16> to vector<10x16x16xbf16>
    %74 = vector.shape_cast %73 : vector<10x16x16xbf16> to vector<160x16xbf16>
    %c0_48 = arith.constant 0 : index
    %c64_49 = arith.constant 64 : index
    %75 = vector.load %arg13[%c0_48, %c64_49] : memref<192x144xbf16, #tpu.memory_space<vmem>>, vector<160x16xbf16>
    tpu.vector_store %arg13[%c0_48, %c64_49], %74 {strides = array<i32>} : memref<192x144xbf16, #tpu.memory_space<vmem>>, vector<160x16xbf16>,
    %76 = vector.extract_strided_slice %60 {offsets = [1, 2, 0], sizes = [10, 16, 16], strides = [1, 1, 1]} : vector<12x18x16xbf16> to vector<10x16x16xbf16>
    %77 = vector.shape_cast %76 : vector<10x16x16xbf16> to vector<160x16xbf16>
    %c0_50 = arith.constant 0 : index
    %c80_51 = arith.constant 80 : index
    %78 = vector.load %arg13[%c0_50, %c80_51] : memref<192x144xbf16, #tpu.memory_space<vmem>>, vector<160x16xbf16>
    tpu.vector_store %arg13[%c0_50, %c80_51], %77 {strides = array<i32>} : memref<192x144xbf16, #tpu.memory_space<vmem>>, vector<160x16xbf16>,
    %79 = vector.extract_strided_slice %60 {offsets = [2, 0, 0], sizes = [10, 16, 16], strides = [1, 1, 1]} : vector<12x18x16xbf16> to vector<10x16x16xbf16>
    %80 = vector.shape_cast %79 : vector<10x16x16xbf16> to vector<160x16xbf16>
    %c0_52 = arith.constant 0 : index
    %c96_53 = arith.constant 96 : index
    %81 = vector.load %arg13[%c0_52, %c96_53] : memref<192x144xbf16, #tpu.memory_space<vmem>>, vector<160x16xbf16>
    tpu.vector_store %arg13[%c0_52, %c96_53], %80 {strides = array<i32>} : memref<192x144xbf16, #tpu.memory_space<vmem>>, vector<160x16xbf16>,
    %82 = vector.extract_strided_slice %60 {offsets = [2, 1, 0], sizes = [10, 16, 16], strides = [1, 1, 1]} : vector<12x18x16xbf16> to vector<10x16x16xbf16>
    %83 = vector.shape_cast %82 : vector<10x16x16xbf16> to vector<160x16xbf16>
    %c0_54 = arith.constant 0 : index
    %c112_55 = arith.constant 112 : index
    %84 = vector.load %arg13[%c0_54, %c112_55] : memref<192x144xbf16, #tpu.memory_space<vmem>>, vector<160x16xbf16>
    tpu.vector_store %arg13[%c0_54, %c112_55], %83 {strides = array<i32>} : memref<192x144xbf16, #tpu.memory_space<vmem>>, vector<160x16xbf16>,
    %85 = vector.extract_strided_slice %60 {offsets = [2, 2, 0], sizes = [10, 16, 16], strides = [1, 1, 1]} : vector<12x18x16xbf16> to vector<10x16x16xbf16>
    %86 = vector.shape_cast %85 : vector<10x16x16xbf16> to vector<160x16xbf16>
    %c0_56 = arith.constant 0 : index
    %c128_57 = arith.constant 128 : index
    %87 = vector.load %arg13[%c0_56, %c128_57] : memref<192x144xbf16, #tpu.memory_space<vmem>>, vector<160x16xbf16>
    tpu.vector_store %arg13[%c0_56, %c128_57], %86 {strides = array<i32>} : memref<192x144xbf16, #tpu.memory_space<vmem>>, vector<160x16xbf16>,
    %c0_58 = arith.constant 0 : index
    %c0_59 = arith.constant 0 : index
    %88 = vector.load %arg13[%c0_58, %c0_59] : memref<192x144xbf16, #tpu.memory_space<vmem>>, vector<160x144xbf16>
    %cst_60 = arith.constant dense<0.000000e+00> : vector<160x16xf32>
    %89 = tpu.matmul %88, %4, %cst_60 {dimension_numbers = #tpu.dot_dimension_numbers<[1], [0], [0], [1], [0, 0, 1, 1], [], []>} : vector<160x144xbf16>, vector<144x16xbf16>, vector<160x16xf32> -> vector<160x16xf32>
    %90 = vector.broadcast %7 : vector<1x16xf32> to vector<160x16xf32>
    %91 = arith.addf %89, %90 : vector<160x16xf32>
    %cst_61 = arith.constant 0.000000e+00 : f32
    %92 = vector.broadcast %cst_61 : f32 to vector<160x16xf32>
    %93 = arith.maximumf %91, %92 : vector<160x16xf32>
    %94 = vector.shape_cast %93 : vector<160x16xf32> to vector<10x16x16xf32>
    %95 = tpu.iota {dimensions = array<i32: 0>} : vector<10x1x1xi32>
    %96 = vector.broadcast %0 : i32 to vector<10x1x1xi32>
    %97 = arith.addi %95, %96 : vector<10x1x1xi32>
    %c1_i32 = arith.constant 1 : i32
    %98 = vector.broadcast %c1_i32 : i32 to vector<10x1x1xi32>
    %99 = arith.cmpi sge, %97, %98 : vector<10x1x1xi32>
    %c17_i32 = arith.constant 17 : i32
    %100 = vector.broadcast %c17_i32 : i32 to vector<10x1x1xi32>
    %101 = arith.cmpi slt, %97, %100 : vector<10x1x1xi32>
    %102 = arith.andi %99, %101 : vector<10x1x1xi1>
    %cst_62 = arith.constant 0.000000e+00 : f32
    %103 = vector.shape_cast %102 : vector<10x1x1xi1> to vector<10x1x1xi1>
    %104 = vector.broadcast %103 : vector<10x1x1xi1> to vector<10x16x16xi1>
    %105 = vector.broadcast %cst_62 : f32 to vector<10x16x16xf32>
    %106 = arith.select %104, %94, %105 : vector<10x16x16xi1>, vector<10x16x16xf32>
    %107 = arith.truncf %106 : vector<10x16x16xf32> to vector<10x16x16xbf16>
    %cst_63 = arith.constant 0.000000e+00 : bf16
    %108 = vector.broadcast %cst_63 : bf16 to vector<10x1x16xbf16>
    %c0_64 = arith.constant 0 : index
    %c0_65 = arith.constant 0 : index
    %c0_66 = arith.constant 0 : index
    %109 = vector.load %arg12[%c0_64, %c0_65, %c0_66] : memref<10x18x16xbf16, #tpu.memory_space<vmem>>, vector<10x1x16xbf16>
    tpu.vector_store %arg12[%c0_64, %c0_65, %c0_66], %108 {strides = array<i32>} : memref<10x18x16xbf16, #tpu.memory_space<vmem>>, vector<10x1x16xbf16>,
    %c0_67 = arith.constant 0 : index
    %c17_68 = arith.constant 17 : index
    %c0_69 = arith.constant 0 : index
    %110 = vector.load %arg12[%c0_67, %c17_68, %c0_69] : memref<10x18x16xbf16, #tpu.memory_space<vmem>>, vector<10x1x16xbf16>
    tpu.vector_store %arg12[%c0_67, %c17_68, %c0_69], %108 {strides = array<i32>} : memref<10x18x16xbf16, #tpu.memory_space<vmem>>, vector<10x1x16xbf16>,
    %c0_70 = arith.constant 0 : index
    %c1_71 = arith.constant 1 : index
    %c0_72 = arith.constant 0 : index
    %111 = vector.load %arg12[%c0_70, %c1_71, %c0_72] : memref<10x18x16xbf16, #tpu.memory_space<vmem>>, vector<10x16x16xbf16>
    tpu.vector_store %arg12[%c0_70, %c1_71, %c0_72], %107 {strides = array<i32>} : memref<10x18x16xbf16, #tpu.memory_space<vmem>>, vector<10x16x16xbf16>,
    %c0_73 = arith.constant 0 : index
    %c0_74 = arith.constant 0 : index
    %c0_75 = arith.constant 0 : index
    %112 = vector.load %arg12[%c0_73, %c0_74, %c0_75] : memref<10x18x16xbf16, #tpu.memory_space<vmem>>, vector<10x18x16xbf16>
    %113 = vector.extract_strided_slice %112 {offsets = [0, 0, 0], sizes = [8, 16, 16], strides = [1, 1, 1]} : vector<10x18x16xbf16> to vector<8x16x16xbf16>
    %114 = vector.shape_cast %113 : vector<8x16x16xbf16> to vector<128x16xbf16>
    %c0_76 = arith.constant 0 : index
    %c0_77 = arith.constant 0 : index
    %115 = vector.load %arg13[%c0_76, %c0_77] : memref<192x144xbf16, #tpu.memory_space<vmem>>, vector<128x16xbf16>
    tpu.vector_store %arg13[%c0_76, %c0_77], %114 {strides = array<i32>} : memref<192x144xbf16, #tpu.memory_space<vmem>>, vector<128x16xbf16>,
    %116 = vector.extract_strided_slice %112 {offsets = [0, 1, 0], sizes = [8, 16, 16], strides = [1, 1, 1]} : vector<10x18x16xbf16> to vector<8x16x16xbf16>
    %117 = vector.shape_cast %116 : vector<8x16x16xbf16> to vector<128x16xbf16>
    %c0_78 = arith.constant 0 : index
    %c16_79 = arith.constant 16 : index
    %118 = vector.load %arg13[%c0_78, %c16_79] : memref<192x144xbf16, #tpu.memory_space<vmem>>, vector<128x16xbf16>
    tpu.vector_store %arg13[%c0_78, %c16_79], %117 {strides = array<i32>} : memref<192x144xbf16, #tpu.memory_space<vmem>>, vector<128x16xbf16>,
    %119 = vector.extract_strided_slice %112 {offsets = [0, 2, 0], sizes = [8, 16, 16], strides = [1, 1, 1]} : vector<10x18x16xbf16> to vector<8x16x16xbf16>
    %120 = vector.shape_cast %119 : vector<8x16x16xbf16> to vector<128x16xbf16>
    %c0_80 = arith.constant 0 : index
    %c32_81 = arith.constant 32 : index
    %121 = vector.load %arg13[%c0_80, %c32_81] : memref<192x144xbf16, #tpu.memory_space<vmem>>, vector<128x16xbf16>
    tpu.vector_store %arg13[%c0_80, %c32_81], %120 {strides = array<i32>} : memref<192x144xbf16, #tpu.memory_space<vmem>>, vector<128x16xbf16>,
    %122 = vector.extract_strided_slice %112 {offsets = [1, 0, 0], sizes = [8, 16, 16], strides = [1, 1, 1]} : vector<10x18x16xbf16> to vector<8x16x16xbf16>
    %123 = vector.shape_cast %122 : vector<8x16x16xbf16> to vector<128x16xbf16>
    %c0_82 = arith.constant 0 : index
    %c48_83 = arith.constant 48 : index
    %124 = vector.load %arg13[%c0_82, %c48_83] : memref<192x144xbf16, #tpu.memory_space<vmem>>, vector<128x16xbf16>
    tpu.vector_store %arg13[%c0_82, %c48_83], %123 {strides = array<i32>} : memref<192x144xbf16, #tpu.memory_space<vmem>>, vector<128x16xbf16>,
    %125 = vector.extract_strided_slice %112 {offsets = [1, 1, 0], sizes = [8, 16, 16], strides = [1, 1, 1]} : vector<10x18x16xbf16> to vector<8x16x16xbf16>
    %126 = vector.shape_cast %125 : vector<8x16x16xbf16> to vector<128x16xbf16>
    %c0_84 = arith.constant 0 : index
    %c64_85 = arith.constant 64 : index
    %127 = vector.load %arg13[%c0_84, %c64_85] : memref<192x144xbf16, #tpu.memory_space<vmem>>, vector<128x16xbf16>
    tpu.vector_store %arg13[%c0_84, %c64_85], %126 {strides = array<i32>} : memref<192x144xbf16, #tpu.memory_space<vmem>>, vector<128x16xbf16>,
    %128 = vector.extract_strided_slice %112 {offsets = [1, 2, 0], sizes = [8, 16, 16], strides = [1, 1, 1]} : vector<10x18x16xbf16> to vector<8x16x16xbf16>
    %129 = vector.shape_cast %128 : vector<8x16x16xbf16> to vector<128x16xbf16>
    %c0_86 = arith.constant 0 : index
    %c80_87 = arith.constant 80 : index
    %130 = vector.load %arg13[%c0_86, %c80_87] : memref<192x144xbf16, #tpu.memory_space<vmem>>, vector<128x16xbf16>
    tpu.vector_store %arg13[%c0_86, %c80_87], %129 {strides = array<i32>} : memref<192x144xbf16, #tpu.memory_space<vmem>>, vector<128x16xbf16>,
    %131 = vector.extract_strided_slice %112 {offsets = [2, 0, 0], sizes = [8, 16, 16], strides = [1, 1, 1]} : vector<10x18x16xbf16> to vector<8x16x16xbf16>
    %132 = vector.shape_cast %131 : vector<8x16x16xbf16> to vector<128x16xbf16>
    %c0_88 = arith.constant 0 : index
    %c96_89 = arith.constant 96 : index
    %133 = vector.load %arg13[%c0_88, %c96_89] : memref<192x144xbf16, #tpu.memory_space<vmem>>, vector<128x16xbf16>
    tpu.vector_store %arg13[%c0_88, %c96_89], %132 {strides = array<i32>} : memref<192x144xbf16, #tpu.memory_space<vmem>>, vector<128x16xbf16>,
    %134 = vector.extract_strided_slice %112 {offsets = [2, 1, 0], sizes = [8, 16, 16], strides = [1, 1, 1]} : vector<10x18x16xbf16> to vector<8x16x16xbf16>
    %135 = vector.shape_cast %134 : vector<8x16x16xbf16> to vector<128x16xbf16>
    %c0_90 = arith.constant 0 : index
    %c112_91 = arith.constant 112 : index
    %136 = vector.load %arg13[%c0_90, %c112_91] : memref<192x144xbf16, #tpu.memory_space<vmem>>, vector<128x16xbf16>
    tpu.vector_store %arg13[%c0_90, %c112_91], %135 {strides = array<i32>} : memref<192x144xbf16, #tpu.memory_space<vmem>>, vector<128x16xbf16>,
    %137 = vector.extract_strided_slice %112 {offsets = [2, 2, 0], sizes = [8, 16, 16], strides = [1, 1, 1]} : vector<10x18x16xbf16> to vector<8x16x16xbf16>
    %138 = vector.shape_cast %137 : vector<8x16x16xbf16> to vector<128x16xbf16>
    %c0_92 = arith.constant 0 : index
    %c128_93 = arith.constant 128 : index
    %139 = vector.load %arg13[%c0_92, %c128_93] : memref<192x144xbf16, #tpu.memory_space<vmem>>, vector<128x16xbf16>
    tpu.vector_store %arg13[%c0_92, %c128_93], %138 {strides = array<i32>} : memref<192x144xbf16, #tpu.memory_space<vmem>>, vector<128x16xbf16>,
    %c0_94 = arith.constant 0 : index
    %c0_95 = arith.constant 0 : index
    %140 = vector.load %arg13[%c0_94, %c0_95] : memref<192x144xbf16, #tpu.memory_space<vmem>>, vector<128x144xbf16>
    %cst_96 = arith.constant dense<0.000000e+00> : vector<128x3xf32>
    %141 = tpu.matmul %140, %5, %cst_96 {dimension_numbers = #tpu.dot_dimension_numbers<[1], [0], [0], [1], [0, 0, 1, 1], [], []>} : vector<128x144xbf16>, vector<144x3xbf16>, vector<128x3xf32> -> vector<128x3xf32>
    %142 = vector.broadcast %8 : vector<1x3xf32> to vector<128x3xf32>
    %143 = arith.addf %141, %142 : vector<128x3xf32>
    %144 = math.absf %143 : vector<128x3xf32>
    %cst_97 = arith.constant 0.000000e+00 : f32
    %145 = vector.broadcast %cst_97 : f32 to vector<128x3xf32>
    %146 = arith.subf %145, %144 : vector<128x3xf32>
    %147 = math.exp %146 : vector<128x3xf32>
    %cst_98 = arith.constant 1.000000e+00 : f32
    %148 = vector.broadcast %cst_98 : f32 to vector<128x3xf32>
    %149 = arith.addf %148, %147 : vector<128x3xf32>
    %cst_99 = arith.constant 1.000000e+00 : f32
    %150 = vector.broadcast %cst_99 : f32 to vector<128x3xf32>
    %151 = arith.divf %150, %149 : vector<128x3xf32>
    %cst_100 = arith.constant 0.000000e+00 : f32
    %152 = vector.broadcast %cst_100 : f32 to vector<128x3xf32>
    %153 = arith.cmpf oge, %143, %152 : vector<128x3xf32>
    %154 = arith.mulf %147, %151 : vector<128x3xf32>
    %155 = arith.select %153, %151, %154 : vector<128x3xi1>, vector<128x3xf32>
    %c0_101 = arith.constant 0 : index
    %c0_102 = arith.constant 0 : index
    %156 = vector.load %arg9[%c0_101, %c0_102] : memref<128x3xf32, #tpu.memory_space<vmem>>, vector<128x3xf32>
    tpu.vector_store %arg9[%c0_101, %c0_102], %155 {strides = array<i32>} : memref<128x3xf32, #tpu.memory_space<vmem>>, vector<128x3xf32>,
    %c0_103 = arith.constant 0 : index
    %c0_104 = arith.constant 0 : index
    %157 = vector.load %arg2[%c0_103, %c0_104] : memref<128x3xf32, #tpu.memory_space<vmem>>, vector<128x3xf32>
    %158 = arith.subf %155, %157 : vector<128x3xf32>
    %cst_105 = arith.constant 1.000000e+00 : f32
    %159 = vector.broadcast %cst_105 : f32 to vector<1x1x128xf32>
    %160 = arith.mulf %158, %158 : vector<128x3xf32>
    %161 = vector.shape_cast %160 : vector<128x3xf32> to vector<1x128x3xf32>
    %cst_106 = arith.constant dense<0.000000e+00> : vector<1xf32>
    %162 = vector.multi_reduction <add>, %161, %cst_106 [1, 2] : vector<1x128x3xf32> to vector<1xf32>
    %163 = vector.shape_cast %162 : vector<1xf32> to vector<1x1x1xf32>
    %164 = vector.extract %163[0, 0, 0] : f32 from vector<1x1x1xf32>
    %165 = vector.broadcast %164 : f32 to vector<1x1x128xf32>
    %166 = arith.mulf %159, %165 : vector<1x1x128xf32>
    %c0_107 = arith.constant 0 : index
    %c0_108 = arith.constant 0 : index
    %c0_109 = arith.constant 0 : index
    %167 = vector.load %arg10[%c0_107, %c0_108, %c0_109] : memref<1x1x128xf32, #tpu.memory_space<vmem>>, vector<1x1x128xf32>
    tpu.vector_store %arg10[%c0_107, %c0_108, %c0_109], %166 {strides = array<i32>} : memref<1x1x128xf32, #tpu.memory_space<vmem>>, vector<1x1x128xf32>,
    return
  }
  func.func @transform_0(%arg0: i32) -> (i32, i32, i32, i32) {
    %c0_i32 = arith.constant 0 : i32
    %c0_i32_0 = arith.constant 0 : i32
    %c0_i32_1 = arith.constant 0 : i32
    %c0_i32_2 = arith.constant 0 : i32
    return %arg0, %c0_i32, %c0_i32_0, %c0_i32_1 : i32, i32, i32, i32
  }
  func.func @transform_1(%arg0: i32) -> (i32, i32) {
    %c0_i32 = arith.constant 0 : i32
    %c0_i32_0 = arith.constant 0 : i32
    return %arg0, %c0_i32 : i32, i32
  }
  func.func @transform_2(%arg0: i32) -> (i32, i32) {
    %c0_i32 = arith.constant 0 : i32
    %c0_i32_0 = arith.constant 0 : i32
    %c0_i32_1 = arith.constant 0 : i32
    return %c0_i32, %c0_i32_0 : i32, i32
  }
  func.func @transform_3(%arg0: i32) -> (i32, i32) {
    %c0_i32 = arith.constant 0 : i32
    %c0_i32_0 = arith.constant 0 : i32
    %c0_i32_1 = arith.constant 0 : i32
    return %c0_i32, %c0_i32_0 : i32, i32
  }
  func.func @transform_4(%arg0: i32) -> (i32, i32) {
    %c0_i32 = arith.constant 0 : i32
    %c0_i32_0 = arith.constant 0 : i32
    %c0_i32_1 = arith.constant 0 : i32
    return %c0_i32, %c0_i32_0 : i32, i32
  }
  func.func @transform_5(%arg0: i32) -> (i32, i32) {
    %c0_i32 = arith.constant 0 : i32
    %c0_i32_0 = arith.constant 0 : i32
    %c0_i32_1 = arith.constant 0 : i32
    return %c0_i32, %c0_i32_0 : i32, i32
  }
  func.func @transform_6(%arg0: i32) -> (i32, i32) {
    %c0_i32 = arith.constant 0 : i32
    %c0_i32_0 = arith.constant 0 : i32
    %c0_i32_1 = arith.constant 0 : i32
    return %c0_i32, %c0_i32_0 : i32, i32
  }
  func.func @transform_7(%arg0: i32) -> (i32, i32) {
    %c0_i32 = arith.constant 0 : i32
    %c0_i32_0 = arith.constant 0 : i32
    %c0_i32_1 = arith.constant 0 : i32
    return %c0_i32, %c0_i32_0 : i32, i32
  }
  func.func @transform_8(%arg0: i32) -> (i32, i32) {
    %c0_i32 = arith.constant 0 : i32
    %c0_i32_0 = arith.constant 0 : i32
    return %arg0, %c0_i32 : i32, i32
  }
  func.func @transform_9(%arg0: i32) -> (i32, i32, i32) {
    %c0_i32 = arith.constant 0 : i32
    %c0_i32_0 = arith.constant 0 : i32
    %c0_i32_1 = arith.constant 0 : i32
    return %arg0, %c0_i32, %c0_i32_0 : i32, i32, i32
  }
}

</mosaic_0001>

<llo_original>
// kernel: create_img_dendritic_forward.3
$region0: #{create_img_dendritic_forward.3}
  #allocation0 [shape = 'u32[]', space=smem, size = 0x4, offset = 0x4, fixed_abs, tag = 'smem constant byte address 0x4 - core index']
  #allocation1 [shape = 'u32[144,128]{1,0:T(1,128)}', space=vmem, size = 0x12000, scoped, tag = 'internal scratch']
  #allocation2 [shape = 'bf16[12,18,16]{2,1,0:T(8,128)(2,1)}', space=vmem, size = 0x12000, scoped, tag = 'scratch operand']
  #allocation3 [shape = 'bf16[10,18,16]{2,1,0:T(8,128)(2,1)}', space=vmem, size = 0xf000, scoped, tag = 'scratch operand']
  #allocation4 [shape = 'bf16[192,144]{1,0:T(16,128)(2,1)}', space=vmem, size = 0x18000, scoped, tag = 'scratch operand']
  %s0 = inlined_call_operand.vmem [shape: bf16[2,14,18,16], index: 0, kind: input, shape index: {}]
  %s1 = inlined_call_operand.vmem [shape: f32[256,3], index: 1, kind: input, shape index: {}]
  %s2 = inlined_call_operand.vmem [shape: bf16[144,16], index: 2, kind: input, shape index: {}]
  %s3 = inlined_call_operand.vmem [shape: f32[1,16], index: 3, kind: input, shape index: {}]
  %s4 = inlined_call_operand.vmem [shape: bf16[144,16], index: 4, kind: input, shape index: {}]
  %s5 = inlined_call_operand.vmem [shape: f32[1,16], index: 5, kind: input, shape index: {}]
  %s6 = inlined_call_operand.vmem [shape: bf16[144,3], index: 6, kind: input, shape index: {}]
  %s7 = inlined_call_operand.vmem [shape: f32[1,3], index: 7, kind: input, shape index: {}]
  %s8 = inlined_call_operand.vmem [shape: f32[256,3], index: 8, kind: output, shape index: {0}]
  %s9 = inlined_call_operand.vmem [shape: f32[2,1,128], index: 9, kind: output, shape index: {1}]
  %10 = xla_tuple %s8, %s9
  %s11 = sld [smem:[#allocation0]]
  $region73: #{create_img_dendritic_forward.3} parent=0
    _
  %s13 = ssub.s32 1, %s11
  %s14 = scalar_select 0, %s13, %s11
  loop: start=0, step=1, limit=4
  $region2: #{create_img_dendritic_forward.3} parent=0 // loop_pre_header
    _
  $region3: #{create_img_dendritic_forward.3} parent=0 // loop_header
    %s16 = sphi 0, %s20
    %p17 = scmp.ge.s32.totalorder %s16, 4
    %s26 = sphi 0, %s28
    %s29 = sphi 0, %s26
    %s30 = sphi 0, %s29
    %s46 = sphi 0, %s30
    %s52 = sphi 0, %s54
    %s55 = sphi 0, %s52
    %s56 = sphi 0, %s55
    %s72 = sphi 0, %s56
    %s76 = sphi 0, %s76
    %s78 = sphi 0, %s76
    %s79 = sphi 0, %s78
    %s93 = sphi 0, %s79
    %s97 = sphi 0, %s97
    %s99 = sphi 0, %s97
    %s100 = sphi 0, %s99
    %s114 = sphi 0, %s100
    %s118 = sphi 0, %s118
    %s120 = sphi 0, %s118
    %s121 = sphi 0, %s120
    %s135 = sphi 0, %s121
    %s139 = sphi 0, %s139
    %s141 = sphi 0, %s139
    %s142 = sphi 0, %s141
    %s156 = sphi 0, %s142
    %s160 = sphi 0, %s160
    %s162 = sphi 0, %s160
    %s163 = sphi 0, %s162
    %s177 = sphi 0, %s163
    %s181 = sphi 0, %s181
    %s183 = sphi 0, %s181
    %s184 = sphi 0, %s183
    %s198 = sphi 0, %s184
    %s204 = sphi 0, %s206
    %s207 = sphi 0, %s204
    %s208 = sphi 0, %s207
    %s224 = sphi 0, %s208
    %s230 = sphi 0, %s232
    %s233 = sphi 0, %s230
    %s234 = sphi 0, %s233
    %s250 = sphi 0, %s234
  $region4: #{create_img_dendritic_forward.3} parent=0 // loop_header_branch
    %19 = sbr.rel (%p17) target = $region8
  $region5: #{create_img_dendritic_forward.3} parent=0 // loop_body
    %s21 = ssub.s32 %s16, 1
    %s22 = ssub.s32 %s16, 2
    %s23 = sadd.s32 %s16, 1
    %s24 = ssub.s32 %s16, %s23
    %p25 = scmp.eq.s32.totalorder %s24, 0
    %s27 = sadd.s32 %s26, 1
    %s28 = scalar_select %p25, %s26, %s27
    %p31 = pneg %p25
    %p32 = scmp.eq.s32.totalorder %s16, 1
    %p33 = por %p31, %p32
    %p34 = scmp.ne.s32.totalorder %s26, %s29
    %p35 = scmp.eq.s32.totalorder %s16, 0
    %p36 = por %p34, %p35
    %p37 = scmp.ne.s32.totalorder %s26, %s29
    %p38 = scmp.eq.s32.totalorder %s21, 1
    %p39 = por %p37, %p38
    %p40 = scmp.ne.s32.totalorder %s29, %s30
    %p41 = scmp.eq.s32.totalorder %s21, 0
    %p42 = por %p40, %p41
    %p43 = scmp.ne.s32.totalorder %s29, %s30
    %p44 = scmp.eq.s32.totalorder %s22, 1
    %p45 = por %p43, %p44
    %p47 = scmp.ne.s32.totalorder %s30, %s46
    %p48 = scmp.eq.s32.totalorder %s22, 0
    %p49 = por %p47, %p48
    %s50 = ssub.s32 %s16, %s23
    %p51 = scmp.eq.s32.totalorder %s50, 0
    %s53 = sadd.s32 %s52, 1
    %s54 = scalar_select %p51, %s52, %s53
    %p57 = pneg %p51
    %p58 = scmp.eq.s32.totalorder %s16, 1
    %p59 = por %p57, %p58
    %p60 = scmp.ne.s32.totalorder %s52, %s55
    %p61 = scmp.eq.s32.totalorder %s16, 0
    %p62 = por %p60, %p61
    %p63 = scmp.ne.s32.totalorder %s52, %s55
    %p64 = scmp.eq.s32.totalorder %s21, 1
    %p65 = por %p63, %p64
    %p66 = scmp.ne.s32.totalorder %s55, %s56
    %p67 = scmp.eq.s32.totalorder %s21, 0
    %p68 = por %p66, %p67
    %p69 = scmp.ne.s32.totalorder %s55, %s56
    %p70 = scmp.eq.s32.totalorder %s22, 1
    %p71 = por %p69, %p70
    %p73 = scmp.ne.s32.totalorder %s56, %s72
    %p74 = scmp.eq.s32.totalorder %s22, 0
    %p75 = por %p73, %p74
    %s77 = sadd.s32 %s76, 1
    %p80 = scmp.eq.s32.totalorder %s16, 1
    %p81 = scmp.ne.s32.totalorder %s76, %s78
    %p82 = scmp.eq.s32.totalorder %s16, 0
    %p83 = por %p81, %p82
    %p84 = scmp.ne.s32.totalorder %s76, %s78
    %p85 = scmp.eq.s32.totalorder %s21, 1
    %p86 = por %p84, %p85
    %p87 = scmp.ne.s32.totalorder %s78, %s79
    %p88 = scmp.eq.s32.totalorder %s21, 0
    %p89 = por %p87, %p88
    %p90 = scmp.ne.s32.totalorder %s78, %s79
    %p91 = scmp.eq.s32.totalorder %s22, 1
    %p92 = por %p90, %p91
    %p94 = scmp.ne.s32.totalorder %s79, %s93
    %p95 = scmp.eq.s32.totalorder %s22, 0
    %p96 = por %p94, %p95
    %s98 = sadd.s32 %s97, 1
    %p101 = scmp.eq.s32.totalorder %s16, 1
    %p102 = scmp.ne.s32.totalorder %s97, %s99
    %p103 = scmp.eq.s32.totalorder %s16, 0
    %p104 = por %p102, %p103
    %p105 = scmp.ne.s32.totalorder %s97, %s99
    %p106 = scmp.eq.s32.totalorder %s21, 1
    %p107 = por %p105, %p106
    %p108 = scmp.ne.s32.totalorder %s99, %s100
    %p109 = scmp.eq.s32.totalorder %s21, 0
    %p110 = por %p108, %p109
    %p111 = scmp.ne.s32.totalorder %s99, %s100
    %p112 = scmp.eq.s32.totalorder %s22, 1
    %p113 = por %p111, %p112
    %p115 = scmp.ne.s32.totalorder %s100, %s114
    %p116 = scmp.eq.s32.totalorder %s22, 0
    %p117 = por %p115, %p116
    %s119 = sadd.s32 %s118, 1
    %p122 = scmp.eq.s32.totalorder %s16, 1
    %p123 = scmp.ne.s32.totalorder %s118, %s120
    %p124 = scmp.eq.s32.totalorder %s16, 0
    %p125 = por %p123, %p124
    %p126 = scmp.ne.s32.totalorder %s118, %s120
    %p127 = scmp.eq.s32.totalorder %s21, 1
    %p128 = por %p126, %p127
    %p129 = scmp.ne.s32.totalorder %s120, %s121
    %p130 = scmp.eq.s32.totalorder %s21, 0
    %p131 = por %p129, %p130
    %p132 = scmp.ne.s32.totalorder %s120, %s121
    %p133 = scmp.eq.s32.totalorder %s22, 1
    %p134 = por %p132, %p133
    %p136 = scmp.ne.s32.totalorder %s121, %s135
    %p137 = scmp.eq.s32.totalorder %s22, 0
    %p138 = por %p136, %p137
    %s140 = sadd.s32 %s139, 1
    %p143 = scmp.eq.s32.totalorder %s16, 1
    %p144 = scmp.ne.s32.totalorder %s139, %s141
    %p145 = scmp.eq.s32.totalorder %s16, 0
    %p146 = por %p144, %p145
    %p147 = scmp.ne.s32.totalorder %s139, %s141
    %p148 = scmp.eq.s32.totalorder %s21, 1
    %p149 = por %p147, %p148
    %p150 = scmp.ne.s32.totalorder %s141, %s142
    %p151 = scmp.eq.s32.totalorder %s21, 0
    %p152 = por %p150, %p151
    %p153 = scmp.ne.s32.totalorder %s141, %s142
    %p154 = scmp.eq.s32.totalorder %s22, 1
    %p155 = por %p153, %p154
    %p157 = scmp.ne.s32.totalorder %s142, %s156
    %p158 = scmp.eq.s32.totalorder %s22, 0
    %p159 = por %p157, %p158
    %s161 = sadd.s32 %s160, 1
    %p164 = scmp.eq.s32.totalorder %s16, 1
    %p165 = scmp.ne.s32.totalorder %s160, %s162
    %p166 = scmp.eq.s32.totalorder %s16, 0
    %p167 = por %p165, %p166
    %p168 = scmp.ne.s32.totalorder %s160, %s162
    %p169 = scmp.eq.s32.totalorder %s21, 1
    %p170 = por %p168, %p169
    %p171 = scmp.ne.s32.totalorder %s162, %s163
    %p172 = scmp.eq.s32.totalorder %s21, 0
    %p173 = por %p171, %p172
    %p174 = scmp.ne.s32.totalorder %s162, %s163
    %p175 = scmp.eq.s32.totalorder %s22, 1
    %p176 = por %p174, %p175
    %p178 = scmp.ne.s32.totalorder %s163, %s177
    %p179 = scmp.eq.s32.totalorder %s22, 0
    %p180 = por %p178, %p179
    %s182 = sadd.s32 %s181, 1
    %p185 = scmp.eq.s32.totalorder %s16, 1
    %p186 = scmp.ne.s32.totalorder %s181, %s183
    %p187 = scmp.eq.s32.totalorder %s16, 0
    %p188 = por %p186, %p187
    %p189 = scmp.ne.s32.totalorder %s181, %s183
    %p190 = scmp.eq.s32.totalorder %s21, 1
    %p191 = por %p189, %p190
    %p192 = scmp.ne.s32.totalorder %s183, %s184
    %p193 = scmp.eq.s32.totalorder %s21, 0
    %p194 = por %p192, %p193
    %p195 = scmp.ne.s32.totalorder %s183, %s184
    %p196 = scmp.eq.s32.totalorder %s22, 1
    %p197 = por %p195, %p196
    %p199 = scmp.ne.s32.totalorder %s184, %s198
    %p200 = scmp.eq.s32.totalorder %s22, 0
    %p201 = por %p199, %p200
    %s202 = ssub.s32 %s16, %s23
    %p203 = scmp.eq.s32.totalorder %s202, 0
    %s205 = sadd.s32 %s204, 1
    %s206 = scalar_select %p203, %s204, %s205
    %p209 = pneg %p203
    %p210 = scmp.eq.s32.totalorder %s16, 1
    %p211 = por %p209, %p210
    %p212 = scmp.ne.s32.totalorder %s204, %s207
    %p213 = scmp.eq.s32.totalorder %s16, 0
    %p214 = por %p212, %p213
    %p215 = scmp.ne.s32.totalorder %s204, %s207
    %p216 = scmp.eq.s32.totalorder %s21, 1
    %p217 = por %p215, %p216
    %p218 = scmp.ne.s32.totalorder %s207, %s208
    %p219 = scmp.eq.s32.totalorder %s21, 0
    %p220 = por %p218, %p219
    %p221 = scmp.ne.s32.totalorder %s207, %s208
    %p222 = scmp.eq.s32.totalorder %s22, 1
    %p223 = por %p221, %p222
    %p225 = scmp.ne.s32.totalorder %s208, %s224
    %p226 = scmp.eq.s32.totalorder %s22, 0
    %p227 = por %p225, %p226
    %s228 = ssub.s32 %s16, %s23
    %p229 = scmp.eq.s32.totalorder %s228, 0
    %s231 = sadd.s32 %s230, 1
    %s232 = scalar_select %p229, %s230, %s231
    %p235 = pneg %p229
    %p236 = scmp.eq.s32.totalorder %s16, 1
    %p237 = por %p235, %p236
    %p238 = scmp.ne.s32.totalorder %s230, %s233
    %p239 = scmp.eq.s32.totalorder %s16, 0
    %p240 = por %p238, %p239
    %p241 = scmp.ne.s32.totalorder %s230, %s233
    %p242 = scmp.eq.s32.totalorder %s21, 1
    %p243 = por %p241, %p242
    %p244 = scmp.ne.s32.totalorder %s233, %s234
    %p245 = scmp.eq.s32.totalorder %s21, 0
    %p246 = por %p244, %p245
    %p247 = scmp.ne.s32.totalorder %s233, %s234
    %p248 = scmp.eq.s32.totalorder %s22, 1
    %p249 = por %p247, %p248
    %p251 = scmp.ne.s32.totalorder %s234, %s250
    %p252 = scmp.eq.s32.totalorder %s22, 0
    %p253 = por %p251, %p252
    %p254 = scmp.le.s32.totalorder 1, %s16
    %p255 = scmp.lt.s32.totalorder %s16, 3
    %p256 = pnand %p254, %p255
    %p257 = pneg %p256
    // Predicated region
    $region9: #{create_img_dendritic_forward.3} parent=5 // pred_check
      _
    $region10: #{create_img_dendritic_forward.3} parent=5 // pred_check_branch
      %259 = sbr.rel (%p256) target = $region12
    $region11: #{create_img_dendritic_forward.3} parent=5 // pred_region
      %s260 = ssub.s32 %s16, 1
      // Predicated region
      $region13: #{create_img_dendritic_forward.3} parent=11 // pred_check
        %p261 = pneg %p89
      $region14: #{create_img_dendritic_forward.3} parent=11 // pred_check_branch
        %263 = sbr.rel (%p261) target = $region16
      $region15: #{create_img_dendritic_forward.3} parent=11 // pred_region
        _
      $region16: #{create_img_dendritic_forward.3} parent=11 // pred_fallthru
        _
      // Predicated region
      $region17: #{create_img_dendritic_forward.3} parent=11 // pred_check
        %p264 = pneg %p110
      $region18: #{create_img_dendritic_forward.3} parent=11 // pred_check_branch
        %266 = sbr.rel (%p264) target = $region20
      $region19: #{create_img_dendritic_forward.3} parent=11 // pred_region
        _
      $region20: #{create_img_dendritic_forward.3} parent=11 // pred_fallthru
        _
      // Predicated region
      $region21: #{create_img_dendritic_forward.3} parent=11 // pred_check
        %p267 = pneg %p131
      $region22: #{create_img_dendritic_forward.3} parent=11 // pred_check_branch
        %269 = sbr.rel (%p267) target = $region24
      $region23: #{create_img_dendritic_forward.3} parent=11 // pred_region
        _
      $region24: #{create_img_dendritic_forward.3} parent=11 // pred_fallthru
        _
      // Predicated region
      $region25: #{create_img_dendritic_forward.3} parent=11 // pred_check
        %p270 = pneg %p152
      $region26: #{create_img_dendritic_forward.3} parent=11 // pred_check_branch
        %272 = sbr.rel (%p270) target = $region28
      $region27: #{create_img_dendritic_forward.3} parent=11 // pred_region
        _
      $region28: #{create_img_dendritic_forward.3} parent=11 // pred_fallthru
        _
      // Predicated region
      $region29: #{create_img_dendritic_forward.3} parent=11 // pred_check
        %p273 = pneg %p173
      $region30: #{create_img_dendritic_forward.3} parent=11 // pred_check_branch
        %275 = sbr.rel (%p273) target = $region32
      $region31: #{create_img_dendritic_forward.3} parent=11 // pred_region
        _
      $region32: #{create_img_dendritic_forward.3} parent=11 // pred_fallthru
        _
      // Predicated region
      $region33: #{create_img_dendritic_forward.3} parent=11 // pred_check
        %p276 = pneg %p194
      $region34: #{create_img_dendritic_forward.3} parent=11 // pred_check_branch
        %278 = sbr.rel (%p276) target = $region36
      $region35: #{create_img_dendritic_forward.3} parent=11 // pred_region
        _
      $region36: #{create_img_dendritic_forward.3} parent=11 // pred_fallthru
        _
    $region12: #{create_img_dendritic_forward.3} parent=5 // pred_fallthru
      _
    %p279 = scmp.lt.s32.totalorder %s16, 2
    // Predicated region
    $region37: #{create_img_dendritic_forward.3} parent=5 // pred_check
      %p280 = pneg %p279
    $region38: #{create_img_dendritic_forward.3} parent=5 // pred_check_branch
      %282 = sbr.rel (%p280) target = $region40
    $region39: #{create_img_dendritic_forward.3} parent=5 // pred_region
      // Predicated region
      $region41: #{create_img_dendritic_forward.3} parent=39 // pred_check
        %p283 = pneg %p36
      $region42: #{create_img_dendritic_forward.3} parent=39 // pred_check_branch
        %285 = sbr.rel (%p283) target = $region44
      $region43: #{create_img_dendritic_forward.3} parent=39 // pred_region
        %p286 = scmp.lt.s32.totalorder %s16, 1
        %s287 = scalar_select %p286, %s16, 1
        %s288 = smul.addr %s287, 42
        %s289 = smul.addr %s288, 4
        %s290 = scalar_lea.vmem %s0, %s289
      $region44: #{create_img_dendritic_forward.3} parent=39 // pred_fallthru
        _
      // Predicated region
      $region45: #{create_img_dendritic_forward.3} parent=39 // pred_check
        %p291 = pneg %p62
      $region46: #{create_img_dendritic_forward.3} parent=39 // pred_check_branch
        %293 = sbr.rel (%p291) target = $region48
      $region47: #{create_img_dendritic_forward.3} parent=39 // pred_region
        %s294 = smul.u32 16, %s16
        %p295 = scmp.lt.s32.totalorder %s294, 31
        %s296 = scalar_select %p295, %s294, 31
        %s297 = smul.addr %s296, 8
        %s298 = scalar_lea.vmem %s1, %s297
        %s299 = smul.u32 16, %s16
      $region48: #{create_img_dendritic_forward.3} parent=39 // pred_fallthru
        _
    $region40: #{create_img_dendritic_forward.3} parent=5 // pred_fallthru
      _
    %p300 = scmp.le.s32.totalorder 1, %s16
    %p301 = scmp.lt.s32.totalorder %s16, 3
    %p302 = pnand %p300, %p301
    %p303 = pneg %p302
    // Predicated region
    $region49: #{create_img_dendritic_forward.3} parent=5 // pred_check
      _
    $region50: #{create_img_dendritic_forward.3} parent=5 // pred_check_branch
      %305 = sbr.rel (%p302) target = $region52
    $region51: #{create_img_dendritic_forward.3} parent=5 // pred_region
      %s306 = ssub.s32 %s16, 1
      %p307 = scmp.lt.s32.totalorder %s21, 1
      %s308 = scalar_select %p307, %s21, 1
      %s309 = smul.addr %s308, 42
      %s310 = smul.addr %s309, 4
      %s311 = scalar_lea.vmem %s0, %s310
      %p312 = pneg %p42
      %p313 = pneg %p39
      %s314 = smul.u32 16, %s21
      %p315 = scmp.lt.s32.totalorder %s314, 31
      %s316 = scalar_select %p315, %s314, 31
      %s317 = smul.addr %s316, 8
      %s318 = scalar_lea.vmem %s1, %s317
      %p319 = pneg %p68
      %p320 = pneg %p65
      %p321 = pneg %p89
      %p322 = pneg %p86
      %p323 = pneg %p110
      %p324 = pneg %p107
      %p325 = pneg %p131
      %p326 = pneg %p128
      %p327 = pneg %p152
      %p328 = pneg %p149
      %p329 = pneg %p173
      %p330 = pneg %p170
      %p331 = pneg %p194
      %p332 = pneg %p191
      %p333 = pneg %p220
      %p334 = pneg %p217
      %s335 = smul.u32 16, %s21
      %p336 = scmp.lt.s32.totalorder %s335, 31
      %s337 = scalar_select %p336, %s335, 31
      %s338 = smul.addr %s337, 8
      %s339 = scalar_lea.vmem %s8, %s338
      %p340 = pneg %p246
      %p341 = pneg %p243
      %p342 = scmp.lt.s32.totalorder %s21, 1
      %s343 = scalar_select %p342, %s21, 1
      %s344 = scalar_lea.vmem %s9, %s343
      %p345 = scmp.lt.s32.totalorder %s21, 1
      %s346 = scalar_select %p345, %s21, 1
      %s347 = smul.addr %s346, 42
      %s348 = smul.addr %s347, 4
      %s349 = scalar_lea.vmem %s0, %s348
      %s350 = smul.u32 16, %s21
      %p351 = scmp.lt.s32.totalorder %s350, 31
      %s352 = scalar_select %p351, %s350, 31
      %s353 = smul.addr %s352, 8
      %s354 = scalar_lea.vmem %s1, %s353
      %s355 = smul.u32 16, %s21
      %s356 = smul.u32 16, %s21
      %p357 = scmp.lt.s32.totalorder %s356, 31
      %s358 = scalar_select %p357, %s356, 31
      %s359 = smul.addr %s358, 8
      %s360 = scalar_lea.vmem %s8, %s359
      %s361 = smul.u32 16, %s21
      %p362 = scmp.lt.s32.totalorder %s21, 1
      %s363 = scalar_select %p362, %s21, 1
      %s364 = scalar_lea.vmem %s9, %s363
      %s366 = smul.u32 %s21, 8
      %v367 = vld [vmem:[%s349] sm:$0xf]
      %v368 = vld [vmem:[%s349 + $0x4] sm:$0xf]
      %v369 = vld [vmem:[%s349 + $0x8] sm:$0x1]
      %v370 = vld [vmem:[%s349 + $0xc] sm:$0xf]
      %v371 = vld [vmem:[%s349 + $0x10] sm:$0xf]
      %v372 = vld [vmem:[%s349 + $0x14] sm:$0x1]
      %v373 = vld [vmem:[%s349 + $0x18] sm:$0xf]
      %v374 = vld [vmem:[%s349 + $0x1c] sm:$0xf]
      %v375 = vld [vmem:[%s349 + $0x20] sm:$0x1]
      %v376 = vld [vmem:[%s349 + $0x24] sm:$0xf]
      %v377 = vld [vmem:[%s349 + $0x28] sm:$0xf]
      %v378 = vld [vmem:[%s349 + $0x2c] sm:$0x1]
      %v379 = vld [vmem:[%s349 + $0x30] sm:$0xf]
      %v380 = vld [vmem:[%s349 + $0x34] sm:$0xf]
      %v381 = vld [vmem:[%s349 + $0x38] sm:$0x1]
      %v382 = vld [vmem:[%s349 + $0x3c] sm:$0xf]
      %v383 = vld [vmem:[%s349 + $0x40] sm:$0xf]
      %v384 = vld [vmem:[%s349 + $0x44] sm:$0x1]
      %v385 = vld [vmem:[%s349 + $0x48] sm:$0xf]
      %v386 = vld [vmem:[%s349 + $0x4c] sm:$0xf]
      %v387 = vld [vmem:[%s349 + $0x50] sm:$0x1]
      %v388 = vld [vmem:[%s349 + $0x54] sm:$0xf]
      %v389 = vld [vmem:[%s349 + $0x58] sm:$0xf]
      %v390 = vld [vmem:[%s349 + $0x5c] sm:$0x1]
      %v391 = vld [vmem:[%s349 + $0x60] sm:$0xf]
      %v392 = vld [vmem:[%s349 + $0x64] sm:$0xf]
      %v393 = vld [vmem:[%s349 + $0x68] sm:$0x1]
      %v394 = vld [vmem:[%s349 + $0x6c] sm:$0xf]
      %v395 = vld [vmem:[%s349 + $0x70] sm:$0xf]
      %v396 = vld [vmem:[%s349 + $0x74] sm:$0x1]
      %v397 = vld [vmem:[%s349 + $0x78] sm:$0xf]
      %v398 = vld [vmem:[%s349 + $0x7c] sm:$0xf]
      %v399 = vld [vmem:[%s349 + $0x80] sm:$0x1]
      %v400 = vld [vmem:[%s349 + $0x84] sm:$0xf]
      %v401 = vld [vmem:[%s349 + $0x88] sm:$0xf]
      %v402 = vld [vmem:[%s349 + $0x8c] sm:$0x1]
      %v403 = vld [vmem:[%s349 + $0x90] sm:$0xf]
      %v404 = vld [vmem:[%s349 + $0x94] sm:$0xf]
      %v405 = vld [vmem:[%s349 + $0x98] sm:$0x1]
      %v406 = vld [vmem:[%s349 + $0x9c] sm:$0xf]
      %v407 = vld [vmem:[%s349 + $0xa0] sm:$0xf]
      %v408 = vld [vmem:[%s349 + $0xa4] sm:$0x1]
      %v409 = vld [vmem:[%s2] sm:$0xf]
      %v410 = vld [vmem:[%s2 + $0x4] sm:$0xf]
      %v411 = vld [vmem:[%s2 + $0x8] sm:$0xf]
      %v412 = vld [vmem:[%s2 + $0xc] sm:$0xf]
      %v413 = vld [vmem:[%s2 + $0x10] sm:$0xf]
      %v414 = vld [vmem:[%s2 + $0x14] sm:$0xf]
      %v415 = vld [vmem:[%s2 + $0x18] sm:$0xf]
      %v416 = vld [vmem:[%s2 + $0x1c] sm:$0xf]
      %v417 = vld [vmem:[%s2 + $0x20] sm:$0xf]
      %v418 = vld [vmem:[%s2 + $0x24] sm:$0xf]
      %v419 = vld [vmem:[%s2 + $0x28] sm:$0xf]
      %v420 = vld [vmem:[%s2 + $0x2c] sm:$0xf]
      %v421 = vld [vmem:[%s2 + $0x30] sm:$0xf]
      %v422 = vld [vmem:[%s2 + $0x34] sm:$0xf]
      %v423 = vld [vmem:[%s2 + $0x38] sm:$0xf]
      %v424 = vld [vmem:[%s2 + $0x3c] sm:$0xf]
      %v425 = vld [vmem:[%s2 + $0x40] sm:$0xf]
      %v426 = vld [vmem:[%s2 + $0x44] sm:$0xf]
      %v427 = vld [vmem:[%s4] sm:$0xf]
      %v428 = vld [vmem:[%s4 + $0x4] sm:$0xf]
      %v429 = vld [vmem:[%s4 + $0x8] sm:$0xf]
      %v430 = vld [vmem:[%s4 + $0xc] sm:$0xf]
      %v431 = vld [vmem:[%s4 + $0x10] sm:$0xf]
      %v432 = vld [vmem:[%s4 + $0x14] sm:$0xf]
      %v433 = vld [vmem:[%s4 + $0x18] sm:$0xf]
      %v434 = vld [vmem:[%s4 + $0x1c] sm:$0xf]
      %v435 = vld [vmem:[%s4 + $0x20] sm:$0xf]
      %v436 = vld [vmem:[%s4 + $0x24] sm:$0xf]
      %v437 = vld [vmem:[%s4 + $0x28] sm:$0xf]
      %v438 = vld [vmem:[%s4 + $0x2c] sm:$0xf]
      %v439 = vld [vmem:[%s4 + $0x30] sm:$0xf]
      %v440 = vld [vmem:[%s4 + $0x34] sm:$0xf]
      %v441 = vld [vmem:[%s4 + $0x38] sm:$0xf]
      %v442 = vld [vmem:[%s4 + $0x3c] sm:$0xf]
      %v443 = vld [vmem:[%s4 + $0x40] sm:$0xf]
      %v444 = vld [vmem:[%s4 + $0x44] sm:$0xf]
      %v445 = vld [vmem:[%s6] sm:$0xf]
      %v446 = vld [vmem:[%s6 + $0x4] sm:$0xf]
      %v447 = vld [vmem:[%s6 + $0x8] sm:$0xf]
      %v448 = vld [vmem:[%s6 + $0xc] sm:$0xf]
      %v449 = vld [vmem:[%s6 + $0x10] sm:$0xf]
      %v450 = vld [vmem:[%s6 + $0x14] sm:$0xf]
      %v451 = vld [vmem:[%s6 + $0x18] sm:$0xf]
      %v452 = vld [vmem:[%s6 + $0x1c] sm:$0xf]
      %v453 = vld [vmem:[%s6 + $0x20] sm:$0xf]
      %v454 = vld [vmem:[%s6 + $0x24] sm:$0xf]
      %v455 = vld [vmem:[%s6 + $0x28] sm:$0xf]
      %v456 = vld [vmem:[%s6 + $0x2c] sm:$0xf]
      %v457 = vld [vmem:[%s6 + $0x30] sm:$0xf]
      %v458 = vld [vmem:[%s6 + $0x34] sm:$0xf]
      %v459 = vld [vmem:[%s6 + $0x38] sm:$0xf]
      %v460 = vld [vmem:[%s6 + $0x3c] sm:$0xf]
      %v461 = vld [vmem:[%s6 + $0x40] sm:$0xf]
      %v462 = vld [vmem:[%s6 + $0x44] sm:$0xf]
      %v463 = vld [vmem:[%s3] sm:$0x1]
      %v464 = vld [vmem:[%s5] sm:$0x1]
      %v465 = vld [vmem:[%s7] sm:$0x1]
      %v490 = vunpack.c.l.b16 %v367
      %v491 = vunpack.c.l.b16 %v368
      %v492 = vunpack.c.l.b16 %v370
      %v493 = vunpack.c.l.b16 %v371
      %v494 = vunpack.c.l.b16 %v373
      %v495 = vunpack.c.l.b16 %v374
      %v496 = vunpack.c.l.b16 %v376
      %v497 = vunpack.c.l.b16 %v377
      %v498 = vunpack.c.l.b16 %v379
      %v499 = vunpack.c.l.b16 %v380
      %v500 = vunpack.c.l.b16 %v382
      %v501 = vunpack.c.l.b16 %v383
      %v502 = vunpack.c.l.b16 %v385
      %v503 = vunpack.c.l.b16 %v386
      %v504 = vunpack.c.l.b16 %v388
      %v505 = vunpack.c.l.b16 %v389
      %v506 = vunpack.c.l.b16 %v391
      %v507 = vunpack.c.l.b16 %v392
      %v508 = vunpack.c.l.b16 %v394
      %v509 = vunpack.c.l.b16 %v395
      %v510 = vunpack.c.l.b16 %v397
      %v511 = vunpack.c.l.b16 %v398
      %v512 = vunpack.c.l.b16 %v400
      %v513 = vunpack.c.l.b16 %v401
      %v514 = vpack.c.b16 %v491, %v490
      %v515 = vpack.c.b16 %v493, %v492
      %v516 = vpack.c.b16 %v495, %v494
      %v517 = vpack.c.b16 %v497, %v496
      %v518 = vpack.c.b16 %v499, %v498
      %v519 = vpack.c.b16 %v501, %v500
      %v520 = vpack.c.b16 %v503, %v502
      %v521 = vpack.c.b16 %v505, %v504
      %v522 = vpack.c.b16 %v507, %v506
      %v523 = vpack.c.b16 %v509, %v508
      %v524 = vpack.c.b16 %v511, %v510
      %v525 = vpack.c.b16 %v513, %v512
      %vm538 = vcmask 130048
      %539 = vst.msk [vmem:[#allocation4] sm:$0xff] %vm538, %v514
      %540 = vst.msk [vmem:[#allocation4 + $0x10] sm:$0xff] %vm538, %v515
      %541 = vst.msk [vmem:[#allocation4 + $0x20] sm:$0xff] %vm538, %v516
      %542 = vst.msk [vmem:[#allocation4 + $0x30] sm:$0xff] %vm538, %v517
      %543 = vst.msk [vmem:[#allocation4 + $0x40] sm:$0xff] %vm538, %v518
      %544 = vst.msk [vmem:[#allocation4 + $0x50] sm:$0xff] %vm538, %v519
      %545 = vst.msk [vmem:[#allocation4 + $0x60] sm:$0xff] %vm538, %v520
      %546 = vst.msk [vmem:[#allocation4 + $0x70] sm:$0xff] %vm538, %v521
      %547 = vst.msk [vmem:[#allocation4 + $0x80] sm:$0xff] %vm538, %v522
      %548 = vst.msk [vmem:[#allocation4 + $0x90] sm:$0xff] %vm538, %v523
      %549 = vst.msk [vmem:[#allocation4 + $0xa0] sm:$0xff] %vm538, %v524
      %550 = vst.msk [vmem:[#allocation4 + $0xb0] sm:$0xff] %vm538, %v525
      %vm551 = vsmask.f32 3328
      %vm552 = vsmask.f32 7440
      %vm553 = vmor %vm551, %vm552
      %v555 = vshrl.u32 %v367, 16
      %v557 = vrot.slane %v555, 4
      %v558 = vshll.u32 %v367, 16
      %v560 = vrot.slane %v558, 5
      %v561 = vor.u32 %v557, %v560
      %v562 = vrot.slane %v561, 4
      %v564 = vshll.u32 %v368, 16
      %v566 = vrot.slane %v564, 5
      %v567 = vsel %vm553, %v562, %v566
      %v568 = vshrl.u32 %v368, 16
      %v570 = vrot.slane %v568, 4
      %v571 = vor.u32 %v570, %v566
      %v572 = vrot.slane %v571, 4
      %v574 = vshll.u32 %v369, 16
      %v576 = vrot.slane %v574, 5
      %v577 = vsel %vm553, %v572, %v576
      %v579 = vshrl.u32 %v370, 16
      %v581 = vrot.slane %v579, 4
      %v582 = vshll.u32 %v370, 16
      %v584 = vrot.slane %v582, 5
      %v585 = vor.u32 %v581, %v584
      %v586 = vrot.slane %v585, 4
      %v588 = vshll.u32 %v371, 16
      %v590 = vrot.slane %v588, 5
      %v591 = vsel %vm553, %v586, %v590
      %v592 = vshrl.u32 %v371, 16
      %v594 = vrot.slane %v592, 4
      %v595 = vor.u32 %v594, %v590
      %v596 = vrot.slane %v595, 4
      %v598 = vshll.u32 %v372, 16
      %v600 = vrot.slane %v598, 5
      %v601 = vsel %vm553, %v596, %v600
      %v603 = vshrl.u32 %v373, 16
      %v605 = vrot.slane %v603, 4
      %v606 = vshll.u32 %v373, 16
      %v608 = vrot.slane %v606, 5
      %v609 = vor.u32 %v605, %v608
      %v610 = vrot.slane %v609, 4
      %v612 = vshll.u32 %v374, 16
      %v614 = vrot.slane %v612, 5
      %v615 = vsel %vm553, %v610, %v614
      %v616 = vshrl.u32 %v374, 16
      %v618 = vrot.slane %v616, 4
      %v619 = vor.u32 %v618, %v614
      %v620 = vrot.slane %v619, 4
      %v622 = vshll.u32 %v375, 16
      %v624 = vrot.slane %v622, 5
      %v625 = vsel %vm553, %v620, %v624
      %v627 = vshrl.u32 %v376, 16
      %v629 = vrot.slane %v627, 4
      %v630 = vshll.u32 %v376, 16
      %v632 = vrot.slane %v630, 5
      %v633 = vor.u32 %v629, %v632
      %v634 = vrot.slane %v633, 4
      %v636 = vshll.u32 %v377, 16
      %v638 = vrot.slane %v636, 5
      %v639 = vsel %vm553, %v634, %v638
      %v640 = vshrl.u32 %v377, 16
      %v642 = vrot.slane %v640, 4
      %v643 = vor.u32 %v642, %v638
      %v644 = vrot.slane %v643, 4
      %v646 = vshll.u32 %v378, 16
      %v648 = vrot.slane %v646, 5
      %v649 = vsel %vm553, %v644, %v648
      %v651 = vshrl.u32 %v379, 16
      %v653 = vrot.slane %v651, 4
      %v654 = vshll.u32 %v379, 16
      %v656 = vrot.slane %v654, 5
      %v657 = vor.u32 %v653, %v656
      %v658 = vrot.slane %v657, 4
      %v660 = vshll.u32 %v380, 16
      %v662 = vrot.slane %v660, 5
      %v663 = vsel %vm553, %v658, %v662
      %v664 = vshrl.u32 %v380, 16
      %v666 = vrot.slane %v664, 4
      %v667 = vor.u32 %v666, %v662
      %v668 = vrot.slane %v667, 4
      %v670 = vshll.u32 %v381, 16
      %v672 = vrot.slane %v670, 5
      %v673 = vsel %vm553, %v668, %v672
      %v675 = vshrl.u32 %v382, 16
      %v677 = vrot.slane %v675, 4
      %v678 = vshll.u32 %v382, 16
      %v680 = vrot.slane %v678, 5
      %v681 = vor.u32 %v677, %v680
      %v682 = vrot.slane %v681, 4
      %v684 = vshll.u32 %v383, 16
      %v686 = vrot.slane %v684, 5
      %v687 = vsel %vm553, %v682, %v686
      %v688 = vshrl.u32 %v383, 16
      %v690 = vrot.slane %v688, 4
      %v691 = vor.u32 %v690, %v686
      %v692 = vrot.slane %v691, 4
      %v694 = vshll.u32 %v384, 16
      %v696 = vrot.slane %v694, 5
      %v697 = vsel %vm553, %v692, %v696
      %v699 = vshrl.u32 %v385, 16
      %v701 = vrot.slane %v699, 4
      %v702 = vshll.u32 %v385, 16
      %v704 = vrot.slane %v702, 5
      %v705 = vor.u32 %v701, %v704
      %v706 = vrot.slane %v705, 4
      %v708 = vshll.u32 %v386, 16
      %v710 = vrot.slane %v708, 5
      %v711 = vsel %vm553, %v706, %v710
      %v712 = vshrl.u32 %v386, 16
      %v714 = vrot.slane %v712, 4
      %v715 = vor.u32 %v714, %v710
      %v716 = vrot.slane %v715, 4
      %v718 = vshll.u32 %v387, 16
      %v720 = vrot.slane %v718, 5
      %v721 = vsel %vm553, %v716, %v720
      %v723 = vshrl.u32 %v388, 16
      %v725 = vrot.slane %v723, 4
      %v726 = vshll.u32 %v388, 16
      %v728 = vrot.slane %v726, 5
      %v729 = vor.u32 %v725, %v728
      %v730 = vrot.slane %v729, 4
      %v732 = vshll.u32 %v389, 16
      %v734 = vrot.slane %v732, 5
      %v735 = vsel %vm553, %v730, %v734
      %v736 = vshrl.u32 %v389, 16
      %v738 = vrot.slane %v736, 4
      %v739 = vor.u32 %v738, %v734
      %v740 = vrot.slane %v739, 4
      %v742 = vshll.u32 %v390, 16
      %v744 = vrot.slane %v742, 5
      %v745 = vsel %vm553, %v740, %v744
      %v747 = vshrl.u32 %v391, 16
      %v749 = vrot.slane %v747, 4
      %v750 = vshll.u32 %v391, 16
      %v752 = vrot.slane %v750, 5
      %v753 = vor.u32 %v749, %v752
      %v754 = vrot.slane %v753, 4
      %v756 = vshll.u32 %v392, 16
      %v758 = vrot.slane %v756, 5
      %v759 = vsel %vm553, %v754, %v758
      %v760 = vshrl.u32 %v392, 16
      %v762 = vrot.slane %v760, 4
      %v763 = vor.u32 %v762, %v758
      %v764 = vrot.slane %v763, 4
      %v766 = vshll.u32 %v393, 16
      %v768 = vrot.slane %v766, 5
      %v769 = vsel %vm553, %v764, %v768
      %v771 = vshrl.u32 %v394, 16
      %v773 = vrot.slane %v771, 4
      %v774 = vshll.u32 %v394, 16
      %v776 = vrot.slane %v774, 5
      %v777 = vor.u32 %v773, %v776
      %v778 = vrot.slane %v777, 4
      %v780 = vshll.u32 %v395, 16
      %v782 = vrot.slane %v780, 5
      %v783 = vsel %vm553, %v778, %v782
      %v784 = vshrl.u32 %v395, 16
      %v786 = vrot.slane %v784, 4
      %v787 = vor.u32 %v786, %v782
      %v788 = vrot.slane %v787, 4
      %v790 = vshll.u32 %v396, 16
      %v792 = vrot.slane %v790, 5
      %v793 = vsel %vm553, %v788, %v792
      %v795 = vshrl.u32 %v397, 16
      %v797 = vrot.slane %v795, 4
      %v798 = vshll.u32 %v397, 16
      %v800 = vrot.slane %v798, 5
      %v801 = vor.u32 %v797, %v800
      %v802 = vrot.slane %v801, 4
      %v804 = vshll.u32 %v398, 16
      %v806 = vrot.slane %v804, 5
      %v807 = vsel %vm553, %v802, %v806
      %v808 = vshrl.u32 %v398, 16
      %v810 = vrot.slane %v808, 4
      %v811 = vor.u32 %v810, %v806
      %v812 = vrot.slane %v811, 4
      %v814 = vshll.u32 %v399, 16
      %v816 = vrot.slane %v814, 5
      %v817 = vsel %vm553, %v812, %v816
      %v819 = vshrl.u32 %v400, 16
      %v821 = vrot.slane %v819, 4
      %v822 = vshll.u32 %v400, 16
      %v824 = vrot.slane %v822, 5
      %v825 = vor.u32 %v821, %v824
      %v826 = vrot.slane %v825, 4
      %v828 = vshll.u32 %v401, 16
      %v830 = vrot.slane %v828, 5
      %v831 = vsel %vm553, %v826, %v830
      %v832 = vshrl.u32 %v401, 16
      %v834 = vrot.slane %v832, 4
      %v835 = vor.u32 %v834, %v830
      %v836 = vrot.slane %v835, 4
      %v838 = vshll.u32 %v402, 16
      %v840 = vrot.slane %v838, 5
      %v841 = vsel %vm553, %v836, %v840
      %v842 = vunpack.c.l.b16 %v567
      %v843 = vunpack.c.l.b16 %v577
      %v844 = vunpack.c.l.b16 %v591
      %v845 = vunpack.c.l.b16 %v601
      %v846 = vunpack.c.l.b16 %v615
      %v847 = vunpack.c.l.b16 %v625
      %v848 = vunpack.c.l.b16 %v639
      %v849 = vunpack.c.l.b16 %v649
      %v850 = vunpack.c.l.b16 %v663
      %v851 = vunpack.c.l.b16 %v673
      %v852 = vunpack.c.l.b16 %v687
      %v853 = vunpack.c.l.b16 %v697
      %v854 = vunpack.c.l.b16 %v711
      %v855 = vunpack.c.l.b16 %v721
      %v856 = vunpack.c.l.b16 %v735
      %v857 = vunpack.c.l.b16 %v745
      %v858 = vunpack.c.l.b16 %v759
      %v859 = vunpack.c.l.b16 %v769
      %v860 = vunpack.c.l.b16 %v783
      %v861 = vunpack.c.l.b16 %v793
      %v862 = vunpack.c.l.b16 %v807
      %v863 = vunpack.c.l.b16 %v817
      %v864 = vunpack.c.l.b16 %v831
      %v865 = vunpack.c.l.b16 %v841
      %v866 = vpack.c.b16 %v843, %v842
      %v867 = vpack.c.b16 %v845, %v844
      %v868 = vpack.c.b16 %v847, %v846
      %v869 = vpack.c.b16 %v849, %v848
      %v870 = vpack.c.b16 %v851, %v850
      %v871 = vpack.c.b16 %v853, %v852
      %v872 = vpack.c.b16 %v855, %v854
      %v873 = vpack.c.b16 %v857, %v856
      %v874 = vpack.c.b16 %v859, %v858
      %v875 = vpack.c.b16 %v861, %v860
      %v876 = vpack.c.b16 %v863, %v862
      %v877 = vpack.c.b16 %v865, %v864
      %878 = vrot.lane.b32.xlu0 %v866, 16
      %v879 = vpop.permute.xlu0 %878
      %880 = vrot.lane.b32.xlu0 %v867, 16
      %v881 = vpop.permute.xlu0 %880
      %882 = vrot.lane.b32.xlu0 %v868, 16
      %v883 = vpop.permute.xlu0 %882
      %884 = vrot.lane.b32.xlu0 %v869, 16
      %v885 = vpop.permute.xlu0 %884
      %886 = vrot.lane.b32.xlu0 %v870, 16
      %v887 = vpop.permute.xlu0 %886
      %888 = vrot.lane.b32.xlu0 %v871, 16
      %v889 = vpop.permute.xlu0 %888
      %890 = vrot.lane.b32.xlu0 %v872, 16
      %v891 = vpop.permute.xlu0 %890
      %892 = vrot.lane.b32.xlu0 %v873, 16
      %v893 = vpop.permute.xlu0 %892
      %894 = vrot.lane.b32.xlu0 %v874, 16
      %v895 = vpop.permute.xlu0 %894
      %896 = vrot.lane.b32.xlu0 %v875, 16
      %v897 = vpop.permute.xlu0 %896
      %898 = vrot.lane.b32.xlu0 %v876, 16
      %v899 = vpop.permute.xlu0 %898
      %900 = vrot.lane.b32.xlu0 %v877, 16
      %v901 = vpop.permute.xlu0 %900
      %vm914 = vcmask 261248
      %915 = vst.msk [vmem:[#allocation4] sm:$0xff] %vm914, %v879
      %916 = vst.msk [vmem:[#allocation4 + $0x10] sm:$0xff] %vm914, %v881
      %917 = vst.msk [vmem:[#allocation4 + $0x20] sm:$0xff] %vm914, %v883
      %918 = vst.msk [vmem:[#allocation4 + $0x30] sm:$0xff] %vm914, %v885
      %919 = vst.msk [vmem:[#allocation4 + $0x40] sm:$0xff] %vm914, %v887
      %920 = vst.msk [vmem:[#allocation4 + $0x50] sm:$0xff] %vm914, %v889
      %921 = vst.msk [vmem:[#allocation4 + $0x60] sm:$0xff] %vm914, %v891
      %922 = vst.msk [vmem:[#allocation4 + $0x70] sm:$0xff] %vm914, %v893
      %923 = vst.msk [vmem:[#allocation4 + $0x80] sm:$0xff] %vm914, %v895
      %924 = vst.msk [vmem:[#allocation4 + $0x90] sm:$0xff] %vm914, %v897
      %925 = vst.msk [vmem:[#allocation4 + $0xa0] sm:$0xff] %vm914, %v899
      %926 = vst.msk [vmem:[#allocation4 + $0xb0] sm:$0xff] %vm914, %v901
      %vm939 = vcmask 1042432
      %vm940 = vcmask 1046532
      %vm941 = vmor %vm939, %vm940
      %v942 = vrot.slane %v367, 5
      %v943 = vrot.slane %v942, 4
      %v944 = vrot.slane %v368, 5
      %v945 = vsel %vm941, %v943, %v944
      %v946 = vrot.slane %v944, 4
      %v947 = vrot.slane %v369, 5
      %v948 = vsel %vm941, %v946, %v947
      %v949 = vrot.slane %v370, 5
      %v950 = vrot.slane %v949, 4
      %v951 = vrot.slane %v371, 5
      %v952 = vsel %vm941, %v950, %v951
      %v953 = vrot.slane %v951, 4
      %v954 = vrot.slane %v372, 5
      %v955 = vsel %vm941, %v953, %v954
      %v956 = vrot.slane %v373, 5
      %v957 = vrot.slane %v956, 4
      %v958 = vrot.slane %v374, 5
      %v959 = vsel %vm941, %v957, %v958
      %v960 = vrot.slane %v958, 4
      %v961 = vrot.slane %v375, 5
      %v962 = vsel %vm941, %v960, %v961
      %v963 = vrot.slane %v376, 5
      %v964 = vrot.slane %v963, 4
      %v965 = vrot.slane %v377, 5
      %v966 = vsel %vm941, %v964, %v965
      %v967 = vrot.slane %v965, 4
      %v968 = vrot.slane %v378, 5
      %v969 = vsel %vm941, %v967, %v968
      %v970 = vrot.slane %v379, 5
      %v971 = vrot.slane %v970, 4
      %v972 = vrot.slane %v380, 5
      %v973 = vsel %vm941, %v971, %v972
      %v974 = vrot.slane %v972, 4
      %v975 = vrot.slane %v381, 5
      %v976 = vsel %vm941, %v974, %v975
      %v977 = vrot.slane %v382, 5
      %v978 = vrot.slane %v977, 4
      %v979 = vrot.slane %v383, 5
      %v980 = vsel %vm941, %v978, %v979
      %v981 = vrot.slane %v979, 4
      %v982 = vrot.slane %v384, 5
      %v983 = vsel %vm941, %v981, %v982
      %v984 = vrot.slane %v385, 5
      %v985 = vrot.slane %v984, 4
      %v986 = vrot.slane %v386, 5
      %v987 = vsel %vm941, %v985, %v986
      %v988 = vrot.slane %v986, 4
      %v989 = vrot.slane %v387, 5
      %v990 = vsel %vm941, %v988, %v989
      %v991 = vrot.slane %v388, 5
      %v992 = vrot.slane %v991, 4
      %v993 = vrot.slane %v389, 5
      %v994 = vsel %vm941, %v992, %v993
      %v995 = vrot.slane %v993, 4
      %v996 = vrot.slane %v390, 5
      %v997 = vsel %vm941, %v995, %v996
      %v998 = vrot.slane %v391, 5
      %v999 = vrot.slane %v998, 4
      %v1000 = vrot.slane %v392, 5
      %v1001 = vsel %vm941, %v999, %v1000
      %v1002 = vrot.slane %v1000, 4
      %v1003 = vrot.slane %v393, 5
      %v1004 = vsel %vm941, %v1002, %v1003
      %v1005 = vrot.slane %v394, 5
      %v1006 = vrot.slane %v1005, 4
      %v1007 = vrot.slane %v395, 5
      %v1008 = vsel %vm941, %v1006, %v1007
      %v1009 = vrot.slane %v1007, 4
      %v1010 = vrot.slane %v396, 5
      %v1011 = vsel %vm941, %v1009, %v1010
      %v1012 = vrot.slane %v397, 5
      %v1013 = vrot.slane %v1012, 4
      %v1014 = vrot.slane %v398, 5
      %v1015 = vsel %vm941, %v1013, %v1014
      %v1016 = vrot.slane %v1014, 4
      %v1017 = vrot.slane %v399, 5
      %v1018 = vsel %vm941, %v1016, %v1017
      %v1019 = vrot.slane %v400, 5
      %v1020 = vrot.slane %v1019, 4
      %v1021 = vrot.slane %v401, 5
      %v1022 = vsel %vm941, %v1020, %v1021
      %v1023 = vrot.slane %v1021, 4
      %v1024 = vrot.slane %v402, 5
      %v1025 = vsel %vm941, %v1023, %v1024
      %v1026 = vunpack.c.l.b16 %v945
      %v1027 = vunpack.c.l.b16 %v948
      %v1028 = vunpack.c.l.b16 %v952
      %v1029 = vunpack.c.l.b16 %v955
      %v1030 = vunpack.c.l.b16 %v959
      %v1031 = vunpack.c.l.b16 %v962
      %v1032 = vunpack.c.l.b16 %v966
      %v1033 = vunpack.c.l.b16 %v969
      %v1034 = vunpack.c.l.b16 %v973
      %v1035 = vunpack.c.l.b16 %v976
      %v1036 = vunpack.c.l.b16 %v980
      %v1037 = vunpack.c.l.b16 %v983
      %v1038 = vunpack.c.l.b16 %v987
      %v1039 = vunpack.c.l.b16 %v990
      %v1040 = vunpack.c.l.b16 %v994
      %v1041 = vunpack.c.l.b16 %v997
      %v1042 = vunpack.c.l.b16 %v1001
      %v1043 = vunpack.c.l.b16 %v1004
      %v1044 = vunpack.c.l.b16 %v1008
      %v1045 = vunpack.c.l.b16 %v1011
      %v1046 = vunpack.c.l.b16 %v1015
      %v1047 = vunpack.c.l.b16 %v1018
      %v1048 = vunpack.c.l.b16 %v1022
      %v1049 = vunpack.c.l.b16 %v1025
      %v1050 = vpack.c.b16 %v1027, %v1026
      %v1051 = vpack.c.b16 %v1029, %v1028
      %v1052 = vpack.c.b16 %v1031, %v1030
      %v1053 = vpack.c.b16 %v1033, %v1032
      %v1054 = vpack.c.b16 %v1035, %v1034
      %v1055 = vpack.c.b16 %v1037, %v1036
      %v1056 = vpack.c.b16 %v1039, %v1038
      %v1057 = vpack.c.b16 %v1041, %v1040
      %v1058 = vpack.c.b16 %v1043, %v1042
      %v1059 = vpack.c.b16 %v1045, %v1044
      %v1060 = vpack.c.b16 %v1047, %v1046
      %v1061 = vpack.c.b16 %v1049, %v1048
      %1062 = vrot.lane.b32.xlu0 %v1050, 32
      %v1063 = vpop.permute.xlu0 %1062
      %1064 = vrot.lane.b32.xlu0 %v1051, 32
      %v1065 = vpop.permute.xlu0 %1064
      %1066 = vrot.lane.b32.xlu0 %v1052, 32
      %v1067 = vpop.permute.xlu0 %1066
      %1068 = vrot.lane.b32.xlu0 %v1053, 32
      %v1069 = vpop.permute.xlu0 %1068
      %1070 = vrot.lane.b32.xlu0 %v1054, 32
      %v1071 = vpop.permute.xlu0 %1070
      %1072 = vrot.lane.b32.xlu0 %v1055, 32
      %v1073 = vpop.permute.xlu0 %1072
      %1074 = vrot.lane.b32.xlu0 %v1056, 32
      %v1075 = vpop.permute.xlu0 %1074
      %1076 = vrot.lane.b32.xlu0 %v1057, 32
      %v1077 = vpop.permute.xlu0 %1076
      %1078 = vrot.lane.b32.xlu0 %v1058, 32
      %v1079 = vpop.permute.xlu0 %1078
      %1080 = vrot.lane.b32.xlu0 %v1059, 32
      %v1081 = vpop.permute.xlu0 %1080
      %1082 = vrot.lane.b32.xlu0 %v1060, 32
      %v1083 = vpop.permute.xlu0 %1082
      %1084 = vrot.lane.b32.xlu0 %v1061, 32
      %v1085 = vpop.permute.xlu0 %1084
      %vm1098 = vcmask 392448
      %1099 = vst.msk [vmem:[#allocation4] sm:$0xff] %vm1098, %v1063
      %1100 = vst.msk [vmem:[#allocation4 + $0x10] sm:$0xff] %vm1098, %v1065
      %1101 = vst.msk [vmem:[#allocation4 + $0x20] sm:$0xff] %vm1098, %v1067
      %1102 = vst.msk [vmem:[#allocation4 + $0x30] sm:$0xff] %vm1098, %v1069
      %1103 = vst.msk [vmem:[#allocation4 + $0x40] sm:$0xff] %vm1098, %v1071
      %1104 = vst.msk [vmem:[#allocation4 + $0x50] sm:$0xff] %vm1098, %v1073
      %1105 = vst.msk [vmem:[#allocation4 + $0x60] sm:$0xff] %vm1098, %v1075
      %1106 = vst.msk [vmem:[#allocation4 + $0x70] sm:$0xff] %vm1098, %v1077
      %1107 = vst.msk [vmem:[#allocation4 + $0x80] sm:$0xff] %vm1098, %v1079
      %1108 = vst.msk [vmem:[#allocation4 + $0x90] sm:$0xff] %vm1098, %v1081
      %1109 = vst.msk [vmem:[#allocation4 + $0xa0] sm:$0xff] %vm1098, %v1083
      %1110 = vst.msk [vmem:[#allocation4 + $0xb0] sm:$0xff] %vm1098, %v1085
      %v1113 = vunpack.c.l.b16 %v403
      %v1114 = vunpack.c.l.b16 %v404
      %v1115 = vpack.c.b16 %v1114, %v1113
      %1116 = vrot.lane.b32.xlu0 %v515, 48
      %v1117 = vpop.permute.xlu0 %1116
      %1118 = vrot.lane.b32.xlu0 %v516, 48
      %v1119 = vpop.permute.xlu0 %1118
      %1120 = vrot.lane.b32.xlu0 %v517, 48
      %v1121 = vpop.permute.xlu0 %1120
      %1122 = vrot.lane.b32.xlu0 %v518, 48
      %v1123 = vpop.permute.xlu0 %1122
      %1124 = vrot.lane.b32.xlu0 %v519, 48
      %v1125 = vpop.permute.xlu0 %1124
      %1126 = vrot.lane.b32.xlu0 %v520, 48
      %v1127 = vpop.permute.xlu0 %1126
      %1128 = vrot.lane.b32.xlu0 %v521, 48
      %v1129 = vpop.permute.xlu0 %1128
      %1130 = vrot.lane.b32.xlu0 %v522, 48
      %v1131 = vpop.permute.xlu0 %1130
      %1132 = vrot.lane.b32.xlu0 %v523, 48
      %v1133 = vpop.permute.xlu0 %1132
      %1134 = vrot.lane.b32.xlu0 %v524, 48
      %v1135 = vpop.permute.xlu0 %1134
      %1136 = vrot.lane.b32.xlu0 %v525, 48
      %v1137 = vpop.permute.xlu0 %1136
      %1138 = vrot.lane.b32.xlu0 %v1115, 48
      %v1139 = vpop.permute.xlu0 %1138
      %vm1152 = vcmask 523648
      %1153 = vst.msk [vmem:[#allocation4] sm:$0xff] %vm1152, %v1117
      %1154 = vst.msk [vmem:[#allocation4 + $0x10] sm:$0xff] %vm1152, %v1119
      %1155 = vst.msk [vmem:[#allocation4 + $0x20] sm:$0xff] %vm1152, %v1121
      %1156 = vst.msk [vmem:[#allocation4 + $0x30] sm:$0xff] %vm1152, %v1123
      %1157 = vst.msk [vmem:[#allocation4 + $0x40] sm:$0xff] %vm1152, %v1125
      %1158 = vst.msk [vmem:[#allocation4 + $0x50] sm:$0xff] %vm1152, %v1127
      %1159 = vst.msk [vmem:[#allocation4 + $0x60] sm:$0xff] %vm1152, %v1129
      %1160 = vst.msk [vmem:[#allocation4 + $0x70] sm:$0xff] %vm1152, %v1131
      %1161 = vst.msk [vmem:[#allocation4 + $0x80] sm:$0xff] %vm1152, %v1133
      %1162 = vst.msk [vmem:[#allocation4 + $0x90] sm:$0xff] %vm1152, %v1135
      %1163 = vst.msk [vmem:[#allocation4 + $0xa0] sm:$0xff] %vm1152, %v1137
      %1164 = vst.msk [vmem:[#allocation4 + $0xb0] sm:$0xff] %vm1152, %v1139
      %v1166 = vshrl.u32 %v403, 16
      %v1168 = vrot.slane %v1166, 4
      %v1169 = vshll.u32 %v403, 16
      %v1171 = vrot.slane %v1169, 5
      %v1172 = vor.u32 %v1168, %v1171
      %v1173 = vrot.slane %v1172, 4
      %v1175 = vshll.u32 %v404, 16
      %v1177 = vrot.slane %v1175, 5
      %v1178 = vsel %vm553, %v1173, %v1177
      %v1179 = vshrl.u32 %v404, 16
      %v1181 = vrot.slane %v1179, 4
      %v1182 = vor.u32 %v1181, %v1177
      %v1183 = vrot.slane %v1182, 4
      %v1185 = vshll.u32 %v405, 16
      %v1187 = vrot.slane %v1185, 5
      %v1188 = vsel %vm553, %v1183, %v1187
      %v1189 = vunpack.c.l.b16 %v1178
      %v1190 = vunpack.c.l.b16 %v1188
      %v1191 = vpack.c.b16 %v1190, %v1189
      %1192 = vrot.lane.b32.xlu0 %v867, 64
      %v1193 = vpop.permute.xlu0 %1192
      %1194 = vrot.lane.b32.xlu0 %v868, 64
      %v1195 = vpop.permute.xlu0 %1194
      %1196 = vrot.lane.b32.xlu0 %v869, 64
      %v1197 = vpop.permute.xlu0 %1196
      %1198 = vrot.lane.b32.xlu0 %v870, 64
      %v1199 = vpop.permute.xlu0 %1198
      %1200 = vrot.lane.b32.xlu0 %v871, 64
      %v1201 = vpop.permute.xlu0 %1200
      %1202 = vrot.lane.b32.xlu0 %v872, 64
      %v1203 = vpop.permute.xlu0 %1202
      %1204 = vrot.lane.b32.xlu0 %v873, 64
      %v1205 = vpop.permute.xlu0 %1204
      %1206 = vrot.lane.b32.xlu0 %v874, 64
      %v1207 = vpop.permute.xlu0 %1206
      %1208 = vrot.lane.b32.xlu0 %v875, 64
      %v1209 = vpop.permute.xlu0 %1208
      %1210 = vrot.lane.b32.xlu0 %v876, 64
      %v1211 = vpop.permute.xlu0 %1210
      %1212 = vrot.lane.b32.xlu0 %v877, 64
      %v1213 = vpop.permute.xlu0 %1212
      %1214 = vrot.lane.b32.xlu0 %v1191, 64
      %v1215 = vpop.permute.xlu0 %1214
      %vm1228 = vcmask 654848
      %1229 = vst.msk [vmem:[#allocation4] sm:$0xff] %vm1228, %v1193
      %1230 = vst.msk [vmem:[#allocation4 + $0x10] sm:$0xff] %vm1228, %v1195
      %1231 = vst.msk [vmem:[#allocation4 + $0x20] sm:$0xff] %vm1228, %v1197
      %1232 = vst.msk [vmem:[#allocation4 + $0x30] sm:$0xff] %vm1228, %v1199
      %1233 = vst.msk [vmem:[#allocation4 + $0x40] sm:$0xff] %vm1228, %v1201
      %1234 = vst.msk [vmem:[#allocation4 + $0x50] sm:$0xff] %vm1228, %v1203
      %1235 = vst.msk [vmem:[#allocation4 + $0x60] sm:$0xff] %vm1228, %v1205
      %1236 = vst.msk [vmem:[#allocation4 + $0x70] sm:$0xff] %vm1228, %v1207
      %1237 = vst.msk [vmem:[#allocation4 + $0x80] sm:$0xff] %vm1228, %v1209
      %1238 = vst.msk [vmem:[#allocation4 + $0x90] sm:$0xff] %vm1228, %v1211
      %1239 = vst.msk [vmem:[#allocation4 + $0xa0] sm:$0xff] %vm1228, %v1213
      %1240 = vst.msk [vmem:[#allocation4 + $0xb0] sm:$0xff] %vm1228, %v1215
      %v1242 = vrot.slane %v403, 5
      %v1243 = vrot.slane %v1242, 4
      %v1244 = vrot.slane %v404, 5
      %v1245 = vsel %vm941, %v1243, %v1244
      %v1246 = vrot.slane %v1244, 4
      %v1247 = vrot.slane %v405, 5
      %v1248 = vsel %vm941, %v1246, %v1247
      %v1249 = vunpack.c.l.b16 %v1245
      %v1250 = vunpack.c.l.b16 %v1248
      %v1251 = vpack.c.b16 %v1250, %v1249
      %1252 = vrot.lane.b32.xlu0 %v1051, 80
      %v1253 = vpop.permute.xlu0 %1252
      %1254 = vrot.lane.b32.xlu0 %v1052, 80
      %v1255 = vpop.permute.xlu0 %1254
      %1256 = vrot.lane.b32.xlu0 %v1053, 80
      %v1257 = vpop.permute.xlu0 %1256
      %1258 = vrot.lane.b32.xlu0 %v1054, 80
      %v1259 = vpop.permute.xlu0 %1258
      %1260 = vrot.lane.b32.xlu0 %v1055, 80
      %v1261 = vpop.permute.xlu0 %1260
      %1262 = vrot.lane.b32.xlu0 %v1056, 80
      %v1263 = vpop.permute.xlu0 %1262
      %1264 = vrot.lane.b32.xlu0 %v1057, 80
      %v1265 = vpop.permute.xlu0 %1264
      %1266 = vrot.lane.b32.xlu0 %v1058, 80
      %v1267 = vpop.permute.xlu0 %1266
      %1268 = vrot.lane.b32.xlu0 %v1059, 80
      %v1269 = vpop.permute.xlu0 %1268
      %1270 = vrot.lane.b32.xlu0 %v1060, 80
      %v1271 = vpop.permute.xlu0 %1270
      %1272 = vrot.lane.b32.xlu0 %v1061, 80
      %v1273 = vpop.permute.xlu0 %1272
      %1274 = vrot.lane.b32.xlu0 %v1251, 80
      %v1275 = vpop.permute.xlu0 %1274
      %vm1288 = vcmask 786048
      %1289 = vst.msk [vmem:[#allocation4] sm:$0xff] %vm1288, %v1253
      %1290 = vst.msk [vmem:[#allocation4 + $0x10] sm:$0xff] %vm1288, %v1255
      %1291 = vst.msk [vmem:[#allocation4 + $0x20] sm:$0xff] %vm1288, %v1257
      %1292 = vst.msk [vmem:[#allocation4 + $0x30] sm:$0xff] %vm1288, %v1259
      %1293 = vst.msk [vmem:[#allocation4 + $0x40] sm:$0xff] %vm1288, %v1261
      %1294 = vst.msk [vmem:[#allocation4 + $0x50] sm:$0xff] %vm1288, %v1263
      %1295 = vst.msk [vmem:[#allocation4 + $0x60] sm:$0xff] %vm1288, %v1265
      %1296 = vst.msk [vmem:[#allocation4 + $0x70] sm:$0xff] %vm1288, %v1267
      %1297 = vst.msk [vmem:[#allocation4 + $0x80] sm:$0xff] %vm1288, %v1269
      %1298 = vst.msk [vmem:[#allocation4 + $0x90] sm:$0xff] %vm1288, %v1271
      %1299 = vst.msk [vmem:[#allocation4 + $0xa0] sm:$0xff] %vm1288, %v1273
      %1300 = vst.msk [vmem:[#allocation4 + $0xb0] sm:$0xff] %vm1288, %v1275
      %v1303 = vunpack.c.l.b16 %v406
      %v1304 = vunpack.c.l.b16 %v407
      %v1305 = vpack.c.b16 %v1304, %v1303
      %1306 = vrot.lane.b32.xlu0 %v516, 96
      %v1307 = vpop.permute.xlu0 %1306
      %1308 = vrot.lane.b32.xlu0 %v517, 96
      %v1309 = vpop.permute.xlu0 %1308
      %1310 = vrot.lane.b32.xlu0 %v518, 96
      %v1311 = vpop.permute.xlu0 %1310
      %1312 = vrot.lane.b32.xlu0 %v519, 96
      %v1313 = vpop.permute.xlu0 %1312
      %1314 = vrot.lane.b32.xlu0 %v520, 96
      %v1315 = vpop.permute.xlu0 %1314
      %1316 = vrot.lane.b32.xlu0 %v521, 96
      %v1317 = vpop.permute.xlu0 %1316
      %1318 = vrot.lane.b32.xlu0 %v522, 96
      %v1319 = vpop.permute.xlu0 %1318
      %1320 = vrot.lane.b32.xlu0 %v523, 96
      %v1321 = vpop.permute.xlu0 %1320
      %1322 = vrot.lane.b32.xlu0 %v524, 96
      %v1323 = vpop.permute.xlu0 %1322
      %1324 = vrot.lane.b32.xlu0 %v525, 96
      %v1325 = vpop.permute.xlu0 %1324
      %1326 = vrot.lane.b32.xlu0 %v1115, 96
      %v1327 = vpop.permute.xlu0 %1326
      %1328 = vrot.lane.b32.xlu0 %v1305, 96
      %v1329 = vpop.permute.xlu0 %1328
      %vm1342 = vcmask 917248
      %1343 = vst.msk [vmem:[#allocation4] sm:$0xff] %vm1342, %v1307
      %1344 = vst.msk [vmem:[#allocation4 + $0x10] sm:$0xff] %vm1342, %v1309
      %1345 = vst.msk [vmem:[#allocation4 + $0x20] sm:$0xff] %vm1342, %v1311
      %1346 = vst.msk [vmem:[#allocation4 + $0x30] sm:$0xff] %vm1342, %v1313
      %1347 = vst.msk [vmem:[#allocation4 + $0x40] sm:$0xff] %vm1342, %v1315
      %1348 = vst.msk [vmem:[#allocation4 + $0x50] sm:$0xff] %vm1342, %v1317
      %1349 = vst.msk [vmem:[#allocation4 + $0x60] sm:$0xff] %vm1342, %v1319
      %1350 = vst.msk [vmem:[#allocation4 + $0x70] sm:$0xff] %vm1342, %v1321
      %1351 = vst.msk [vmem:[#allocation4 + $0x80] sm:$0xff] %vm1342, %v1323
      %1352 = vst.msk [vmem:[#allocation4 + $0x90] sm:$0xff] %vm1342, %v1325
      %1353 = vst.msk [vmem:[#allocation4 + $0xa0] sm:$0xff] %vm1342, %v1327
      %1354 = vst.msk [vmem:[#allocation4 + $0xb0] sm:$0xff] %vm1342, %v1329
      %v1356 = vshrl.u32 %v406, 16
      %v1358 = vrot.slane %v1356, 4
      %v1359 = vshll.u32 %v406, 16
      %v1361 = vrot.slane %v1359, 5
      %v1362 = vor.u32 %v1358, %v1361
      %v1363 = vrot.slane %v1362, 4
      %v1365 = vshll.u32 %v407, 16
      %v1367 = vrot.slane %v1365, 5
      %v1368 = vsel %vm553, %v1363, %v1367
      %v1369 = vshrl.u32 %v407, 16
      %v1371 = vrot.slane %v1369, 4
      %v1372 = vor.u32 %v1371, %v1367
      %v1373 = vrot.slane %v1372, 4
      %v1375 = vshll.u32 %v408, 16
      %v1377 = vrot.slane %v1375, 5
      %v1378 = vsel %vm553, %v1373, %v1377
      %v1379 = vunpack.c.l.b16 %v1368
      %v1380 = vunpack.c.l.b16 %v1378
      %v1381 = vpack.c.b16 %v1380, %v1379
      %1382 = vrot.lane.b32.xlu0 %v868, 112
      %v1383 = vpop.permute.xlu0 %1382
      %1384 = vrot.lane.b32.xlu0 %v869, 112
      %v1385 = vpop.permute.xlu0 %1384
      %1386 = vrot.lane.b32.xlu0 %v870, 112
      %v1387 = vpop.permute.xlu0 %1386
      %1388 = vrot.lane.b32.xlu0 %v871, 112
      %v1389 = vpop.permute.xlu0 %1388
      %1390 = vrot.lane.b32.xlu0 %v872, 112
      %v1391 = vpop.permute.xlu0 %1390
      %1392 = vrot.lane.b32.xlu0 %v873, 112
      %v1393 = vpop.permute.xlu0 %1392
      %1394 = vrot.lane.b32.xlu0 %v874, 112
      %v1395 = vpop.permute.xlu0 %1394
      %1396 = vrot.lane.b32.xlu0 %v875, 112
      %v1397 = vpop.permute.xlu0 %1396
      %1398 = vrot.lane.b32.xlu0 %v876, 112
      %v1399 = vpop.permute.xlu0 %1398
      %1400 = vrot.lane.b32.xlu0 %v877, 112
      %v1401 = vpop.permute.xlu0 %1400
      %1402 = vrot.lane.b32.xlu0 %v1191, 112
      %v1403 = vpop.permute.xlu0 %1402
      %1404 = vrot.lane.b32.xlu0 %v1381, 112
      %v1405 = vpop.permute.xlu0 %1404
      %vm1418 = vcmask 1048448
      %1419 = vst.msk [vmem:[#allocation4] sm:$0xff] %vm1418, %v1383
      %1420 = vst.msk [vmem:[#allocation4 + $0x10] sm:$0xff] %vm1418, %v1385
      %1421 = vst.msk [vmem:[#allocation4 + $0x20] sm:$0xff] %vm1418, %v1387
      %1422 = vst.msk [vmem:[#allocation4 + $0x30] sm:$0xff] %vm1418, %v1389
      %1423 = vst.msk [vmem:[#allocation4 + $0x40] sm:$0xff] %vm1418, %v1391
      %1424 = vst.msk [vmem:[#allocation4 + $0x50] sm:$0xff] %vm1418, %v1393
      %1425 = vst.msk [vmem:[#allocation4 + $0x60] sm:$0xff] %vm1418, %v1395
      %1426 = vst.msk [vmem:[#allocation4 + $0x70] sm:$0xff] %vm1418, %v1397
      %1427 = vst.msk [vmem:[#allocation4 + $0x80] sm:$0xff] %vm1418, %v1399
      %1428 = vst.msk [vmem:[#allocation4 + $0x90] sm:$0xff] %vm1418, %v1401
      %1429 = vst.msk [vmem:[#allocation4 + $0xa0] sm:$0xff] %vm1418, %v1403
      %1430 = vst.msk [vmem:[#allocation4 + $0xb0] sm:$0xff] %vm1418, %v1405
      %v1432 = vrot.slane %v406, 5
      %v1433 = vrot.slane %v1432, 4
      %v1434 = vrot.slane %v407, 5
      %v1435 = vsel %vm941, %v1433, %v1434
      %v1436 = vrot.slane %v1434, 4
      %v1437 = vrot.slane %v408, 5
      %v1438 = vsel %vm941, %v1436, %v1437
      %v1439 = vunpack.c.l.b16 %v1435
      %v1440 = vunpack.c.l.b16 %v1438
      %v1441 = vpack.c.b16 %v1440, %v1439
      %1454 = vst.msk [vmem:[#allocation4 + $0x8] sm:$0xff] %vm538, %v1052
      %1455 = vst.msk [vmem:[#allocation4 + $0x18] sm:$0xff] %vm538, %v1053
      %1456 = vst.msk [vmem:[#allocation4 + $0x28] sm:$0xff] %vm538, %v1054
      %1457 = vst.msk [vmem:[#allocation4 + $0x38] sm:$0xff] %vm538, %v1055
      %1458 = vst.msk [vmem:[#allocation4 + $0x48] sm:$0xff] %vm538, %v1056
      %1459 = vst.msk [vmem:[#allocation4 + $0x58] sm:$0xff] %vm538, %v1057
      %1460 = vst.msk [vmem:[#allocation4 + $0x68] sm:$0xff] %vm538, %v1058
      %1461 = vst.msk [vmem:[#allocation4 + $0x78] sm:$0xff] %vm538, %v1059
      %1462 = vst.msk [vmem:[#allocation4 + $0x88] sm:$0xff] %vm538, %v1060
      %1463 = vst.msk [vmem:[#allocation4 + $0x98] sm:$0xff] %vm538, %v1061
      %1464 = vst.msk [vmem:[#allocation4 + $0xa8] sm:$0xff] %vm538, %v1251
      %1465 = vst.msk [vmem:[#allocation4 + $0xb8] sm:$0xff] %vm538, %v1441
      %v1466 = vld [vmem:[#allocation4] sm:$0xff]
      %v1467 = vld [vmem:[#allocation4 + $0x8] sm:$0xff]
      %v1468 = vld [vmem:[#allocation4 + $0x10] sm:$0xff]
      %v1469 = vld [vmem:[#allocation4 + $0x18] sm:$0xff]
      %v1470 = vld [vmem:[#allocation4 + $0x20] sm:$0xff]
      %v1471 = vld [vmem:[#allocation4 + $0x28] sm:$0xff]
      %v1472 = vld [vmem:[#allocation4 + $0x30] sm:$0xff]
      %v1473 = vld [vmem:[#allocation4 + $0x38] sm:$0xff]
      %v1474 = vld [vmem:[#allocation4 + $0x40] sm:$0xff]
      %v1475 = vld [vmem:[#allocation4 + $0x48] sm:$0xff]
      %v1476 = vld [vmem:[#allocation4 + $0x50] sm:$0xff]
      %v1477 = vld [vmem:[#allocation4 + $0x58] sm:$0xff]
      %v1478 = vld [vmem:[#allocation4 + $0x60] sm:$0xff]
      %v1479 = vld [vmem:[#allocation4 + $0x68] sm:$0xff]
      %v1480 = vld [vmem:[#allocation4 + $0x70] sm:$0xff]
      %v1481 = vld [vmem:[#allocation4 + $0x78] sm:$0xff]
      %v1482 = vld [vmem:[#allocation4 + $0x80] sm:$0xff]
      %v1483 = vld [vmem:[#allocation4 + $0x88] sm:$0xff]
      %v1484 = vld [vmem:[#allocation4 + $0x90] sm:$0xff]
      %v1485 = vld [vmem:[#allocation4 + $0x98] sm:$0xff]
      %v1486 = vld [vmem:[#allocation4 + $0xa0] sm:$0xff]
      %v1487 = vld [vmem:[#allocation4 + $0xa8] sm:$0xff]
      %v1488 = vld [vmem:[#allocation4 + $0xb0] sm:$0xff]
      %v1489 = vld [vmem:[#allocation4 + $0xb8] sm:$0xff]
      %v1491 = vlaneseq
      %v1492 = vshrl.u32 %v1491, 7
      %v1493 = vsub.s32 0, %v1492
      %v1494 = vrot.slane %v463, %v1493
      %v1514 = vunpack.c.l.b16 %v409
      %v1515 = vunpack.c.l.b16 %v410
      %v1516 = vunpack.c.l.b16 %v411
      %v1517 = vunpack.c.l.b16 %v412
      %v1518 = vunpack.c.l.b16 %v413
      %v1519 = vunpack.c.l.b16 %v414
      %v1520 = vunpack.c.l.b16 %v415
      %v1521 = vunpack.c.l.b16 %v416
      %v1522 = vunpack.c.l.b16 %v417
      %v1523 = vunpack.c.l.b16 %v418
      %v1524 = vunpack.c.l.b16 %v419
      %v1525 = vunpack.c.l.b16 %v420
      %v1526 = vunpack.c.l.b16 %v421
      %v1527 = vunpack.c.l.b16 %v422
      %v1528 = vunpack.c.l.b16 %v423
      %v1529 = vunpack.c.l.b16 %v424
      %v1530 = vunpack.c.l.b16 %v425
      %v1531 = vunpack.c.l.b16 %v426
      %v1532 = vpack.c.b16 %v1515, %v1514
      %v1533 = vpack.c.b16 %v1517, %v1516
      %v1534 = vpack.c.b16 %v1519, %v1518
      %v1535 = vpack.c.b16 %v1521, %v1520
      %v1536 = vpack.c.b16 %v1523, %v1522
      %v1537 = vpack.c.b16 %v1525, %v1524
      %v1538 = vpack.c.b16 %v1527, %v1526
      %v1539 = vpack.c.b16 %v1529, %v1528
      %v1540 = vpack.c.b16 %v1531, %v1530
      %v1551 = vsel %vm538, %v1467, 0
      %v1554 = vsel %vm538, %v1469, 0
      %v1557 = vsel %vm538, %v1471, 0
      %v1560 = vsel %vm538, %v1473, 0
      %v1563 = vsel %vm538, %v1475, 0
      %v1566 = vsel %vm538, %v1477, 0
      %v1569 = vsel %vm538, %v1479, 0
      %v1572 = vsel %vm538, %v1481, 0
      %v1575 = vsel %vm538, %v1483, 0
      %v1578 = vsel %vm538, %v1485, 0
      %v1581 = vsel %vm538, %v1487, 0
      %v1584 = vsel %vm538, %v1489, 0
      %1586 = vmatprep.subr.bf16.mxu0 0
      %1587 = vmatpush1.bf16.msra.mxu0 %v1532
      %1588 = vmatprep.subr.bf16.mxu0 0
      %1589 = vmatpush1.bf16.msra.mxu0 %v1533
      %1590 = vmatprep.subr.bf16.mxu0 0
      %1591 = vmatpush1.bf16.msra.mxu0 %v1534
      %1592 = vmatprep.subr.bf16.mxu0 0
      %1593 = vmatpush1.bf16.msra.mxu0 %v1535
      %1594 = vmatprep.subr.bf16.mxu0 0
      %1595 = vmatpush1.bf16.msra.mxu0 %v1536
      %1596 = vmatprep.subr.bf16.mxu0 0
      %1597 = vmatpush1.bf16.msra.mxu0 %v1537
      %1598 = vmatprep.subr.bf16.mxu0 0
      %1599 = vmatpush1.bf16.msra.mxu0 %v1538
      %1600 = vmatprep.subr.bf16.mxu0 0
      %1601 = vmatpush1.bf16.msra.mxu0 %v1539
      %1602 = vmatprep.subr.bf16.mxu0 0
      %1603 = vmatpush1.bf16.msra.mxu0 %v1540
      %1604 = vmatprep.subr.bf16.mxu0 0
      %1605 = vmatpush1.bf16.msra.mxu0 0
      %1606 = vmatprep.subr.bf16.mxu0 0
      %1607 = vmatpush1.bf16.msra.mxu0 0
      %1608 = vmatprep.subr.bf16.mxu0 0
      %1609 = vmatpush1.bf16.msra.mxu0 0
      %1610 = vmatprep.subr.bf16.mxu0 0
      %1611 = vmatpush1.bf16.msra.mxu0 0
      %1612 = vmatprep.subr.bf16.mxu0 0
      %1613 = vmatpush1.bf16.msra.mxu0 0
      %1614 = vmatprep.subr.bf16.mxu0 0
      %1615 = vmatpush1.bf16.msra.mxu0 0
      %1616 = vmatprep.subr.bf16.mxu0 0
      %1617 = vmatpush1.bf16.msra.mxu0 0
      %1618 = vmatprep.mubr.bf16.mxu0 %v1551
      %1619 = vmatmul.mubr.bf16.gmra.mrb[0].mxu0 %v1466
      %v1620 = vpop.f32.mrb[0].mxu0
      %v1621 = vadd.f32 %v1494, %v1620
      %v1622 = vpop.f32.mrb[0].mxu0
      %v1623 = vpop.f32.mrb[0].mxu0
      %v1624 = vadd.f32 %v1494, %v1623
      %v1625 = vpop.f32.mrb[0].mxu0
      %1626 = vmatprep.mubr.bf16.mxu0 %v1554
      %1627 = vmatmul.mubr.bf16.gmra.mrb[0].mxu0 %v1468
      %v1628 = vpop.f32.mrb[0].mxu0
      %v1629 = vadd.f32 %v1494, %v1628
      %v1630 = vpop.f32.mrb[0].mxu0
      %v1631 = vpop.f32.mrb[0].mxu0
      %v1632 = vadd.f32 %v1494, %v1631
      %v1633 = vpop.f32.mrb[0].mxu0
      %1634 = vmatprep.mubr.bf16.mxu0 %v1557
      %1635 = vmatmul.mubr.bf16.gmra.mrb[0].mxu0 %v1470
      %v1636 = vpop.f32.mrb[0].mxu0
      %v1637 = vadd.f32 %v1494, %v1636
      %v1638 = vpop.f32.mrb[0].mxu0
      %v1639 = vpop.f32.mrb[0].mxu0
      %v1640 = vadd.f32 %v1494, %v1639
      %v1641 = vpop.f32.mrb[0].mxu0
      %1642 = vmatprep.mubr.bf16.mxu0 %v1560
      %1643 = vmatmul.mubr.bf16.gmra.mrb[0].mxu0 %v1472
      %v1644 = vpop.f32.mrb[0].mxu0
      %v1645 = vadd.f32 %v1494, %v1644
      %v1646 = vpop.f32.mrb[0].mxu0
      %v1647 = vpop.f32.mrb[0].mxu0
      %v1648 = vadd.f32 %v1494, %v1647
      %v1649 = vpop.f32.mrb[0].mxu0
      %1650 = vmatprep.mubr.bf16.mxu0 %v1563
      %1651 = vmatmul.mubr.bf16.gmra.mrb[0].mxu0 %v1474
      %v1652 = vpop.f32.mrb[0].mxu0
      %v1653 = vadd.f32 %v1494, %v1652
      %v1654 = vpop.f32.mrb[0].mxu0
      %v1655 = vpop.f32.mrb[0].mxu0
      %v1656 = vadd.f32 %v1494, %v1655
      %v1657 = vpop.f32.mrb[0].mxu0
      %1658 = vmatprep.mubr.bf16.mxu0 %v1566
      %1659 = vmatmul.mubr.bf16.gmra.mrb[0].mxu0 %v1476
      %v1660 = vpop.f32.mrb[0].mxu0
      %v1661 = vadd.f32 %v1494, %v1660
      %v1662 = vpop.f32.mrb[0].mxu0
      %v1663 = vpop.f32.mrb[0].mxu0
      %v1664 = vadd.f32 %v1494, %v1663
      %v1665 = vpop.f32.mrb[0].mxu0
      %1666 = vmatprep.mubr.bf16.mxu0 %v1569
      %1667 = vmatmul.mubr.bf16.gmra.mrb[0].mxu0 %v1478
      %v1668 = vpop.f32.mrb[0].mxu0
      %v1669 = vadd.f32 %v1494, %v1668
      %v1670 = vpop.f32.mrb[0].mxu0
      %v1671 = vpop.f32.mrb[0].mxu0
      %v1672 = vadd.f32 %v1494, %v1671
      %v1673 = vpop.f32.mrb[0].mxu0
      %1674 = vmatprep.mubr.bf16.mxu0 %v1572
      %1675 = vmatmul.mubr.bf16.gmra.mrb[0].mxu0 %v1480
      %v1676 = vpop.f32.mrb[0].mxu0
      %v1677 = vadd.f32 %v1494, %v1676
      %v1678 = vpop.f32.mrb[0].mxu0
      %v1679 = vpop.f32.mrb[0].mxu0
      %v1680 = vadd.f32 %v1494, %v1679
      %v1681 = vpop.f32.mrb[0].mxu0
      %1682 = vmatprep.mubr.bf16.mxu0 %v1575
      %1683 = vmatmul.mubr.bf16.gmra.mrb[0].mxu0 %v1482
      %v1684 = vpop.f32.mrb[0].mxu0
      %v1685 = vadd.f32 %v1494, %v1684
      %v1686 = vpop.f32.mrb[0].mxu0
      %v1687 = vpop.f32.mrb[0].mxu0
      %v1688 = vadd.f32 %v1494, %v1687
      %v1689 = vpop.f32.mrb[0].mxu0
      %1690 = vmatprep.mubr.bf16.mxu0 %v1578
      %1691 = vmatmul.mubr.bf16.gmra.mrb[0].mxu0 %v1484
      %v1692 = vpop.f32.mrb[0].mxu0
      %v1693 = vadd.f32 %v1494, %v1692
      %v1694 = vpop.f32.mrb[0].mxu0
      %v1695 = vpop.f32.mrb[0].mxu0
      %v1696 = vadd.f32 %v1494, %v1695
      %v1697 = vpop.f32.mrb[0].mxu0
      %1698 = vmatprep.mubr.bf16.mxu0 %v1581
      %1699 = vmatmul.mubr.bf16.gmra.mrb[0].mxu0 %v1486
      %v1700 = vpop.f32.mrb[0].mxu0
      %v1701 = vadd.f32 %v1494, %v1700
      %v1702 = vpop.f32.mrb[0].mxu0
      %v1703 = vpop.f32.mrb[0].mxu0
      %v1704 = vadd.f32 %v1494, %v1703
      %v1705 = vpop.f32.mrb[0].mxu0
      %1706 = vmatprep.mubr.bf16.mxu0 %v1584
      %1707 = vmatmul.mubr.bf16.gmra.mrb[0].mxu0 %v1488
      %v1708 = vpop.f32.mrb[0].mxu0
      %v1709 = vadd.f32 %v1494, %v1708
      %v1710 = vpop.f32.mrb[0].mxu0
      %v1711 = vpop.f32.mrb[0].mxu0
      %v1712 = vadd.f32 %v1494, %v1711
      %v1713 = vpop.f32.mrb[0].mxu0
      %1714 = vdwg.mxu0
      %v1715 = vmax.f32 %v1621, 0.0
      %v1716 = vmax.f32 %v1624, 0.0
      %v1717 = vmax.f32 %v1629, 0.0
      %v1718 = vmax.f32 %v1632, 0.0
      %v1719 = vmax.f32 %v1637, 0.0
      %v1720 = vmax.f32 %v1640, 0.0
      %v1721 = vmax.f32 %v1645, 0.0
      %v1722 = vmax.f32 %v1648, 0.0
      %v1723 = vmax.f32 %v1653, 0.0
      %v1724 = vmax.f32 %v1656, 0.0
      %v1725 = vmax.f32 %v1661, 0.0
      %v1726 = vmax.f32 %v1664, 0.0
      %v1727 = vmax.f32 %v1669, 0.0
      %v1728 = vmax.f32 %v1672, 0.0
      %v1729 = vmax.f32 %v1677, 0.0
      %v1730 = vmax.f32 %v1680, 0.0
      %v1731 = vmax.f32 %v1685, 0.0
      %v1732 = vmax.f32 %v1688, 0.0
      %v1733 = vmax.f32 %v1693, 0.0
      %v1734 = vmax.f32 %v1696, 0.0
      %v1735 = vmax.f32 %v1701, 0.0
      %v1736 = vmax.f32 %v1704, 0.0
      %v1737 = vmax.f32 %v1709, 0.0
      %v1738 = vmax.f32 %v1712, 0.0
      %v1739 = vstv %s366
      %v1740 = vadd.s32 %v1739, 1
      %v1741 = vadd.s32 %v1739, 2
      %v1742 = vadd.s32 %v1739, 3
      %v1743 = vadd.s32 %v1739, 4
      %v1744 = vadd.s32 %v1739, 5
      %v1745 = vadd.s32 %v1739, 6
      %v1746 = vadd.s32 %v1739, 7
      %v1747 = vadd.s32 %v1739, 8
      %v1748 = vadd.s32 %v1739, 9
      %v1749 = vadd.s32 %v1739, 10
      %v1750 = vadd.s32 %v1739, 11
      %vm1751 = vcmp.ge.s32.totalorder %v1739, 2
      %vm1752 = vcmp.ge.s32.totalorder %v1740, 2
      %vm1753 = vcmp.ge.s32.totalorder %v1741, 2
      %vm1754 = vcmp.ge.s32.totalorder %v1742, 2
      %vm1755 = vcmp.ge.s32.totalorder %v1743, 2
      %vm1756 = vcmp.ge.s32.totalorder %v1744, 2
      %vm1757 = vcmp.ge.s32.totalorder %v1745, 2
      %vm1758 = vcmp.ge.s32.totalorder %v1746, 2
      %vm1759 = vcmp.ge.s32.totalorder %v1747, 2
      %vm1760 = vcmp.ge.s32.totalorder %v1748, 2
      %vm1761 = vcmp.ge.s32.totalorder %v1749, 2
      %vm1762 = vcmp.ge.s32.totalorder %v1750, 2
      %vm1763 = vcmp.lt.s32.totalorder %v1739, 18
      %vm1764 = vcmp.lt.s32.totalorder %v1740, 18
      %vm1765 = vcmp.lt.s32.totalorder %v1741, 18
      %vm1766 = vcmp.lt.s32.totalorder %v1742, 18
      %vm1767 = vcmp.lt.s32.totalorder %v1743, 18
      %vm1768 = vcmp.lt.s32.totalorder %v1744, 18
      %vm1769 = vcmp.lt.s32.totalorder %v1745, 18
      %vm1770 = vcmp.lt.s32.totalorder %v1746, 18
      %vm1771 = vcmp.lt.s32.totalorder %v1747, 18
      %vm1772 = vcmp.lt.s32.totalorder %v1748, 18
      %vm1773 = vcmp.lt.s32.totalorder %v1749, 18
      %vm1774 = vcmp.lt.s32.totalorder %v1750, 18
      %vm1775 = vmand %vm1751, %vm1763
      %vm1776 = vmand %vm1752, %vm1764
      %vm1777 = vmand %vm1753, %vm1765
      %vm1778 = vmand %vm1754, %vm1766
      %vm1779 = vmand %vm1755, %vm1767
      %vm1780 = vmand %vm1756, %vm1768
      %vm1781 = vmand %vm1757, %vm1769
      %vm1782 = vmand %vm1758, %vm1770
      %vm1783 = vmand %vm1759, %vm1771
      %vm1784 = vmand %vm1760, %vm1772
      %vm1785 = vmand %vm1761, %vm1773
      %vm1786 = vmand %vm1762, %vm1774
      %v1787 = vsel %vm1775, 1, 0
      %v1788 = vsel %vm1776, 1, 0
      %v1789 = vsel %vm1777, 1, 0
      %v1790 = vsel %vm1778, 1, 0
      %v1791 = vsel %vm1779, 1, 0
      %v1792 = vsel %vm1780, 1, 0
      %v1793 = vsel %vm1781, 1, 0
      %v1794 = vsel %vm1782, 1, 0
      %v1795 = vsel %vm1783, 1, 0
      %v1796 = vsel %vm1784, 1, 0
      %v1797 = vsel %vm1785, 1, 0
      %v1798 = vsel %vm1786, 1, 0
      %vm1799 = vcmp.eq.s32.totalorder %v1787, 1
      %vm1800 = vcmp.eq.s32.totalorder %v1788, 1
      %vm1801 = vcmp.eq.s32.totalorder %v1789, 1
      %vm1802 = vcmp.eq.s32.totalorder %v1790, 1
      %vm1803 = vcmp.eq.s32.totalorder %v1791, 1
      %vm1804 = vcmp.eq.s32.totalorder %v1792, 1
      %vm1805 = vcmp.eq.s32.totalorder %v1793, 1
      %vm1806 = vcmp.eq.s32.totalorder %v1794, 1
      %vm1807 = vcmp.eq.s32.totalorder %v1795, 1
      %vm1808 = vcmp.eq.s32.totalorder %v1796, 1
      %vm1809 = vcmp.eq.s32.totalorder %v1797, 1
      %vm1810 = vcmp.eq.s32.totalorder %v1798, 1
      %v1811 = vsel %vm1799, %v1715, 0.0
      %v1812 = vsel %vm1799, %v1716, 0.0
      %v1813 = vsel %vm1800, %v1717, 0.0
      %v1814 = vsel %vm1800, %v1718, 0.0
      %v1815 = vsel %vm1801, %v1719, 0.0
      %v1816 = vsel %vm1801, %v1720, 0.0
      %v1817 = vsel %vm1802, %v1721, 0.0
      %v1818 = vsel %vm1802, %v1722, 0.0
      %v1819 = vsel %vm1803, %v1723, 0.0
      %v1820 = vsel %vm1803, %v1724, 0.0
      %v1821 = vsel %vm1804, %v1725, 0.0
      %v1822 = vsel %vm1804, %v1726, 0.0
      %v1823 = vsel %vm1805, %v1727, 0.0
      %v1824 = vsel %vm1805, %v1728, 0.0
      %v1825 = vsel %vm1806, %v1729, 0.0
      %v1826 = vsel %vm1806, %v1730, 0.0
      %v1827 = vsel %vm1807, %v1731, 0.0
      %v1828 = vsel %vm1807, %v1732, 0.0
      %v1829 = vsel %vm1808, %v1733, 0.0
      %v1830 = vsel %vm1808, %v1734, 0.0
      %v1831 = vsel %vm1809, %v1735, 0.0
      %v1832 = vsel %vm1809, %v1736, 0.0
      %v1833 = vsel %vm1810, %v1737, 0.0
      %v1834 = vsel %vm1810, %v1738, 0.0
      %v1835 = vpack.c.bf16 %v1812, %v1811
      %v1836 = vpack.c.bf16 %v1814, %v1813
      %v1837 = vpack.c.bf16 %v1816, %v1815
      %v1838 = vpack.c.bf16 %v1818, %v1817
      %v1839 = vpack.c.bf16 %v1820, %v1819
      %v1840 = vpack.c.bf16 %v1822, %v1821
      %v1841 = vpack.c.bf16 %v1824, %v1823
      %v1842 = vpack.c.bf16 %v1826, %v1825
      %v1843 = vpack.c.bf16 %v1828, %v1827
      %v1844 = vpack.c.bf16 %v1830, %v1829
      %v1845 = vpack.c.bf16 %v1832, %v1831
      %v1846 = vpack.c.bf16 %v1834, %v1833
      %vm1847 = vcmask 122880
      %vm1848 = vsmask.f32 256
      %vm1849 = vmand %vm1847, %vm1848
      %v1850 = vld [vmem:[#allocation2] sm:$0x1]
      %v1851 = vsel %vm1849, 0, %v1850
      %1852 = vst [vmem:[#allocation2] sm:$0x1] %v1851
      %v1853 = vld [vmem:[#allocation2 + $0xc] sm:$0x1]
      %v1854 = vsel %vm1849, 0, %v1853
      %1855 = vst [vmem:[#allocation2 + $0xc] sm:$0x1] %v1854
      %v1856 = vld [vmem:[#allocation2 + $0x18] sm:$0x1]
      %v1857 = vsel %vm1849, 0, %v1856
      %1858 = vst [vmem:[#allocation2 + $0x18] sm:$0x1] %v1857
      %v1859 = vld [vmem:[#allocation2 + $0x24] sm:$0x1]
      %v1860 = vsel %vm1849, 0, %v1859
      %1861 = vst [vmem:[#allocation2 + $0x24] sm:$0x1] %v1860
      %v1862 = vld [vmem:[#allocation2 + $0x30] sm:$0x1]
      %v1863 = vsel %vm1849, 0, %v1862
      %1864 = vst [vmem:[#allocation2 + $0x30] sm:$0x1] %v1863
      %v1865 = vld [vmem:[#allocation2 + $0x3c] sm:$0x1]
      %v1866 = vsel %vm1849, 0, %v1865
      %1867 = vst [vmem:[#allocation2 + $0x3c] sm:$0x1] %v1866
      %v1868 = vld [vmem:[#allocation2 + $0x48] sm:$0x1]
      %v1869 = vsel %vm1849, 0, %v1868
      %1870 = vst [vmem:[#allocation2 + $0x48] sm:$0x1] %v1869
      %v1871 = vld [vmem:[#allocation2 + $0x54] sm:$0x1]
      %v1872 = vsel %vm1849, 0, %v1871
      %1873 = vst [vmem:[#allocation2 + $0x54] sm:$0x1] %v1872
      %v1874 = vld [vmem:[#allocation2 + $0x60] sm:$0x1]
      %v1875 = vsel %vm1849, 0, %v1874
      %1876 = vst [vmem:[#allocation2 + $0x60] sm:$0x1] %v1875
      %v1877 = vld [vmem:[#allocation2 + $0x6c] sm:$0x1]
      %v1878 = vsel %vm1849, 0, %v1877
      %1879 = vst [vmem:[#allocation2 + $0x6c] sm:$0x1] %v1878
      %v1880 = vld [vmem:[#allocation2 + $0x78] sm:$0x1]
      %v1881 = vsel %vm1849, 0, %v1880
      %1882 = vst [vmem:[#allocation2 + $0x78] sm:$0x1] %v1881
      %v1883 = vld [vmem:[#allocation2 + $0x84] sm:$0x1]
      %v1884 = vsel %vm1849, 0, %v1883
      %1885 = vst [vmem:[#allocation2 + $0x84] sm:$0x1] %v1884
      %vm1886 = vsmask.f32 7938
      %vm1887 = vmand %vm1847, %vm1886
      %v1888 = vld [vmem:[#allocation2 + $0x8] sm:$0x1]
      %v1889 = vsel %vm1887, 0, %v1888
      %1890 = vst [vmem:[#allocation2 + $0x8] sm:$0x1] %v1889
      %v1891 = vld [vmem:[#allocation2 + $0x14] sm:$0x1]
      %v1892 = vsel %vm1887, 0, %v1891
      %1893 = vst [vmem:[#allocation2 + $0x14] sm:$0x1] %v1892
      %v1894 = vld [vmem:[#allocation2 + $0x20] sm:$0x1]
      %v1895 = vsel %vm1887, 0, %v1894
      %1896 = vst [vmem:[#allocation2 + $0x20] sm:$0x1] %v1895
      %v1897 = vld [vmem:[#allocation2 + $0x2c] sm:$0x1]
      %v1898 = vsel %vm1887, 0, %v1897
      %1899 = vst [vmem:[#allocation2 + $0x2c] sm:$0x1] %v1898
      %v1900 = vld [vmem:[#allocation2 + $0x38] sm:$0x1]
      %v1901 = vsel %vm1887, 0, %v1900
      %1902 = vst [vmem:[#allocation2 + $0x38] sm:$0x1] %v1901
      %v1903 = vld [vmem:[#allocation2 + $0x44] sm:$0x1]
      %v1904 = vsel %vm1887, 0, %v1903
      %1905 = vst [vmem:[#allocation2 + $0x44] sm:$0x1] %v1904
      %v1906 = vld [vmem:[#allocation2 + $0x50] sm:$0x1]
      %v1907 = vsel %vm1887, 0, %v1906
      %1908 = vst [vmem:[#allocation2 + $0x50] sm:$0x1] %v1907
      %v1909 = vld [vmem:[#allocation2 + $0x5c] sm:$0x1]
      %v1910 = vsel %vm1887, 0, %v1909
      %1911 = vst [vmem:[#allocation2 + $0x5c] sm:$0x1] %v1910
      %v1912 = vld [vmem:[#allocation2 + $0x68] sm:$0x1]
      %v1913 = vsel %vm1887, 0, %v1912
      %1914 = vst [vmem:[#allocation2 + $0x68] sm:$0x1] %v1913
      %v1915 = vld [vmem:[#allocation2 + $0x74] sm:$0x1]
      %v1916 = vsel %vm1887, 0, %v1915
      %1917 = vst [vmem:[#allocation2 + $0x74] sm:$0x1] %v1916
      %v1918 = vld [vmem:[#allocation2 + $0x80] sm:$0x1]
      %v1919 = vsel %vm1887, 0, %v1918
      %1920 = vst [vmem:[#allocation2 + $0x80] sm:$0x1] %v1919
      %v1921 = vld [vmem:[#allocation2 + $0x8c] sm:$0x1]
      %v1922 = vsel %vm1887, 0, %v1921
      %1923 = vst [vmem:[#allocation2 + $0x8c] sm:$0x1] %v1922
      %v1936 = vunpack.c.l.b16 %v1835
      %v1937 = vunpack.c.h.b16 %v1835
      %v1938 = vunpack.c.l.b16 %v1836
      %v1939 = vunpack.c.h.b16 %v1836
      %v1940 = vunpack.c.l.b16 %v1837
      %v1941 = vunpack.c.h.b16 %v1837
      %v1942 = vunpack.c.l.b16 %v1838
      %v1943 = vunpack.c.h.b16 %v1838
      %v1944 = vunpack.c.l.b16 %v1839
      %v1945 = vunpack.c.h.b16 %v1839
      %v1946 = vunpack.c.l.b16 %v1840
      %v1947 = vunpack.c.h.b16 %v1840
      %v1948 = vunpack.c.l.b16 %v1841
      %v1949 = vunpack.c.h.b16 %v1841
      %v1950 = vunpack.c.l.b16 %v1842
      %v1951 = vunpack.c.h.b16 %v1842
      %v1952 = vunpack.c.l.b16 %v1843
      %v1953 = vunpack.c.h.b16 %v1843
      %v1954 = vunpack.c.l.b16 %v1844
      %v1955 = vunpack.c.h.b16 %v1844
      %v1956 = vunpack.c.l.b16 %v1845
      %v1957 = vunpack.c.h.b16 %v1845
      %v1958 = vunpack.c.l.b16 %v1846
      %v1959 = vunpack.c.h.b16 %v1846
      %v1960 = vpack.c.b16 %v1936, %v1936
      %v1961 = vpack.c.b16 %v1937, %v1937
      %v1962 = vpack.c.b16 %v1938, %v1938
      %v1963 = vpack.c.b16 %v1939, %v1939
      %v1964 = vpack.c.b16 %v1940, %v1940
      %v1965 = vpack.c.b16 %v1941, %v1941
      %v1966 = vpack.c.b16 %v1942, %v1942
      %v1967 = vpack.c.b16 %v1943, %v1943
      %v1968 = vpack.c.b16 %v1944, %v1944
      %v1969 = vpack.c.b16 %v1945, %v1945
      %v1970 = vpack.c.b16 %v1946, %v1946
      %v1971 = vpack.c.b16 %v1947, %v1947
      %v1972 = vpack.c.b16 %v1948, %v1948
      %v1973 = vpack.c.b16 %v1949, %v1949
      %v1974 = vpack.c.b16 %v1950, %v1950
      %v1975 = vpack.c.b16 %v1951, %v1951
      %v1976 = vpack.c.b16 %v1952, %v1952
      %v1977 = vpack.c.b16 %v1953, %v1953
      %v1978 = vpack.c.b16 %v1954, %v1954
      %v1979 = vpack.c.b16 %v1955, %v1955
      %v1980 = vpack.c.b16 %v1956, %v1956
      %v1981 = vpack.c.b16 %v1957, %v1957
      %v1982 = vpack.c.b16 %v1958, %v1958
      %v1983 = vpack.c.b16 %v1959, %v1959
      %vm1984 = vsmask.f32 4368
      %vm1985 = vmor %vm1848, %vm1984
      %v1987 = vshrl.u32 %v1960, 16
      %v1989 = vrot.slane %v1987, 7
      %v1990 = vshll.u32 %v1960, 16
      %v1992 = vor.u32 %v1989, %v1990
      %v1993 = vrot.slane %v1989, 4
      %v1995 = vshrl.u32 %v1961, 16
      %v1997 = vrot.slane %v1995, 7
      %v1998 = vshll.u32 %v1961, 16
      %v2000 = vor.u32 %v1997, %v1998
      %v2001 = vsel %vm1985, %v1993, %v2000
      %v2002 = vrot.slane %v1997, 4
      %v2004 = vshrl.u32 %v1962, 16
      %v2006 = vrot.slane %v2004, 7
      %v2007 = vshll.u32 %v1962, 16
      %v2009 = vor.u32 %v2006, %v2007
      %v2010 = vrot.slane %v2006, 4
      %v2012 = vshrl.u32 %v1963, 16
      %v2014 = vrot.slane %v2012, 7
      %v2015 = vshll.u32 %v1963, 16
      %v2017 = vor.u32 %v2014, %v2015
      %v2018 = vsel %vm1985, %v2010, %v2017
      %v2019 = vrot.slane %v2014, 4
      %v2021 = vshrl.u32 %v1964, 16
      %v2023 = vrot.slane %v2021, 7
      %v2024 = vshll.u32 %v1964, 16
      %v2026 = vor.u32 %v2023, %v2024
      %v2027 = vrot.slane %v2023, 4
      %v2029 = vshrl.u32 %v1965, 16
      %v2031 = vrot.slane %v2029, 7
      %v2032 = vshll.u32 %v1965, 16
      %v2034 = vor.u32 %v2031, %v2032
      %v2035 = vsel %vm1985, %v2027, %v2034
      %v2036 = vrot.slane %v2031, 4
      %v2038 = vshrl.u32 %v1966, 16
      %v2040 = vrot.slane %v2038, 7
      %v2041 = vshll.u32 %v1966, 16
      %v2043 = vor.u32 %v2040, %v2041
      %v2044 = vrot.slane %v2040, 4
      %v2046 = vshrl.u32 %v1967, 16
      %v2048 = vrot.slane %v2046, 7
      %v2049 = vshll.u32 %v1967, 16
      %v2051 = vor.u32 %v2048, %v2049
      %v2052 = vsel %vm1985, %v2044, %v2051
      %v2053 = vrot.slane %v2048, 4
      %v2055 = vshrl.u32 %v1968, 16
      %v2057 = vrot.slane %v2055, 7
      %v2058 = vshll.u32 %v1968, 16
      %v2060 = vor.u32 %v2057, %v2058
      %v2061 = vrot.slane %v2057, 4
      %v2063 = vshrl.u32 %v1969, 16
      %v2065 = vrot.slane %v2063, 7
      %v2066 = vshll.u32 %v1969, 16
      %v2068 = vor.u32 %v2065, %v2066
      %v2069 = vsel %vm1985, %v2061, %v2068
      %v2070 = vrot.slane %v2065, 4
      %v2072 = vshrl.u32 %v1970, 16
      %v2074 = vrot.slane %v2072, 7
      %v2075 = vshll.u32 %v1970, 16
      %v2077 = vor.u32 %v2074, %v2075
      %v2078 = vrot.slane %v2074, 4
      %v2080 = vshrl.u32 %v1971, 16
      %v2082 = vrot.slane %v2080, 7
      %v2083 = vshll.u32 %v1971, 16
      %v2085 = vor.u32 %v2082, %v2083
      %v2086 = vsel %vm1985, %v2078, %v2085
      %v2087 = vrot.slane %v2082, 4
      %v2089 = vshrl.u32 %v1972, 16
      %v2091 = vrot.slane %v2089, 7
      %v2092 = vshll.u32 %v1972, 16
      %v2094 = vor.u32 %v2091, %v2092
      %v2095 = vrot.slane %v2091, 4
      %v2097 = vshrl.u32 %v1973, 16
      %v2099 = vrot.slane %v2097, 7
      %v2100 = vshll.u32 %v1973, 16
      %v2102 = vor.u32 %v2099, %v2100
      %v2103 = vsel %vm1985, %v2095, %v2102
      %v2104 = vrot.slane %v2099, 4
      %v2106 = vshrl.u32 %v1974, 16
      %v2108 = vrot.slane %v2106, 7
      %v2109 = vshll.u32 %v1974, 16
      %v2111 = vor.u32 %v2108, %v2109
      %v2112 = vrot.slane %v2108, 4
      %v2114 = vshrl.u32 %v1975, 16
      %v2116 = vrot.slane %v2114, 7
      %v2117 = vshll.u32 %v1975, 16
      %v2119 = vor.u32 %v2116, %v2117
      %v2120 = vsel %vm1985, %v2112, %v2119
      %v2121 = vrot.slane %v2116, 4
      %v2123 = vshrl.u32 %v1976, 16
      %v2125 = vrot.slane %v2123, 7
      %v2126 = vshll.u32 %v1976, 16
      %v2128 = vor.u32 %v2125, %v2126
      %v2129 = vrot.slane %v2125, 4
      %v2131 = vshrl.u32 %v1977, 16
      %v2133 = vrot.slane %v2131, 7
      %v2134 = vshll.u32 %v1977, 16
      %v2136 = vor.u32 %v2133, %v2134
      %v2137 = vsel %vm1985, %v2129, %v2136
      %v2138 = vrot.slane %v2133, 4
      %v2140 = vshrl.u32 %v1978, 16
      %v2142 = vrot.slane %v2140, 7
      %v2143 = vshll.u32 %v1978, 16
      %v2145 = vor.u32 %v2142, %v2143
      %v2146 = vrot.slane %v2142, 4
      %v2148 = vshrl.u32 %v1979, 16
      %v2150 = vrot.slane %v2148, 7
      %v2151 = vshll.u32 %v1979, 16
      %v2153 = vor.u32 %v2150, %v2151
      %v2154 = vsel %vm1985, %v2146, %v2153
      %v2155 = vrot.slane %v2150, 4
      %v2157 = vshrl.u32 %v1980, 16
      %v2159 = vrot.slane %v2157, 7
      %v2160 = vshll.u32 %v1980, 16
      %v2162 = vor.u32 %v2159, %v2160
      %v2163 = vrot.slane %v2159, 4
      %v2165 = vshrl.u32 %v1981, 16
      %v2167 = vrot.slane %v2165, 7
      %v2168 = vshll.u32 %v1981, 16
      %v2170 = vor.u32 %v2167, %v2168
      %v2171 = vsel %vm1985, %v2163, %v2170
      %v2172 = vrot.slane %v2167, 4
      %v2174 = vshrl.u32 %v1982, 16
      %v2176 = vrot.slane %v2174, 7
      %v2177 = vshll.u32 %v1982, 16
      %v2179 = vor.u32 %v2176, %v2177
      %v2180 = vrot.slane %v2176, 4
      %v2182 = vshrl.u32 %v1983, 16
      %v2184 = vrot.slane %v2182, 7
      %v2185 = vshll.u32 %v1983, 16
      %v2187 = vor.u32 %v2184, %v2185
      %v2188 = vsel %vm1985, %v2180, %v2187
      %v2189 = vrot.slane %v2184, 4
      %vm2226 = vcmask 125952
      %vm2227 = vmand %vm2226, %vm1886
      %v2228 = vld [vmem:[#allocation2] sm:$0xf]
      %v2229 = vsel %vm2227, %v1992, %v2228
      %2230 = vst [vmem:[#allocation2] sm:$0xf] %v2229
      %vm2231 = vcmask 125952
      %2232 = vst.msk [vmem:[#allocation2 + $0x4] sm:$0xf] %vm2231, %v2001
      %v2233 = vld [vmem:[#allocation2 + $0x8] sm:$0x1]
      %v2234 = vsel %vm1849, %v2002, %v2233
      %2235 = vst [vmem:[#allocation2 + $0x8] sm:$0x1] %v2234
      %v2236 = vld [vmem:[#allocation2 + $0xc] sm:$0xf]
      %v2237 = vsel %vm2227, %v2009, %v2236
      %2238 = vst [vmem:[#allocation2 + $0xc] sm:$0xf] %v2237
      %2239 = vst.msk [vmem:[#allocation2 + $0x10] sm:$0xf] %vm2231, %v2018
      %v2240 = vld [vmem:[#allocation2 + $0x14] sm:$0x1]
      %v2241 = vsel %vm1849, %v2019, %v2240
      %2242 = vst [vmem:[#allocation2 + $0x14] sm:$0x1] %v2241
      %v2243 = vld [vmem:[#allocation2 + $0x18] sm:$0xf]
      %v2244 = vsel %vm2227, %v2026, %v2243
      %2245 = vst [vmem:[#allocation2 + $0x18] sm:$0xf] %v2244
      %2246 = vst.msk [vmem:[#allocation2 + $0x1c] sm:$0xf] %vm2231, %v2035
      %v2247 = vld [vmem:[#allocation2 + $0x20] sm:$0x1]
      %v2248 = vsel %vm1849, %v2036, %v2247
      %2249 = vst [vmem:[#allocation2 + $0x20] sm:$0x1] %v2248
      %v2250 = vld [vmem:[#allocation2 + $0x24] sm:$0xf]
      %v2251 = vsel %vm2227, %v2043, %v2250
      %2252 = vst [vmem:[#allocation2 + $0x24] sm:$0xf] %v2251
      %2253 = vst.msk [vmem:[#allocation2 + $0x28] sm:$0xf] %vm2231, %v2052
      %v2254 = vld [vmem:[#allocation2 + $0x2c] sm:$0x1]
      %v2255 = vsel %vm1849, %v2053, %v2254
      %2256 = vst [vmem:[#allocation2 + $0x2c] sm:$0x1] %v2255
      %v2257 = vld [vmem:[#allocation2 + $0x30] sm:$0xf]
      %v2258 = vsel %vm2227, %v2060, %v2257
      %2259 = vst [vmem:[#allocation2 + $0x30] sm:$0xf] %v2258
      %2260 = vst.msk [vmem:[#allocation2 + $0x34] sm:$0xf] %vm2231, %v2069
      %v2261 = vld [vmem:[#allocation2 + $0x38] sm:$0x1]
      %v2262 = vsel %vm1849, %v2070, %v2261
      %2263 = vst [vmem:[#allocation2 + $0x38] sm:$0x1] %v2262
      %v2264 = vld [vmem:[#allocation2 + $0x3c] sm:$0xf]
      %v2265 = vsel %vm2227, %v2077, %v2264
      %2266 = vst [vmem:[#allocation2 + $0x3c] sm:$0xf] %v2265
      %2267 = vst.msk [vmem:[#allocation2 + $0x40] sm:$0xf] %vm2231, %v2086
      %v2268 = vld [vmem:[#allocation2 + $0x44] sm:$0x1]
      %v2269 = vsel %vm1849, %v2087, %v2268
      %2270 = vst [vmem:[#allocation2 + $0x44] sm:$0x1] %v2269
      %v2271 = vld [vmem:[#allocation2 + $0x48] sm:$0xf]
      %v2272 = vsel %vm2227, %v2094, %v2271
      %2273 = vst [vmem:[#allocation2 + $0x48] sm:$0xf] %v2272
      %2274 = vst.msk [vmem:[#allocation2 + $0x4c] sm:$0xf] %vm2231, %v2103
      %v2275 = vld [vmem:[#allocation2 + $0x50] sm:$0x1]
      %v2276 = vsel %vm1849, %v2104, %v2275
      %2277 = vst [vmem:[#allocation2 + $0x50] sm:$0x1] %v2276
      %v2278 = vld [vmem:[#allocation2 + $0x54] sm:$0xf]
      %v2279 = vsel %vm2227, %v2111, %v2278
      %2280 = vst [vmem:[#allocation2 + $0x54] sm:$0xf] %v2279
      %2281 = vst.msk [vmem:[#allocation2 + $0x58] sm:$0xf] %vm2231, %v2120
      %v2282 = vld [vmem:[#allocation2 + $0x5c] sm:$0x1]
      %v2283 = vsel %vm1849, %v2121, %v2282
      %2284 = vst [vmem:[#allocation2 + $0x5c] sm:$0x1] %v2283
      %v2285 = vld [vmem:[#allocation2 + $0x60] sm:$0xf]
      %v2286 = vsel %vm2227, %v2128, %v2285
      %2287 = vst [vmem:[#allocation2 + $0x60] sm:$0xf] %v2286
      %2288 = vst.msk [vmem:[#allocation2 + $0x64] sm:$0xf] %vm2231, %v2137
      %v2289 = vld [vmem:[#allocation2 + $0x68] sm:$0x1]
      %v2290 = vsel %vm1849, %v2138, %v2289
      %2291 = vst [vmem:[#allocation2 + $0x68] sm:$0x1] %v2290
      %v2292 = vld [vmem:[#allocation2 + $0x6c] sm:$0xf]
      %v2293 = vsel %vm2227, %v2145, %v2292
      %2294 = vst [vmem:[#allocation2 + $0x6c] sm:$0xf] %v2293
      %2295 = vst.msk [vmem:[#allocation2 + $0x70] sm:$0xf] %vm2231, %v2154
      %v2296 = vld [vmem:[#allocation2 + $0x74] sm:$0x1]
      %v2297 = vsel %vm1849, %v2155, %v2296
      %2298 = vst [vmem:[#allocation2 + $0x74] sm:$0x1] %v2297
      %v2299 = vld [vmem:[#allocation2 + $0x78] sm:$0xf]
      %v2300 = vsel %vm2227, %v2162, %v2299
      %2301 = vst [vmem:[#allocation2 + $0x78] sm:$0xf] %v2300
      %2302 = vst.msk [vmem:[#allocation2 + $0x7c] sm:$0xf] %vm2231, %v2171
      %v2303 = vld [vmem:[#allocation2 + $0x80] sm:$0x1]
      %v2304 = vsel %vm1849, %v2172, %v2303
      %2305 = vst [vmem:[#allocation2 + $0x80] sm:$0x1] %v2304
      %v2306 = vld [vmem:[#allocation2 + $0x84] sm:$0xf]
      %v2307 = vsel %vm2227, %v2179, %v2306
      %2308 = vst [vmem:[#allocation2 + $0x84] sm:$0xf] %v2307
      %2309 = vst.msk [vmem:[#allocation2 + $0x88] sm:$0xf] %vm2231, %v2188
      %v2310 = vld [vmem:[#allocation2 + $0x8c] sm:$0x1]
      %v2311 = vsel %vm1849, %v2189, %v2310
      %2312 = vst [vmem:[#allocation2 + $0x8c] sm:$0x1] %v2311
      %v2313 = vld [vmem:[#allocation2] sm:$0xf]
      %v2314 = vld [vmem:[#allocation2 + $0x4] sm:$0xf]
      %v2315 = vld [vmem:[#allocation2 + $0x8] sm:$0x1]
      %v2316 = vld [vmem:[#allocation2 + $0xc] sm:$0xf]
      %v2317 = vld [vmem:[#allocation2 + $0x10] sm:$0xf]
      %v2318 = vld [vmem:[#allocation2 + $0x14] sm:$0x1]
      %v2319 = vld [vmem:[#allocation2 + $0x18] sm:$0xf]
      %v2320 = vld [vmem:[#allocation2 + $0x1c] sm:$0xf]
      %v2321 = vld [vmem:[#allocation2 + $0x20] sm:$0x1]
      %v2322 = vld [vmem:[#allocation2 + $0x24] sm:$0xf]
      %v2323 = vld [vmem:[#allocation2 + $0x28] sm:$0xf]
      %v2324 = vld [vmem:[#allocation2 + $0x2c] sm:$0x1]
      %v2325 = vld [vmem:[#allocation2 + $0x30] sm:$0xf]
      %v2326 = vld [vmem:[#allocation2 + $0x34] sm:$0xf]
      %v2327 = vld [vmem:[#allocation2 + $0x38] sm:$0x1]
      %v2328 = vld [vmem:[#allocation2 + $0x3c] sm:$0xf]
      %v2329 = vld [vmem:[#allocation2 + $0x40] sm:$0xf]
      %v2330 = vld [vmem:[#allocation2 + $0x44] sm:$0x1]
      %v2331 = vld [vmem:[#allocation2 + $0x48] sm:$0xf]
      %v2332 = vld [vmem:[#allocation2 + $0x4c] sm:$0xf]
      %v2333 = vld [vmem:[#allocation2 + $0x50] sm:$0x1]
      %v2334 = vld [vmem:[#allocation2 + $0x54] sm:$0xf]
      %v2335 = vld [vmem:[#allocation2 + $0x58] sm:$0xf]
      %v2336 = vld [vmem:[#allocation2 + $0x5c] sm:$0x1]
      %v2337 = vld [vmem:[#allocation2 + $0x60] sm:$0xf]
      %v2338 = vld [vmem:[#allocation2 + $0x64] sm:$0xf]
      %v2339 = vld [vmem:[#allocation2 + $0x68] sm:$0x1]
      %v2340 = vld [vmem:[#allocation2 + $0x6c] sm:$0xf]
      %v2341 = vld [vmem:[#allocation2 + $0x70] sm:$0xf]
      %v2342 = vld [vmem:[#allocation2 + $0x74] sm:$0x1]
      %v2343 = vld [vmem:[#allocation2 + $0x78] sm:$0xf]
      %v2344 = vld [vmem:[#allocation2 + $0x7c] sm:$0xf]
      %v2345 = vld [vmem:[#allocation2 + $0x80] sm:$0x1]
      %v2346 = vld [vmem:[#allocation2 + $0x84] sm:$0xf]
      %v2347 = vld [vmem:[#allocation2 + $0x88] sm:$0xf]
      %v2348 = vld [vmem:[#allocation2 + $0x8c] sm:$0x1]
      %v2369 = vunpack.c.l.b16 %v2313
      %v2370 = vunpack.c.l.b16 %v2314
      %v2371 = vunpack.c.l.b16 %v2316
      %v2372 = vunpack.c.l.b16 %v2317
      %v2373 = vunpack.c.l.b16 %v2319
      %v2374 = vunpack.c.l.b16 %v2320
      %v2375 = vunpack.c.l.b16 %v2322
      %v2376 = vunpack.c.l.b16 %v2323
      %v2377 = vunpack.c.l.b16 %v2325
      %v2378 = vunpack.c.l.b16 %v2326
      %v2379 = vunpack.c.l.b16 %v2328
      %v2380 = vunpack.c.l.b16 %v2329
      %v2381 = vunpack.c.l.b16 %v2331
      %v2382 = vunpack.c.l.b16 %v2332
      %v2383 = vunpack.c.l.b16 %v2334
      %v2384 = vunpack.c.l.b16 %v2335
      %v2385 = vunpack.c.l.b16 %v2337
      %v2386 = vunpack.c.l.b16 %v2338
      %v2387 = vunpack.c.l.b16 %v2340
      %v2388 = vunpack.c.l.b16 %v2341
      %v2389 = vpack.c.b16 %v2370, %v2369
      %v2390 = vpack.c.b16 %v2372, %v2371
      %v2391 = vpack.c.b16 %v2374, %v2373
      %v2392 = vpack.c.b16 %v2376, %v2375
      %v2393 = vpack.c.b16 %v2378, %v2377
      %v2394 = vpack.c.b16 %v2380, %v2379
      %v2395 = vpack.c.b16 %v2382, %v2381
      %v2396 = vpack.c.b16 %v2384, %v2383
      %v2397 = vpack.c.b16 %v2386, %v2385
      %v2398 = vpack.c.b16 %v2388, %v2387
      %2409 = vst.msk [vmem:[#allocation4] sm:$0xff] %vm538, %v2389
      %2410 = vst.msk [vmem:[#allocation4 + $0x10] sm:$0xff] %vm538, %v2390
      %2411 = vst.msk [vmem:[#allocation4 + $0x20] sm:$0xff] %vm538, %v2391
      %2412 = vst.msk [vmem:[#allocation4 + $0x30] sm:$0xff] %vm538, %v2392
      %2413 = vst.msk [vmem:[#allocation4 + $0x40] sm:$0xff] %vm538, %v2393
      %2414 = vst.msk [vmem:[#allocation4 + $0x50] sm:$0xff] %vm538, %v2394
      %2415 = vst.msk [vmem:[#allocation4 + $0x60] sm:$0xff] %vm538, %v2395
      %2416 = vst.msk [vmem:[#allocation4 + $0x70] sm:$0xff] %vm538, %v2396
      %2417 = vst.msk [vmem:[#allocation4 + $0x80] sm:$0xff] %vm538, %v2397
      %2418 = vst.msk [vmem:[#allocation4 + $0x90] sm:$0xff] %vm538, %v2398
      %v2420 = vshrl.u32 %v2313, 16
      %v2422 = vrot.slane %v2420, 4
      %v2423 = vshll.u32 %v2313, 16
      %v2425 = vrot.slane %v2423, 5
      %v2426 = vor.u32 %v2422, %v2425
      %v2427 = vrot.slane %v2426, 4
      %v2429 = vshll.u32 %v2314, 16
      %v2431 = vrot.slane %v2429, 5
      %v2432 = vsel %vm553, %v2427, %v2431
      %v2433 = vshrl.u32 %v2314, 16
      %v2435 = vrot.slane %v2433, 4
      %v2436 = vor.u32 %v2435, %v2431
      %v2437 = vrot.slane %v2436, 4
      %v2439 = vshll.u32 %v2315, 16
      %v2441 = vrot.slane %v2439, 5
      %v2442 = vsel %vm553, %v2437, %v2441
      %v2444 = vshrl.u32 %v2316, 16
      %v2446 = vrot.slane %v2444, 4
      %v2447 = vshll.u32 %v2316, 16
      %v2449 = vrot.slane %v2447, 5
      %v2450 = vor.u32 %v2446, %v2449
      %v2451 = vrot.slane %v2450, 4
      %v2453 = vshll.u32 %v2317, 16
      %v2455 = vrot.slane %v2453, 5
      %v2456 = vsel %vm553, %v2451, %v2455
      %v2457 = vshrl.u32 %v2317, 16
      %v2459 = vrot.slane %v2457, 4
      %v2460 = vor.u32 %v2459, %v2455
      %v2461 = vrot.slane %v2460, 4
      %v2463 = vshll.u32 %v2318, 16
      %v2465 = vrot.slane %v2463, 5
      %v2466 = vsel %vm553, %v2461, %v2465
      %v2468 = vshrl.u32 %v2319, 16
      %v2470 = vrot.slane %v2468, 4
      %v2471 = vshll.u32 %v2319, 16
      %v2473 = vrot.slane %v2471, 5
      %v2474 = vor.u32 %v2470, %v2473
      %v2475 = vrot.slane %v2474, 4
      %v2477 = vshll.u32 %v2320, 16
      %v2479 = vrot.slane %v2477, 5
      %v2480 = vsel %vm553, %v2475, %v2479
      %v2481 = vshrl.u32 %v2320, 16
      %v2483 = vrot.slane %v2481, 4
      %v2484 = vor.u32 %v2483, %v2479
      %v2485 = vrot.slane %v2484, 4
      %v2487 = vshll.u32 %v2321, 16
      %v2489 = vrot.slane %v2487, 5
      %v2490 = vsel %vm553, %v2485, %v2489
      %v2492 = vshrl.u32 %v2322, 16
      %v2494 = vrot.slane %v2492, 4
      %v2495 = vshll.u32 %v2322, 16
      %v2497 = vrot.slane %v2495, 5
      %v2498 = vor.u32 %v2494, %v2497
      %v2499 = vrot.slane %v2498, 4
      %v2501 = vshll.u32 %v2323, 16
      %v2503 = vrot.slane %v2501, 5
      %v2504 = vsel %vm553, %v2499, %v2503
      %v2505 = vshrl.u32 %v2323, 16
      %v2507 = vrot.slane %v2505, 4
      %v2508 = vor.u32 %v2507, %v2503
      %v2509 = vrot.slane %v2508, 4
      %v2511 = vshll.u32 %v2324, 16
      %v2513 = vrot.slane %v2511, 5
      %v2514 = vsel %vm553, %v2509, %v2513
      %v2516 = vshrl.u32 %v2325, 16
      %v2518 = vrot.slane %v2516, 4
      %v2519 = vshll.u32 %v2325, 16
      %v2521 = vrot.slane %v2519, 5
      %v2522 = vor.u32 %v2518, %v2521
      %v2523 = vrot.slane %v2522, 4
      %v2525 = vshll.u32 %v2326, 16
      %v2527 = vrot.slane %v2525, 5
      %v2528 = vsel %vm553, %v2523, %v2527
      %v2529 = vshrl.u32 %v2326, 16
      %v2531 = vrot.slane %v2529, 4
      %v2532 = vor.u32 %v2531, %v2527
      %v2533 = vrot.slane %v2532, 4
      %v2535 = vshll.u32 %v2327, 16
      %v2537 = vrot.slane %v2535, 5
      %v2538 = vsel %vm553, %v2533, %v2537
      %v2540 = vshrl.u32 %v2328, 16
      %v2542 = vrot.slane %v2540, 4
      %v2543 = vshll.u32 %v2328, 16
      %v2545 = vrot.slane %v2543, 5
      %v2546 = vor.u32 %v2542, %v2545
      %v2547 = vrot.slane %v2546, 4
      %v2549 = vshll.u32 %v2329, 16
      %v2551 = vrot.slane %v2549, 5
      %v2552 = vsel %vm553, %v2547, %v2551
      %v2553 = vshrl.u32 %v2329, 16
      %v2555 = vrot.slane %v2553, 4
      %v2556 = vor.u32 %v2555, %v2551
      %v2557 = vrot.slane %v2556, 4
      %v2559 = vshll.u32 %v2330, 16
      %v2561 = vrot.slane %v2559, 5
      %v2562 = vsel %vm553, %v2557, %v2561
      %v2564 = vshrl.u32 %v2331, 16
      %v2566 = vrot.slane %v2564, 4
      %v2567 = vshll.u32 %v2331, 16
      %v2569 = vrot.slane %v2567, 5
      %v2570 = vor.u32 %v2566, %v2569
      %v2571 = vrot.slane %v2570, 4
      %v2573 = vshll.u32 %v2332, 16
      %v2575 = vrot.slane %v2573, 5
      %v2576 = vsel %vm553, %v2571, %v2575
      %v2577 = vshrl.u32 %v2332, 16
      %v2579 = vrot.slane %v2577, 4
      %v2580 = vor.u32 %v2579, %v2575
      %v2581 = vrot.slane %v2580, 4
      %v2583 = vshll.u32 %v2333, 16
      %v2585 = vrot.slane %v2583, 5
      %v2586 = vsel %vm553, %v2581, %v2585
      %v2588 = vshrl.u32 %v2334, 16
      %v2590 = vrot.slane %v2588, 4
      %v2591 = vshll.u32 %v2334, 16
      %v2593 = vrot.slane %v2591, 5
      %v2594 = vor.u32 %v2590, %v2593
      %v2595 = vrot.slane %v2594, 4
      %v2597 = vshll.u32 %v2335, 16
      %v2599 = vrot.slane %v2597, 5
      %v2600 = vsel %vm553, %v2595, %v2599
      %v2601 = vshrl.u32 %v2335, 16
      %v2603 = vrot.slane %v2601, 4
      %v2604 = vor.u32 %v2603, %v2599
      %v2605 = vrot.slane %v2604, 4
      %v2607 = vshll.u32 %v2336, 16
      %v2609 = vrot.slane %v2607, 5
      %v2610 = vsel %vm553, %v2605, %v2609
      %v2612 = vshrl.u32 %v2337, 16
      %v2614 = vrot.slane %v2612, 4
      %v2615 = vshll.u32 %v2337, 16
      %v2617 = vrot.slane %v2615, 5
      %v2618 = vor.u32 %v2614, %v2617
      %v2619 = vrot.slane %v2618, 4
      %v2621 = vshll.u32 %v2338, 16
      %v2623 = vrot.slane %v2621, 5
      %v2624 = vsel %vm553, %v2619, %v2623
      %v2625 = vshrl.u32 %v2338, 16
      %v2627 = vrot.slane %v2625, 4
      %v2628 = vor.u32 %v2627, %v2623
      %v2629 = vrot.slane %v2628, 4
      %v2631 = vshll.u32 %v2339, 16
      %v2633 = vrot.slane %v2631, 5
      %v2634 = vsel %vm553, %v2629, %v2633
      %v2636 = vshrl.u32 %v2340, 16
      %v2638 = vrot.slane %v2636, 4
      %v2639 = vshll.u32 %v2340, 16
      %v2641 = vrot.slane %v2639, 5
      %v2642 = vor.u32 %v2638, %v2641
      %v2643 = vrot.slane %v2642, 4
      %v2645 = vshll.u32 %v2341, 16
      %v2647 = vrot.slane %v2645, 5
      %v2648 = vsel %vm553, %v2643, %v2647
      %v2649 = vshrl.u32 %v2341, 16
      %v2651 = vrot.slane %v2649, 4
      %v2652 = vor.u32 %v2651, %v2647
      %v2653 = vrot.slane %v2652, 4
      %v2655 = vshll.u32 %v2342, 16
      %v2657 = vrot.slane %v2655, 5
      %v2658 = vsel %vm553, %v2653, %v2657
      %v2659 = vunpack.c.l.b16 %v2432
      %v2660 = vunpack.c.l.b16 %v2442
      %v2661 = vunpack.c.l.b16 %v2456
      %v2662 = vunpack.c.l.b16 %v2466
      %v2663 = vunpack.c.l.b16 %v2480
      %v2664 = vunpack.c.l.b16 %v2490
      %v2665 = vunpack.c.l.b16 %v2504
      %v2666 = vunpack.c.l.b16 %v2514
      %v2667 = vunpack.c.l.b16 %v2528
      %v2668 = vunpack.c.l.b16 %v2538
      %v2669 = vunpack.c.l.b16 %v2552
      %v2670 = vunpack.c.l.b16 %v2562
      %v2671 = vunpack.c.l.b16 %v2576
      %v2672 = vunpack.c.l.b16 %v2586
      %v2673 = vunpack.c.l.b16 %v2600
      %v2674 = vunpack.c.l.b16 %v2610
      %v2675 = vunpack.c.l.b16 %v2624
      %v2676 = vunpack.c.l.b16 %v2634
      %v2677 = vunpack.c.l.b16 %v2648
      %v2678 = vunpack.c.l.b16 %v2658
      %v2679 = vpack.c.b16 %v2660, %v2659
      %v2680 = vpack.c.b16 %v2662, %v2661
      %v2681 = vpack.c.b16 %v2664, %v2663
      %v2682 = vpack.c.b16 %v2666, %v2665
      %v2683 = vpack.c.b16 %v2668, %v2667
      %v2684 = vpack.c.b16 %v2670, %v2669
      %v2685 = vpack.c.b16 %v2672, %v2671
      %v2686 = vpack.c.b16 %v2674, %v2673
      %v2687 = vpack.c.b16 %v2676, %v2675
      %v2688 = vpack.c.b16 %v2678, %v2677
      %2689 = vrot.lane.b32.xlu0 %v2679, 16
      %v2690 = vpop.permute.xlu0 %2689
      %2691 = vrot.lane.b32.xlu0 %v2680, 16
      %v2692 = vpop.permute.xlu0 %2691
      %2693 = vrot.lane.b32.xlu0 %v2681, 16
      %v2694 = vpop.permute.xlu0 %2693
      %2695 = vrot.lane.b32.xlu0 %v2682, 16
      %v2696 = vpop.permute.xlu0 %2695
      %2697 = vrot.lane.b32.xlu0 %v2683, 16
      %v2698 = vpop.permute.xlu0 %2697
      %2699 = vrot.lane.b32.xlu0 %v2684, 16
      %v2700 = vpop.permute.xlu0 %2699
      %2701 = vrot.lane.b32.xlu0 %v2685, 16
      %v2702 = vpop.permute.xlu0 %2701
      %2703 = vrot.lane.b32.xlu0 %v2686, 16
      %v2704 = vpop.permute.xlu0 %2703
      %2705 = vrot.lane.b32.xlu0 %v2687, 16
      %v2706 = vpop.permute.xlu0 %2705
      %2707 = vrot.lane.b32.xlu0 %v2688, 16
      %v2708 = vpop.permute.xlu0 %2707
      %2719 = vst.msk [vmem:[#allocation4] sm:$0xff] %vm914, %v2690
      %2720 = vst.msk [vmem:[#allocation4 + $0x10] sm:$0xff] %vm914, %v2692
      %2721 = vst.msk [vmem:[#allocation4 + $0x20] sm:$0xff] %vm914, %v2694
      %2722 = vst.msk [vmem:[#allocation4 + $0x30] sm:$0xff] %vm914, %v2696
      %2723 = vst.msk [vmem:[#allocation4 + $0x40] sm:$0xff] %vm914, %v2698
      %2724 = vst.msk [vmem:[#allocation4 + $0x50] sm:$0xff] %vm914, %v2700
      %2725 = vst.msk [vmem:[#allocation4 + $0x60] sm:$0xff] %vm914, %v2702
      %2726 = vst.msk [vmem:[#allocation4 + $0x70] sm:$0xff] %vm914, %v2704
      %2727 = vst.msk [vmem:[#allocation4 + $0x80] sm:$0xff] %vm914, %v2706
      %2728 = vst.msk [vmem:[#allocation4 + $0x90] sm:$0xff] %vm914, %v2708
      %v2739 = vrot.slane %v2313, 5
      %v2740 = vrot.slane %v2739, 4
      %v2741 = vrot.slane %v2314, 5
      %v2742 = vsel %vm941, %v2740, %v2741
      %v2743 = vrot.slane %v2741, 4
      %v2744 = vrot.slane %v2315, 5
      %v2745 = vsel %vm941, %v2743, %v2744
      %v2746 = vrot.slane %v2316, 5
      %v2747 = vrot.slane %v2746, 4
      %v2748 = vrot.slane %v2317, 5
      %v2749 = vsel %vm941, %v2747, %v2748
      %v2750 = vrot.slane %v2748, 4
      %v2751 = vrot.slane %v2318, 5
      %v2752 = vsel %vm941, %v2750, %v2751
      %v2753 = vrot.slane %v2319, 5
      %v2754 = vrot.slane %v2753, 4
      %v2755 = vrot.slane %v2320, 5
      %v2756 = vsel %vm941, %v2754, %v2755
      %v2757 = vrot.slane %v2755, 4
      %v2758 = vrot.slane %v2321, 5
      %v2759 = vsel %vm941, %v2757, %v2758
      %v2760 = vrot.slane %v2322, 5
      %v2761 = vrot.slane %v2760, 4
      %v2762 = vrot.slane %v2323, 5
      %v2763 = vsel %vm941, %v2761, %v2762
      %v2764 = vrot.slane %v2762, 4
      %v2765 = vrot.slane %v2324, 5
      %v2766 = vsel %vm941, %v2764, %v2765
      %v2767 = vrot.slane %v2325, 5
      %v2768 = vrot.slane %v2767, 4
      %v2769 = vrot.slane %v2326, 5
      %v2770 = vsel %vm941, %v2768, %v2769
      %v2771 = vrot.slane %v2769, 4
      %v2772 = vrot.slane %v2327, 5
      %v2773 = vsel %vm941, %v2771, %v2772
      %v2774 = vrot.slane %v2328, 5
      %v2775 = vrot.slane %v2774, 4
      %v2776 = vrot.slane %v2329, 5
      %v2777 = vsel %vm941, %v2775, %v2776
      %v2778 = vrot.slane %v2776, 4
      %v2779 = vrot.slane %v2330, 5
      %v2780 = vsel %vm941, %v2778, %v2779
      %v2781 = vrot.slane %v2331, 5
      %v2782 = vrot.slane %v2781, 4
      %v2783 = vrot.slane %v2332, 5
      %v2784 = vsel %vm941, %v2782, %v2783
      %v2785 = vrot.slane %v2783, 4
      %v2786 = vrot.slane %v2333, 5
      %v2787 = vsel %vm941, %v2785, %v2786
      %v2788 = vrot.slane %v2334, 5
      %v2789 = vrot.slane %v2788, 4
      %v2790 = vrot.slane %v2335, 5
      %v2791 = vsel %vm941, %v2789, %v2790
      %v2792 = vrot.slane %v2790, 4
      %v2793 = vrot.slane %v2336, 5
      %v2794 = vsel %vm941, %v2792, %v2793
      %v2795 = vrot.slane %v2337, 5
      %v2796 = vrot.slane %v2795, 4
      %v2797 = vrot.slane %v2338, 5
      %v2798 = vsel %vm941, %v2796, %v2797
      %v2799 = vrot.slane %v2797, 4
      %v2800 = vrot.slane %v2339, 5
      %v2801 = vsel %vm941, %v2799, %v2800
      %v2802 = vrot.slane %v2340, 5
      %v2803 = vrot.slane %v2802, 4
      %v2804 = vrot.slane %v2341, 5
      %v2805 = vsel %vm941, %v2803, %v2804
      %v2806 = vrot.slane %v2804, 4
      %v2807 = vrot.slane %v2342, 5
      %v2808 = vsel %vm941, %v2806, %v2807
      %v2809 = vunpack.c.l.b16 %v2742
      %v2810 = vunpack.c.l.b16 %v2745
      %v2811 = vunpack.c.l.b16 %v2749
      %v2812 = vunpack.c.l.b16 %v2752
      %v2813 = vunpack.c.l.b16 %v2756
      %v2814 = vunpack.c.l.b16 %v2759
      %v2815 = vunpack.c.l.b16 %v2763
      %v2816 = vunpack.c.l.b16 %v2766
      %v2817 = vunpack.c.l.b16 %v2770
      %v2818 = vunpack.c.l.b16 %v2773
      %v2819 = vunpack.c.l.b16 %v2777
      %v2820 = vunpack.c.l.b16 %v2780
      %v2821 = vunpack.c.l.b16 %v2784
      %v2822 = vunpack.c.l.b16 %v2787
      %v2823 = vunpack.c.l.b16 %v2791
      %v2824 = vunpack.c.l.b16 %v2794
      %v2825 = vunpack.c.l.b16 %v2798
      %v2826 = vunpack.c.l.b16 %v2801
      %v2827 = vunpack.c.l.b16 %v2805
      %v2828 = vunpack.c.l.b16 %v2808
      %v2829 = vpack.c.b16 %v2810, %v2809
      %v2830 = vpack.c.b16 %v2812, %v2811
      %v2831 = vpack.c.b16 %v2814, %v2813
      %v2832 = vpack.c.b16 %v2816, %v2815
      %v2833 = vpack.c.b16 %v2818, %v2817
      %v2834 = vpack.c.b16 %v2820, %v2819
      %v2835 = vpack.c.b16 %v2822, %v2821
      %v2836 = vpack.c.b16 %v2824, %v2823
      %v2837 = vpack.c.b16 %v2826, %v2825
      %v2838 = vpack.c.b16 %v2828, %v2827
      %2839 = vrot.lane.b32.xlu0 %v2829, 32
      %v2840 = vpop.permute.xlu0 %2839
      %2841 = vrot.lane.b32.xlu0 %v2830, 32
      %v2842 = vpop.permute.xlu0 %2841
      %2843 = vrot.lane.b32.xlu0 %v2831, 32
      %v2844 = vpop.permute.xlu0 %2843
      %2845 = vrot.lane.b32.xlu0 %v2832, 32
      %v2846 = vpop.permute.xlu0 %2845
      %2847 = vrot.lane.b32.xlu0 %v2833, 32
      %v2848 = vpop.permute.xlu0 %2847
      %2849 = vrot.lane.b32.xlu0 %v2834, 32
      %v2850 = vpop.permute.xlu0 %2849
      %2851 = vrot.lane.b32.xlu0 %v2835, 32
      %v2852 = vpop.permute.xlu0 %2851
      %2853 = vrot.lane.b32.xlu0 %v2836, 32
      %v2854 = vpop.permute.xlu0 %2853
      %2855 = vrot.lane.b32.xlu0 %v2837, 32
      %v2856 = vpop.permute.xlu0 %2855
      %2857 = vrot.lane.b32.xlu0 %v2838, 32
      %v2858 = vpop.permute.xlu0 %2857
      %2869 = vst.msk [vmem:[#allocation4] sm:$0xff] %vm1098, %v2840
      %2870 = vst.msk [vmem:[#allocation4 + $0x10] sm:$0xff] %vm1098, %v2842
      %2871 = vst.msk [vmem:[#allocation4 + $0x20] sm:$0xff] %vm1098, %v2844
      %2872 = vst.msk [vmem:[#allocation4 + $0x30] sm:$0xff] %vm1098, %v2846
      %2873 = vst.msk [vmem:[#allocation4 + $0x40] sm:$0xff] %vm1098, %v2848
      %2874 = vst.msk [vmem:[#allocation4 + $0x50] sm:$0xff] %vm1098, %v2850
      %2875 = vst.msk [vmem:[#allocation4 + $0x60] sm:$0xff] %vm1098, %v2852
      %2876 = vst.msk [vmem:[#allocation4 + $0x70] sm:$0xff] %vm1098, %v2854
      %2877 = vst.msk [vmem:[#allocation4 + $0x80] sm:$0xff] %vm1098, %v2856
      %2878 = vst.msk [vmem:[#allocation4 + $0x90] sm:$0xff] %vm1098, %v2858
      %v2881 = vunpack.c.l.b16 %v2343
      %v2882 = vunpack.c.l.b16 %v2344
      %v2883 = vpack.c.b16 %v2882, %v2881
      %2884 = vrot.lane.b32.xlu0 %v2390, 48
      %v2885 = vpop.permute.xlu0 %2884
      %2886 = vrot.lane.b32.xlu0 %v2391, 48
      %v2887 = vpop.permute.xlu0 %2886
      %2888 = vrot.lane.b32.xlu0 %v2392, 48
      %v2889 = vpop.permute.xlu0 %2888
      %2890 = vrot.lane.b32.xlu0 %v2393, 48
      %v2891 = vpop.permute.xlu0 %2890
      %2892 = vrot.lane.b32.xlu0 %v2394, 48
      %v2893 = vpop.permute.xlu0 %2892
      %2894 = vrot.lane.b32.xlu0 %v2395, 48
      %v2895 = vpop.permute.xlu0 %2894
      %2896 = vrot.lane.b32.xlu0 %v2396, 48
      %v2897 = vpop.permute.xlu0 %2896
      %2898 = vrot.lane.b32.xlu0 %v2397, 48
      %v2899 = vpop.permute.xlu0 %2898
      %2900 = vrot.lane.b32.xlu0 %v2398, 48
      %v2901 = vpop.permute.xlu0 %2900
      %2902 = vrot.lane.b32.xlu0 %v2883, 48
      %v2903 = vpop.permute.xlu0 %2902
      %2914 = vst.msk [vmem:[#allocation4] sm:$0xff] %vm1152, %v2885
      %2915 = vst.msk [vmem:[#allocation4 + $0x10] sm:$0xff] %vm1152, %v2887
      %2916 = vst.msk [vmem:[#allocation4 + $0x20] sm:$0xff] %vm1152, %v2889
      %2917 = vst.msk [vmem:[#allocation4 + $0x30] sm:$0xff] %vm1152, %v2891
      %2918 = vst.msk [vmem:[#allocation4 + $0x40] sm:$0xff] %vm1152, %v2893
      %2919 = vst.msk [vmem:[#allocation4 + $0x50] sm:$0xff] %vm1152, %v2895
      %2920 = vst.msk [vmem:[#allocation4 + $0x60] sm:$0xff] %vm1152, %v2897
      %2921 = vst.msk [vmem:[#allocation4 + $0x70] sm:$0xff] %vm1152, %v2899
      %2922 = vst.msk [vmem:[#allocation4 + $0x80] sm:$0xff] %vm1152, %v2901
      %2923 = vst.msk [vmem:[#allocation4 + $0x90] sm:$0xff] %vm1152, %v2903
      %v2925 = vshrl.u32 %v2343, 16
      %v2927 = vrot.slane %v2925, 4
      %v2928 = vshll.u32 %v2343, 16
      %v2930 = vrot.slane %v2928, 5
      %v2931 = vor.u32 %v2927, %v2930
      %v2932 = vrot.slane %v2931, 4
      %v2934 = vshll.u32 %v2344, 16
      %v2936 = vrot.slane %v2934, 5
      %v2937 = vsel %vm553, %v2932, %v2936
      %v2938 = vshrl.u32 %v2344, 16
      %v2940 = vrot.slane %v2938, 4
      %v2941 = vor.u32 %v2940, %v2936
      %v2942 = vrot.slane %v2941, 4
      %v2944 = vshll.u32 %v2345, 16
      %v2946 = vrot.slane %v2944, 5
      %v2947 = vsel %vm553, %v2942, %v2946
      %v2948 = vunpack.c.l.b16 %v2937
      %v2949 = vunpack.c.l.b16 %v2947
      %v2950 = vpack.c.b16 %v2949, %v2948
      %2951 = vrot.lane.b32.xlu0 %v2680, 64
      %v2952 = vpop.permute.xlu0 %2951
      %2953 = vrot.lane.b32.xlu0 %v2681, 64
      %v2954 = vpop.permute.xlu0 %2953
      %2955 = vrot.lane.b32.xlu0 %v2682, 64
      %v2956 = vpop.permute.xlu0 %2955
      %2957 = vrot.lane.b32.xlu0 %v2683, 64
      %v2958 = vpop.permute.xlu0 %2957
      %2959 = vrot.lane.b32.xlu0 %v2684, 64
      %v2960 = vpop.permute.xlu0 %2959
      %2961 = vrot.lane.b32.xlu0 %v2685, 64
      %v2962 = vpop.permute.xlu0 %2961
      %2963 = vrot.lane.b32.xlu0 %v2686, 64
      %v2964 = vpop.permute.xlu0 %2963
      %2965 = vrot.lane.b32.xlu0 %v2687, 64
      %v2966 = vpop.permute.xlu0 %2965
      %2967 = vrot.lane.b32.xlu0 %v2688, 64
      %v2968 = vpop.permute.xlu0 %2967
      %2969 = vrot.lane.b32.xlu0 %v2950, 64
      %v2970 = vpop.permute.xlu0 %2969
      %2981 = vst.msk [vmem:[#allocation4] sm:$0xff] %vm1228, %v2952
      %2982 = vst.msk [vmem:[#allocation4 + $0x10] sm:$0xff] %vm1228, %v2954
      %2983 = vst.msk [vmem:[#allocation4 + $0x20] sm:$0xff] %vm1228, %v2956
      %2984 = vst.msk [vmem:[#allocation4 + $0x30] sm:$0xff] %vm1228, %v2958
      %2985 = vst.msk [vmem:[#allocation4 + $0x40] sm:$0xff] %vm1228, %v2960
      %2986 = vst.msk [vmem:[#allocation4 + $0x50] sm:$0xff] %vm1228, %v2962
      %2987 = vst.msk [vmem:[#allocation4 + $0x60] sm:$0xff] %vm1228, %v2964
      %2988 = vst.msk [vmem:[#allocation4 + $0x70] sm:$0xff] %vm1228, %v2966
      %2989 = vst.msk [vmem:[#allocation4 + $0x80] sm:$0xff] %vm1228, %v2968
      %2990 = vst.msk [vmem:[#allocation4 + $0x90] sm:$0xff] %vm1228, %v2970
      %v2992 = vrot.slane %v2343, 5
      %v2993 = vrot.slane %v2992, 4
      %v2994 = vrot.slane %v2344, 5
      %v2995 = vsel %vm941, %v2993, %v2994
      %v2996 = vrot.slane %v2994, 4
      %v2997 = vrot.slane %v2345, 5
      %v2998 = vsel %vm941, %v2996, %v2997
      %v2999 = vunpack.c.l.b16 %v2995
      %v3000 = vunpack.c.l.b16 %v2998
      %v3001 = vpack.c.b16 %v3000, %v2999
      %3002 = vrot.lane.b32.xlu0 %v2830, 80
      %v3003 = vpop.permute.xlu0 %3002
      %3004 = vrot.lane.b32.xlu0 %v2831, 80
      %v3005 = vpop.permute.xlu0 %3004
      %3006 = vrot.lane.b32.xlu0 %v2832, 80
      %v3007 = vpop.permute.xlu0 %3006
      %3008 = vrot.lane.b32.xlu0 %v2833, 80
      %v3009 = vpop.permute.xlu0 %3008
      %3010 = vrot.lane.b32.xlu0 %v2834, 80
      %v3011 = vpop.permute.xlu0 %3010
      %3012 = vrot.lane.b32.xlu0 %v2835, 80
      %v3013 = vpop.permute.xlu0 %3012
      %3014 = vrot.lane.b32.xlu0 %v2836, 80
      %v3015 = vpop.permute.xlu0 %3014
      %3016 = vrot.lane.b32.xlu0 %v2837, 80
      %v3017 = vpop.permute.xlu0 %3016
      %3018 = vrot.lane.b32.xlu0 %v2838, 80
      %v3019 = vpop.permute.xlu0 %3018
      %3020 = vrot.lane.b32.xlu0 %v3001, 80
      %v3021 = vpop.permute.xlu0 %3020
      %3032 = vst.msk [vmem:[#allocation4] sm:$0xff] %vm1288, %v3003
      %3033 = vst.msk [vmem:[#allocation4 + $0x10] sm:$0xff] %vm1288, %v3005
      %3034 = vst.msk [vmem:[#allocation4 + $0x20] sm:$0xff] %vm1288, %v3007
      %3035 = vst.msk [vmem:[#allocation4 + $0x30] sm:$0xff] %vm1288, %v3009
      %3036 = vst.msk [vmem:[#allocation4 + $0x40] sm:$0xff] %vm1288, %v3011
      %3037 = vst.msk [vmem:[#allocation4 + $0x50] sm:$0xff] %vm1288, %v3013
      %3038 = vst.msk [vmem:[#allocation4 + $0x60] sm:$0xff] %vm1288, %v3015
      %3039 = vst.msk [vmem:[#allocation4 + $0x70] sm:$0xff] %vm1288, %v3017
      %3040 = vst.msk [vmem:[#allocation4 + $0x80] sm:$0xff] %vm1288, %v3019
      %3041 = vst.msk [vmem:[#allocation4 + $0x90] sm:$0xff] %vm1288, %v3021
      %v3044 = vunpack.c.l.b16 %v2346
      %v3045 = vunpack.c.l.b16 %v2347
      %v3046 = vpack.c.b16 %v3045, %v3044
      %3047 = vrot.lane.b32.xlu0 %v2391, 96
      %v3048 = vpop.permute.xlu0 %3047
      %3049 = vrot.lane.b32.xlu0 %v2392, 96
      %v3050 = vpop.permute.xlu0 %3049
      %3051 = vrot.lane.b32.xlu0 %v2393, 96
      %v3052 = vpop.permute.xlu0 %3051
      %3053 = vrot.lane.b32.xlu0 %v2394, 96
      %v3054 = vpop.permute.xlu0 %3053
      %3055 = vrot.lane.b32.xlu0 %v2395, 96
      %v3056 = vpop.permute.xlu0 %3055
      %3057 = vrot.lane.b32.xlu0 %v2396, 96
      %v3058 = vpop.permute.xlu0 %3057
      %3059 = vrot.lane.b32.xlu0 %v2397, 96
      %v3060 = vpop.permute.xlu0 %3059
      %3061 = vrot.lane.b32.xlu0 %v2398, 96
      %v3062 = vpop.permute.xlu0 %3061
      %3063 = vrot.lane.b32.xlu0 %v2883, 96
      %v3064 = vpop.permute.xlu0 %3063
      %3065 = vrot.lane.b32.xlu0 %v3046, 96
      %v3066 = vpop.permute.xlu0 %3065
      %3077 = vst.msk [vmem:[#allocation4] sm:$0xff] %vm1342, %v3048
      %3078 = vst.msk [vmem:[#allocation4 + $0x10] sm:$0xff] %vm1342, %v3050
      %3079 = vst.msk [vmem:[#allocation4 + $0x20] sm:$0xff] %vm1342, %v3052
      %3080 = vst.msk [vmem:[#allocation4 + $0x30] sm:$0xff] %vm1342, %v3054
      %3081 = vst.msk [vmem:[#allocation4 + $0x40] sm:$0xff] %vm1342, %v3056
      %3082 = vst.msk [vmem:[#allocation4 + $0x50] sm:$0xff] %vm1342, %v3058
      %3083 = vst.msk [vmem:[#allocation4 + $0x60] sm:$0xff] %vm1342, %v3060
      %3084 = vst.msk [vmem:[#allocation4 + $0x70] sm:$0xff] %vm1342, %v3062
      %3085 = vst.msk [vmem:[#allocation4 + $0x80] sm:$0xff] %vm1342, %v3064
      %3086 = vst.msk [vmem:[#allocation4 + $0x90] sm:$0xff] %vm1342, %v3066
      %v3088 = vshrl.u32 %v2346, 16
      %v3090 = vrot.slane %v3088, 4
      %v3091 = vshll.u32 %v2346, 16
      %v3093 = vrot.slane %v3091, 5
      %v3094 = vor.u32 %v3090, %v3093
      %v3095 = vrot.slane %v3094, 4
      %v3097 = vshll.u32 %v2347, 16
      %v3099 = vrot.slane %v3097, 5
      %v3100 = vsel %vm553, %v3095, %v3099
      %v3101 = vshrl.u32 %v2347, 16
      %v3103 = vrot.slane %v3101, 4
      %v3104 = vor.u32 %v3103, %v3099
      %v3105 = vrot.slane %v3104, 4
      %v3107 = vshll.u32 %v2348, 16
      %v3109 = vrot.slane %v3107, 5
      %v3110 = vsel %vm553, %v3105, %v3109
      %v3111 = vunpack.c.l.b16 %v3100
      %v3112 = vunpack.c.l.b16 %v3110
      %v3113 = vpack.c.b16 %v3112, %v3111
      %3114 = vrot.lane.b32.xlu0 %v2681, 112
      %v3115 = vpop.permute.xlu0 %3114
      %3116 = vrot.lane.b32.xlu0 %v2682, 112
      %v3117 = vpop.permute.xlu0 %3116
      %3118 = vrot.lane.b32.xlu0 %v2683, 112
      %v3119 = vpop.permute.xlu0 %3118
      %3120 = vrot.lane.b32.xlu0 %v2684, 112
      %v3121 = vpop.permute.xlu0 %3120
      %3122 = vrot.lane.b32.xlu0 %v2685, 112
      %v3123 = vpop.permute.xlu0 %3122
      %3124 = vrot.lane.b32.xlu0 %v2686, 112
      %v3125 = vpop.permute.xlu0 %3124
      %3126 = vrot.lane.b32.xlu0 %v2687, 112
      %v3127 = vpop.permute.xlu0 %3126
      %3128 = vrot.lane.b32.xlu0 %v2688, 112
      %v3129 = vpop.permute.xlu0 %3128
      %3130 = vrot.lane.b32.xlu0 %v2950, 112
      %v3131 = vpop.permute.xlu0 %3130
      %3132 = vrot.lane.b32.xlu0 %v3113, 112
      %v3133 = vpop.permute.xlu0 %3132
      %3144 = vst.msk [vmem:[#allocation4] sm:$0xff] %vm1418, %v3115
      %3145 = vst.msk [vmem:[#allocation4 + $0x10] sm:$0xff] %vm1418, %v3117
      %3146 = vst.msk [vmem:[#allocation4 + $0x20] sm:$0xff] %vm1418, %v3119
      %3147 = vst.msk [vmem:[#allocation4 + $0x30] sm:$0xff] %vm1418, %v3121
      %3148 = vst.msk [vmem:[#allocation4 + $0x40] sm:$0xff] %vm1418, %v3123
      %3149 = vst.msk [vmem:[#allocation4 + $0x50] sm:$0xff] %vm1418, %v3125
      %3150 = vst.msk [vmem:[#allocation4 + $0x60] sm:$0xff] %vm1418, %v3127
      %3151 = vst.msk [vmem:[#allocation4 + $0x70] sm:$0xff] %vm1418, %v3129
      %3152 = vst.msk [vmem:[#allocation4 + $0x80] sm:$0xff] %vm1418, %v3131
      %3153 = vst.msk [vmem:[#allocation4 + $0x90] sm:$0xff] %vm1418, %v3133
      %v3155 = vrot.slane %v2346, 5
      %v3156 = vrot.slane %v3155, 4
      %v3157 = vrot.slane %v2347, 5
      %v3158 = vsel %vm941, %v3156, %v3157
      %v3159 = vrot.slane %v3157, 4
      %v3160 = vrot.slane %v2348, 5
      %v3161 = vsel %vm941, %v3159, %v3160
      %v3162 = vunpack.c.l.b16 %v3158
      %v3163 = vunpack.c.l.b16 %v3161
      %v3164 = vpack.c.b16 %v3163, %v3162
      %3175 = vst.msk [vmem:[#allocation4 + $0x8] sm:$0xff] %vm538, %v2831
      %3176 = vst.msk [vmem:[#allocation4 + $0x18] sm:$0xff] %vm538, %v2832
      %3177 = vst.msk [vmem:[#allocation4 + $0x28] sm:$0xff] %vm538, %v2833
      %3178 = vst.msk [vmem:[#allocation4 + $0x38] sm:$0xff] %vm538, %v2834
      %3179 = vst.msk [vmem:[#allocation4 + $0x48] sm:$0xff] %vm538, %v2835
      %3180 = vst.msk [vmem:[#allocation4 + $0x58] sm:$0xff] %vm538, %v2836
      %3181 = vst.msk [vmem:[#allocation4 + $0x68] sm:$0xff] %vm538, %v2837
      %3182 = vst.msk [vmem:[#allocation4 + $0x78] sm:$0xff] %vm538, %v2838
      %3183 = vst.msk [vmem:[#allocation4 + $0x88] sm:$0xff] %vm538, %v3001
      %3184 = vst.msk [vmem:[#allocation4 + $0x98] sm:$0xff] %vm538, %v3164
      %v3185 = vld [vmem:[#allocation4] sm:$0xff]
      %v3186 = vld [vmem:[#allocation4 + $0x8] sm:$0xff]
      %v3187 = vld [vmem:[#allocation4 + $0x10] sm:$0xff]
      %v3188 = vld [vmem:[#allocation4 + $0x18] sm:$0xff]
      %v3189 = vld [vmem:[#allocation4 + $0x20] sm:$0xff]
      %v3190 = vld [vmem:[#allocation4 + $0x28] sm:$0xff]
      %v3191 = vld [vmem:[#allocation4 + $0x30] sm:$0xff]
      %v3192 = vld [vmem:[#allocation4 + $0x38] sm:$0xff]
      %v3193 = vld [vmem:[#allocation4 + $0x40] sm:$0xff]
      %v3194 = vld [vmem:[#allocation4 + $0x48] sm:$0xff]
      %v3195 = vld [vmem:[#allocation4 + $0x50] sm:$0xff]
      %v3196 = vld [vmem:[#allocation4 + $0x58] sm:$0xff]
      %v3197 = vld [vmem:[#allocation4 + $0x60] sm:$0xff]
      %v3198 = vld [vmem:[#allocation4 + $0x68] sm:$0xff]
      %v3199 = vld [vmem:[#allocation4 + $0x70] sm:$0xff]
      %v3200 = vld [vmem:[#allocation4 + $0x78] sm:$0xff]
      %v3201 = vld [vmem:[#allocation4 + $0x80] sm:$0xff]
      %v3202 = vld [vmem:[#allocation4 + $0x88] sm:$0xff]
      %v3203 = vld [vmem:[#allocation4 + $0x90] sm:$0xff]
      %v3204 = vld [vmem:[#allocation4 + $0x98] sm:$0xff]
      %v3206 = vlaneseq
      %v3207 = vshrl.u32 %v3206, 7
      %v3208 = vsub.s32 0, %v3207
      %v3209 = vrot.slane %v464, %v3208
      %v3229 = vunpack.c.l.b16 %v427
      %v3230 = vunpack.c.l.b16 %v428
      %v3231 = vunpack.c.l.b16 %v429
      %v3232 = vunpack.c.l.b16 %v430
      %v3233 = vunpack.c.l.b16 %v431
      %v3234 = vunpack.c.l.b16 %v432
      %v3235 = vunpack.c.l.b16 %v433
      %v3236 = vunpack.c.l.b16 %v434
      %v3237 = vunpack.c.l.b16 %v435
      %v3238 = vunpack.c.l.b16 %v436
      %v3239 = vunpack.c.l.b16 %v437
      %v3240 = vunpack.c.l.b16 %v438
      %v3241 = vunpack.c.l.b16 %v439
      %v3242 = vunpack.c.l.b16 %v440
      %v3243 = vunpack.c.l.b16 %v441
      %v3244 = vunpack.c.l.b16 %v442
      %v3245 = vunpack.c.l.b16 %v443
      %v3246 = vunpack.c.l.b16 %v444
      %v3247 = vpack.c.b16 %v3230, %v3229
      %v3248 = vpack.c.b16 %v3232, %v3231
      %v3249 = vpack.c.b16 %v3234, %v3233
      %v3250 = vpack.c.b16 %v3236, %v3235
      %v3251 = vpack.c.b16 %v3238, %v3237
      %v3252 = vpack.c.b16 %v3240, %v3239
      %v3253 = vpack.c.b16 %v3242, %v3241
      %v3254 = vpack.c.b16 %v3244, %v3243
      %v3255 = vpack.c.b16 %v3246, %v3245
      %v3266 = vsel %vm538, %v3186, 0
      %v3269 = vsel %vm538, %v3188, 0
      %v3272 = vsel %vm538, %v3190, 0
      %v3275 = vsel %vm538, %v3192, 0
      %v3278 = vsel %vm538, %v3194, 0
      %v3281 = vsel %vm538, %v3196, 0
      %v3284 = vsel %vm538, %v3198, 0
      %v3287 = vsel %vm538, %v3200, 0
      %v3290 = vsel %vm538, %v3202, 0
      %v3293 = vsel %vm538, %v3204, 0
      %3295 = vmatprep.subr.bf16.mxu0 0
      %3296 = vmatpush1.bf16.msra.mxu0 %v3247
      %3297 = vmatprep.subr.bf16.mxu0 0
      %3298 = vmatpush1.bf16.msra.mxu0 %v3248
      %3299 = vmatprep.subr.bf16.mxu0 0
      %3300 = vmatpush1.bf16.msra.mxu0 %v3249
      %3301 = vmatprep.subr.bf16.mxu0 0
      %3302 = vmatpush1.bf16.msra.mxu0 %v3250
      %3303 = vmatprep.subr.bf16.mxu0 0
      %3304 = vmatpush1.bf16.msra.mxu0 %v3251
      %3305 = vmatprep.subr.bf16.mxu0 0
      %3306 = vmatpush1.bf16.msra.mxu0 %v3252
      %3307 = vmatprep.subr.bf16.mxu0 0
      %3308 = vmatpush1.bf16.msra.mxu0 %v3253
      %3309 = vmatprep.subr.bf16.mxu0 0
      %3310 = vmatpush1.bf16.msra.mxu0 %v3254
      %3311 = vmatprep.subr.bf16.mxu0 0
      %3312 = vmatpush1.bf16.msra.mxu0 %v3255
      %3313 = vmatprep.subr.bf16.mxu0 0
      %3314 = vmatpush1.bf16.msra.mxu0 0
      %3315 = vmatprep.subr.bf16.mxu0 0
      %3316 = vmatpush1.bf16.msra.mxu0 0
      %3317 = vmatprep.subr.bf16.mxu0 0
      %3318 = vmatpush1.bf16.msra.mxu0 0
      %3319 = vmatprep.subr.bf16.mxu0 0
      %3320 = vmatpush1.bf16.msra.mxu0 0
      %3321 = vmatprep.subr.bf16.mxu0 0
      %3322 = vmatpush1.bf16.msra.mxu0 0
      %3323 = vmatprep.subr.bf16.mxu0 0
      %3324 = vmatpush1.bf16.msra.mxu0 0
      %3325 = vmatprep.subr.bf16.mxu0 0
      %3326 = vmatpush1.bf16.msra.mxu0 0
      %3327 = vmatprep.mubr.bf16.mxu0 %v3266
      %3328 = vmatmul.mubr.bf16.gmra.mrb[0].mxu0 %v3185
      %v3329 = vpop.f32.mrb[0].mxu0
      %v3330 = vadd.f32 %v3209, %v3329
      %v3331 = vpop.f32.mrb[0].mxu0
      %v3332 = vpop.f32.mrb[0].mxu0
      %v3333 = vadd.f32 %v3209, %v3332
      %v3334 = vpop.f32.mrb[0].mxu0
      %3335 = vmatprep.mubr.bf16.mxu0 %v3269
      %3336 = vmatmul.mubr.bf16.gmra.mrb[0].mxu0 %v3187
      %v3337 = vpop.f32.mrb[0].mxu0
      %v3338 = vadd.f32 %v3209, %v3337
      %v3339 = vpop.f32.mrb[0].mxu0
      %v3340 = vpop.f32.mrb[0].mxu0
      %v3341 = vadd.f32 %v3209, %v3340
      %v3342 = vpop.f32.mrb[0].mxu0
      %3343 = vmatprep.mubr.bf16.mxu0 %v3272
      %3344 = vmatmul.mubr.bf16.gmra.mrb[0].mxu0 %v3189
      %v3345 = vpop.f32.mrb[0].mxu0
      %v3346 = vadd.f32 %v3209, %v3345
      %v3347 = vpop.f32.mrb[0].mxu0
      %v3348 = vpop.f32.mrb[0].mxu0
      %v3349 = vadd.f32 %v3209, %v3348
      %v3350 = vpop.f32.mrb[0].mxu0
      %3351 = vmatprep.mubr.bf16.mxu0 %v3275
      %3352 = vmatmul.mubr.bf16.gmra.mrb[0].mxu0 %v3191
      %v3353 = vpop.f32.mrb[0].mxu0
      %v3354 = vadd.f32 %v3209, %v3353
      %v3355 = vpop.f32.mrb[0].mxu0
      %v3356 = vpop.f32.mrb[0].mxu0
      %v3357 = vadd.f32 %v3209, %v3356
      %v3358 = vpop.f32.mrb[0].mxu0
      %3359 = vmatprep.mubr.bf16.mxu0 %v3278
      %3360 = vmatmul.mubr.bf16.gmra.mrb[0].mxu0 %v3193
      %v3361 = vpop.f32.mrb[0].mxu0
      %v3362 = vadd.f32 %v3209, %v3361
      %v3363 = vpop.f32.mrb[0].mxu0
      %v3364 = vpop.f32.mrb[0].mxu0
      %v3365 = vadd.f32 %v3209, %v3364
      %v3366 = vpop.f32.mrb[0].mxu0
      %3367 = vmatprep.mubr.bf16.mxu0 %v3281
      %3368 = vmatmul.mubr.bf16.gmra.mrb[0].mxu0 %v3195
      %v3369 = vpop.f32.mrb[0].mxu0
      %v3370 = vadd.f32 %v3209, %v3369
      %v3371 = vpop.f32.mrb[0].mxu0
      %v3372 = vpop.f32.mrb[0].mxu0
      %v3373 = vadd.f32 %v3209, %v3372
      %v3374 = vpop.f32.mrb[0].mxu0
      %3375 = vmatprep.mubr.bf16.mxu0 %v3284
      %3376 = vmatmul.mubr.bf16.gmra.mrb[0].mxu0 %v3197
      %v3377 = vpop.f32.mrb[0].mxu0
      %v3378 = vadd.f32 %v3209, %v3377
      %v3379 = vpop.f32.mrb[0].mxu0
      %v3380 = vpop.f32.mrb[0].mxu0
      %v3381 = vadd.f32 %v3209, %v3380
      %v3382 = vpop.f32.mrb[0].mxu0
      %3383 = vmatprep.mubr.bf16.mxu0 %v3287
      %3384 = vmatmul.mubr.bf16.gmra.mrb[0].mxu0 %v3199
      %v3385 = vpop.f32.mrb[0].mxu0
      %v3386 = vadd.f32 %v3209, %v3385
      %v3387 = vpop.f32.mrb[0].mxu0
      %v3388 = vpop.f32.mrb[0].mxu0
      %v3389 = vadd.f32 %v3209, %v3388
      %v3390 = vpop.f32.mrb[0].mxu0
      %3391 = vmatprep.mubr.bf16.mxu0 %v3290
      %3392 = vmatmul.mubr.bf16.gmra.mrb[0].mxu0 %v3201
      %v3393 = vpop.f32.mrb[0].mxu0
      %v3394 = vadd.f32 %v3209, %v3393
      %v3395 = vpop.f32.mrb[0].mxu0
      %v3396 = vpop.f32.mrb[0].mxu0
      %v3397 = vadd.f32 %v3209, %v3396
      %v3398 = vpop.f32.mrb[0].mxu0
      %3399 = vmatprep.mubr.bf16.mxu0 %v3293
      %3400 = vmatmul.mubr.bf16.gmra.mrb[0].mxu0 %v3203
      %v3401 = vpop.f32.mrb[0].mxu0
      %v3402 = vadd.f32 %v3209, %v3401
      %v3403 = vpop.f32.mrb[0].mxu0
      %v3404 = vpop.f32.mrb[0].mxu0
      %v3405 = vadd.f32 %v3209, %v3404
      %v3406 = vpop.f32.mrb[0].mxu0
      %3407 = vdwg.mxu0
      %v3408 = vmax.f32 %v3330, 0.0
      %v3409 = vmax.f32 %v3333, 0.0
      %v3410 = vmax.f32 %v3338, 0.0
      %v3411 = vmax.f32 %v3341, 0.0
      %v3412 = vmax.f32 %v3346, 0.0
      %v3413 = vmax.f32 %v3349, 0.0
      %v3414 = vmax.f32 %v3354, 0.0
      %v3415 = vmax.f32 %v3357, 0.0
      %v3416 = vmax.f32 %v3362, 0.0
      %v3417 = vmax.f32 %v3365, 0.0
      %v3418 = vmax.f32 %v3370, 0.0
      %v3419 = vmax.f32 %v3373, 0.0
      %v3420 = vmax.f32 %v3378, 0.0
      %v3421 = vmax.f32 %v3381, 0.0
      %v3422 = vmax.f32 %v3386, 0.0
      %v3423 = vmax.f32 %v3389, 0.0
      %v3424 = vmax.f32 %v3394, 0.0
      %v3425 = vmax.f32 %v3397, 0.0
      %v3426 = vmax.f32 %v3402, 0.0
      %v3427 = vmax.f32 %v3405, 0.0
      %vm3428 = vcmp.ge.s32.totalorder %v1739, 1
      %vm3429 = vcmp.ge.s32.totalorder %v1740, 1
      %vm3430 = vcmp.ge.s32.totalorder %v1741, 1
      %vm3431 = vcmp.ge.s32.totalorder %v1742, 1
      %vm3432 = vcmp.ge.s32.totalorder %v1743, 1
      %vm3433 = vcmp.ge.s32.totalorder %v1744, 1
      %vm3434 = vcmp.ge.s32.totalorder %v1745, 1
      %vm3435 = vcmp.ge.s32.totalorder %v1746, 1
      %vm3436 = vcmp.ge.s32.totalorder %v1747, 1
      %vm3437 = vcmp.ge.s32.totalorder %v1748, 1
      %vm3438 = vcmp.lt.s32.totalorder %v1739, 17
      %vm3439 = vcmp.lt.s32.totalorder %v1740, 17
      %vm3440 = vcmp.lt.s32.totalorder %v1741, 17
      %vm3441 = vcmp.lt.s32.totalorder %v1742, 17
      %vm3442 = vcmp.lt.s32.totalorder %v1743, 17
      %vm3443 = vcmp.lt.s32.totalorder %v1744, 17
      %vm3444 = vcmp.lt.s32.totalorder %v1745, 17
      %vm3445 = vcmp.lt.s32.totalorder %v1746, 17
      %vm3446 = vcmp.lt.s32.totalorder %v1747, 17
      %vm3447 = vcmp.lt.s32.totalorder %v1748, 17
      %vm3448 = vmand %vm3428, %vm3438
      %vm3449 = vmand %vm3429, %vm3439
      %vm3450 = vmand %vm3430, %vm3440
      %vm3451 = vmand %vm3431, %vm3441
      %vm3452 = vmand %vm3432, %vm3442
      %vm3453 = vmand %vm3433, %vm3443
      %vm3454 = vmand %vm3434, %vm3444
      %vm3455 = vmand %vm3435, %vm3445
      %vm3456 = vmand %vm3436, %vm3446
      %vm3457 = vmand %vm3437, %vm3447
      %v3458 = vsel %vm3448, 1, 0
      %v3459 = vsel %vm3449, 1, 0
      %v3460 = vsel %vm3450, 1, 0
      %v3461 = vsel %vm3451, 1, 0
      %v3462 = vsel %vm3452, 1, 0
      %v3463 = vsel %vm3453, 1, 0
      %v3464 = vsel %vm3454, 1, 0
      %v3465 = vsel %vm3455, 1, 0
      %v3466 = vsel %vm3456, 1, 0
      %v3467 = vsel %vm3457, 1, 0
      %vm3468 = vcmp.eq.s32.totalorder %v3458, 1
      %vm3469 = vcmp.eq.s32.totalorder %v3459, 1
      %vm3470 = vcmp.eq.s32.totalorder %v3460, 1
      %vm3471 = vcmp.eq.s32.totalorder %v3461, 1
      %vm3472 = vcmp.eq.s32.totalorder %v3462, 1
      %vm3473 = vcmp.eq.s32.totalorder %v3463, 1
      %vm3474 = vcmp.eq.s32.totalorder %v3464, 1
      %vm3475 = vcmp.eq.s32.totalorder %v3465, 1
      %vm3476 = vcmp.eq.s32.totalorder %v3466, 1
      %vm3477 = vcmp.eq.s32.totalorder %v3467, 1
      %v3478 = vsel %vm3468, %v3408, 0.0
      %v3479 = vsel %vm3468, %v3409, 0.0
      %v3480 = vsel %vm3469, %v3410, 0.0
      %v3481 = vsel %vm3469, %v3411, 0.0
      %v3482 = vsel %vm3470, %v3412, 0.0
      %v3483 = vsel %vm3470, %v3413, 0.0
      %v3484 = vsel %vm3471, %v3414, 0.0
      %v3485 = vsel %vm3471, %v3415, 0.0
      %v3486 = vsel %vm3472, %v3416, 0.0
      %v3487 = vsel %vm3472, %v3417, 0.0
      %v3488 = vsel %vm3473, %v3418, 0.0
      %v3489 = vsel %vm3473, %v3419, 0.0
      %v3490 = vsel %vm3474, %v3420, 0.0
      %v3491 = vsel %vm3474, %v3421, 0.0
      %v3492 = vsel %vm3475, %v3422, 0.0
      %v3493 = vsel %vm3475, %v3423, 0.0
      %v3494 = vsel %vm3476, %v3424, 0.0
      %v3495 = vsel %vm3476, %v3425, 0.0
      %v3496 = vsel %vm3477, %v3426, 0.0
      %v3497 = vsel %vm3477, %v3427, 0.0
      %v3498 = vpack.c.bf16 %v3479, %v3478
      %v3499 = vpack.c.bf16 %v3481, %v3480
      %v3500 = vpack.c.bf16 %v3483, %v3482
      %v3501 = vpack.c.bf16 %v3485, %v3484
      %v3502 = vpack.c.bf16 %v3487, %v3486
      %v3503 = vpack.c.bf16 %v3489, %v3488
      %v3504 = vpack.c.bf16 %v3491, %v3490
      %v3505 = vpack.c.bf16 %v3493, %v3492
      %v3506 = vpack.c.bf16 %v3495, %v3494
      %v3507 = vpack.c.bf16 %v3497, %v3496
      %v3508 = vld [vmem:[#allocation3] sm:$0x1]
      %v3509 = vsel %vm1849, 0, %v3508
      %3510 = vst [vmem:[#allocation3] sm:$0x1] %v3509
      %v3511 = vld [vmem:[#allocation3 + $0xc] sm:$0x1]
      %v3512 = vsel %vm1849, 0, %v3511
      %3513 = vst [vmem:[#allocation3 + $0xc] sm:$0x1] %v3512
      %v3514 = vld [vmem:[#allocation3 + $0x18] sm:$0x1]
      %v3515 = vsel %vm1849, 0, %v3514
      %3516 = vst [vmem:[#allocation3 + $0x18] sm:$0x1] %v3515
      %v3517 = vld [vmem:[#allocation3 + $0x24] sm:$0x1]
      %v3518 = vsel %vm1849, 0, %v3517
      %3519 = vst [vmem:[#allocation3 + $0x24] sm:$0x1] %v3518
      %v3520 = vld [vmem:[#allocation3 + $0x30] sm:$0x1]
      %v3521 = vsel %vm1849, 0, %v3520
      %3522 = vst [vmem:[#allocation3 + $0x30] sm:$0x1] %v3521
      %v3523 = vld [vmem:[#allocation3 + $0x3c] sm:$0x1]
      %v3524 = vsel %vm1849, 0, %v3523
      %3525 = vst [vmem:[#allocation3 + $0x3c] sm:$0x1] %v3524
      %v3526 = vld [vmem:[#allocation3 + $0x48] sm:$0x1]
      %v3527 = vsel %vm1849, 0, %v3526
      %3528 = vst [vmem:[#allocation3 + $0x48] sm:$0x1] %v3527
      %v3529 = vld [vmem:[#allocation3 + $0x54] sm:$0x1]
      %v3530 = vsel %vm1849, 0, %v3529
      %3531 = vst [vmem:[#allocation3 + $0x54] sm:$0x1] %v3530
      %v3532 = vld [vmem:[#allocation3 + $0x60] sm:$0x1]
      %v3533 = vsel %vm1849, 0, %v3532
      %3534 = vst [vmem:[#allocation3 + $0x60] sm:$0x1] %v3533
      %v3535 = vld [vmem:[#allocation3 + $0x6c] sm:$0x1]
      %v3536 = vsel %vm1849, 0, %v3535
      %3537 = vst [vmem:[#allocation3 + $0x6c] sm:$0x1] %v3536
      %v3538 = vld [vmem:[#allocation3 + $0x8] sm:$0x1]
      %v3539 = vsel %vm1887, 0, %v3538
      %3540 = vst [vmem:[#allocation3 + $0x8] sm:$0x1] %v3539
      %v3541 = vld [vmem:[#allocation3 + $0x14] sm:$0x1]
      %v3542 = vsel %vm1887, 0, %v3541
      %3543 = vst [vmem:[#allocation3 + $0x14] sm:$0x1] %v3542
      %v3544 = vld [vmem:[#allocation3 + $0x20] sm:$0x1]
      %v3545 = vsel %vm1887, 0, %v3544
      %3546 = vst [vmem:[#allocation3 + $0x20] sm:$0x1] %v3545
      %v3547 = vld [vmem:[#allocation3 + $0x2c] sm:$0x1]
      %v3548 = vsel %vm1887, 0, %v3547
      %3549 = vst [vmem:[#allocation3 + $0x2c] sm:$0x1] %v3548
      %v3550 = vld [vmem:[#allocation3 + $0x38] sm:$0x1]
      %v3551 = vsel %vm1887, 0, %v3550
      %3552 = vst [vmem:[#allocation3 + $0x38] sm:$0x1] %v3551
      %v3553 = vld [vmem:[#allocation3 + $0x44] sm:$0x1]
      %v3554 = vsel %vm1887, 0, %v3553
      %3555 = vst [vmem:[#allocation3 + $0x44] sm:$0x1] %v3554
      %v3556 = vld [vmem:[#allocation3 + $0x50] sm:$0x1]
      %v3557 = vsel %vm1887, 0, %v3556
      %3558 = vst [vmem:[#allocation3 + $0x50] sm:$0x1] %v3557
      %v3559 = vld [vmem:[#allocation3 + $0x5c] sm:$0x1]
      %v3560 = vsel %vm1887, 0, %v3559
      %3561 = vst [vmem:[#allocation3 + $0x5c] sm:$0x1] %v3560
      %v3562 = vld [vmem:[#allocation3 + $0x68] sm:$0x1]
      %v3563 = vsel %vm1887, 0, %v3562
      %3564 = vst [vmem:[#allocation3 + $0x68] sm:$0x1] %v3563
      %v3565 = vld [vmem:[#allocation3 + $0x74] sm:$0x1]
      %v3566 = vsel %vm1887, 0, %v3565
      %3567 = vst [vmem:[#allocation3 + $0x74] sm:$0x1] %v3566
      %v3578 = vunpack.c.l.b16 %v3498
      %v3579 = vunpack.c.h.b16 %v3498
      %v3580 = vunpack.c.l.b16 %v3499
      %v3581 = vunpack.c.h.b16 %v3499
      %v3582 = vunpack.c.l.b16 %v3500
      %v3583 = vunpack.c.h.b16 %v3500
      %v3584 = vunpack.c.l.b16 %v3501
      %v3585 = vunpack.c.h.b16 %v3501
      %v3586 = vunpack.c.l.b16 %v3502
      %v3587 = vunpack.c.h.b16 %v3502
      %v3588 = vunpack.c.l.b16 %v3503
      %v3589 = vunpack.c.h.b16 %v3503
      %v3590 = vunpack.c.l.b16 %v3504
      %v3591 = vunpack.c.h.b16 %v3504
      %v3592 = vunpack.c.l.b16 %v3505
      %v3593 = vunpack.c.h.b16 %v3505
      %v3594 = vunpack.c.l.b16 %v3506
      %v3595 = vunpack.c.h.b16 %v3506
      %v3596 = vunpack.c.l.b16 %v3507
      %v3597 = vunpack.c.h.b16 %v3507
      %v3598 = vpack.c.b16 %v3578, %v3578
      %v3599 = vpack.c.b16 %v3579, %v3579
      %v3600 = vpack.c.b16 %v3580, %v3580
      %v3601 = vpack.c.b16 %v3581, %v3581
      %v3602 = vpack.c.b16 %v3582, %v3582
      %v3603 = vpack.c.b16 %v3583, %v3583
      %v3604 = vpack.c.b16 %v3584, %v3584
      %v3605 = vpack.c.b16 %v3585, %v3585
      %v3606 = vpack.c.b16 %v3586, %v3586
      %v3607 = vpack.c.b16 %v3587, %v3587
      %v3608 = vpack.c.b16 %v3588, %v3588
      %v3609 = vpack.c.b16 %v3589, %v3589
      %v3610 = vpack.c.b16 %v3590, %v3590
      %v3611 = vpack.c.b16 %v3591, %v3591
      %v3612 = vpack.c.b16 %v3592, %v3592
      %v3613 = vpack.c.b16 %v3593, %v3593
      %v3614 = vpack.c.b16 %v3594, %v3594
      %v3615 = vpack.c.b16 %v3595, %v3595
      %v3616 = vpack.c.b16 %v3596, %v3596
      %v3617 = vpack.c.b16 %v3597, %v3597
      %v3619 = vshrl.u32 %v3598, 16
      %v3621 = vrot.slane %v3619, 7
      %v3622 = vshll.u32 %v3598, 16
      %v3624 = vor.u32 %v3621, %v3622
      %v3625 = vrot.slane %v3621, 4
      %v3627 = vshrl.u32 %v3599, 16
      %v3629 = vrot.slane %v3627, 7
      %v3630 = vshll.u32 %v3599, 16
      %v3632 = vor.u32 %v3629, %v3630
      %v3633 = vsel %vm1985, %v3625, %v3632
      %v3634 = vrot.slane %v3629, 4
      %v3636 = vshrl.u32 %v3600, 16
      %v3638 = vrot.slane %v3636, 7
      %v3639 = vshll.u32 %v3600, 16
      %v3641 = vor.u32 %v3638, %v3639
      %v3642 = vrot.slane %v3638, 4
      %v3644 = vshrl.u32 %v3601, 16
      %v3646 = vrot.slane %v3644, 7
      %v3647 = vshll.u32 %v3601, 16
      %v3649 = vor.u32 %v3646, %v3647
      %v3650 = vsel %vm1985, %v3642, %v3649
      %v3651 = vrot.slane %v3646, 4
      %v3653 = vshrl.u32 %v3602, 16
      %v3655 = vrot.slane %v3653, 7
      %v3656 = vshll.u32 %v3602, 16
      %v3658 = vor.u32 %v3655, %v3656
      %v3659 = vrot.slane %v3655, 4
      %v3661 = vshrl.u32 %v3603, 16
      %v3663 = vrot.slane %v3661, 7
      %v3664 = vshll.u32 %v3603, 16
      %v3666 = vor.u32 %v3663, %v3664
      %v3667 = vsel %vm1985, %v3659, %v3666
      %v3668 = vrot.slane %v3663, 4
      %v3670 = vshrl.u32 %v3604, 16
      %v3672 = vrot.slane %v3670, 7
      %v3673 = vshll.u32 %v3604, 16
      %v3675 = vor.u32 %v3672, %v3673
      %v3676 = vrot.slane %v3672, 4
      %v3678 = vshrl.u32 %v3605, 16
      %v3680 = vrot.slane %v3678, 7
      %v3681 = vshll.u32 %v3605, 16
      %v3683 = vor.u32 %v3680, %v3681
      %v3684 = vsel %vm1985, %v3676, %v3683
      %v3685 = vrot.slane %v3680, 4
      %v3687 = vshrl.u32 %v3606, 16
      %v3689 = vrot.slane %v3687, 7
      %v3690 = vshll.u32 %v3606, 16
      %v3692 = vor.u32 %v3689, %v3690
      %v3693 = vrot.slane %v3689, 4
      %v3695 = vshrl.u32 %v3607, 16
      %v3697 = vrot.slane %v3695, 7
      %v3698 = vshll.u32 %v3607, 16
      %v3700 = vor.u32 %v3697, %v3698
      %v3701 = vsel %vm1985, %v3693, %v3700
      %v3702 = vrot.slane %v3697, 4
      %v3704 = vshrl.u32 %v3608, 16
      %v3706 = vrot.slane %v3704, 7
      %v3707 = vshll.u32 %v3608, 16
      %v3709 = vor.u32 %v3706, %v3707
      %v3710 = vrot.slane %v3706, 4
      %v3712 = vshrl.u32 %v3609, 16
      %v3714 = vrot.slane %v3712, 7
      %v3715 = vshll.u32 %v3609, 16
      %v3717 = vor.u32 %v3714, %v3715
      %v3718 = vsel %vm1985, %v3710, %v3717
      %v3719 = vrot.slane %v3714, 4
      %v3721 = vshrl.u32 %v3610, 16
      %v3723 = vrot.slane %v3721, 7
      %v3724 = vshll.u32 %v3610, 16
      %v3726 = vor.u32 %v3723, %v3724
      %v3727 = vrot.slane %v3723, 4
      %v3729 = vshrl.u32 %v3611, 16
      %v3731 = vrot.slane %v3729, 7
      %v3732 = vshll.u32 %v3611, 16
      %v3734 = vor.u32 %v3731, %v3732
      %v3735 = vsel %vm1985, %v3727, %v3734
      %v3736 = vrot.slane %v3731, 4
      %v3738 = vshrl.u32 %v3612, 16
      %v3740 = vrot.slane %v3738, 7
      %v3741 = vshll.u32 %v3612, 16
      %v3743 = vor.u32 %v3740, %v3741
      %v3744 = vrot.slane %v3740, 4
      %v3746 = vshrl.u32 %v3613, 16
      %v3748 = vrot.slane %v3746, 7
      %v3749 = vshll.u32 %v3613, 16
      %v3751 = vor.u32 %v3748, %v3749
      %v3752 = vsel %vm1985, %v3744, %v3751
      %v3753 = vrot.slane %v3748, 4
      %v3755 = vshrl.u32 %v3614, 16
      %v3757 = vrot.slane %v3755, 7
      %v3758 = vshll.u32 %v3614, 16
      %v3760 = vor.u32 %v3757, %v3758
      %v3761 = vrot.slane %v3757, 4
      %v3763 = vshrl.u32 %v3615, 16
      %v3765 = vrot.slane %v3763, 7
      %v3766 = vshll.u32 %v3615, 16
      %v3768 = vor.u32 %v3765, %v3766
      %v3769 = vsel %vm1985, %v3761, %v3768
      %v3770 = vrot.slane %v3765, 4
      %v3772 = vshrl.u32 %v3616, 16
      %v3774 = vrot.slane %v3772, 7
      %v3775 = vshll.u32 %v3616, 16
      %v3777 = vor.u32 %v3774, %v3775
      %v3778 = vrot.slane %v3774, 4
      %v3780 = vshrl.u32 %v3617, 16
      %v3782 = vrot.slane %v3780, 7
      %v3783 = vshll.u32 %v3617, 16
      %v3785 = vor.u32 %v3782, %v3783
      %v3786 = vsel %vm1985, %v3778, %v3785
      %v3787 = vrot.slane %v3782, 4
      %v3818 = vld [vmem:[#allocation3] sm:$0xf]
      %v3819 = vsel %vm2227, %v3624, %v3818
      %3820 = vst [vmem:[#allocation3] sm:$0xf] %v3819
      %3821 = vst.msk [vmem:[#allocation3 + $0x4] sm:$0xf] %vm2231, %v3633
      %v3822 = vld [vmem:[#allocation3 + $0x8] sm:$0x1]
      %v3823 = vsel %vm1849, %v3634, %v3822
      %3824 = vst [vmem:[#allocation3 + $0x8] sm:$0x1] %v3823
      %v3825 = vld [vmem:[#allocation3 + $0xc] sm:$0xf]
      %v3826 = vsel %vm2227, %v3641, %v3825
      %3827 = vst [vmem:[#allocation3 + $0xc] sm:$0xf] %v3826
      %3828 = vst.msk [vmem:[#allocation3 + $0x10] sm:$0xf] %vm2231, %v3650
      %v3829 = vld [vmem:[#allocation3 + $0x14] sm:$0x1]
      %v3830 = vsel %vm1849, %v3651, %v3829
      %3831 = vst [vmem:[#allocation3 + $0x14] sm:$0x1] %v3830
      %v3832 = vld [vmem:[#allocation3 + $0x18] sm:$0xf]
      %v3833 = vsel %vm2227, %v3658, %v3832
      %3834 = vst [vmem:[#allocation3 + $0x18] sm:$0xf] %v3833
      %3835 = vst.msk [vmem:[#allocation3 + $0x1c] sm:$0xf] %vm2231, %v3667
      %v3836 = vld [vmem:[#allocation3 + $0x20] sm:$0x1]
      %v3837 = vsel %vm1849, %v3668, %v3836
      %3838 = vst [vmem:[#allocation3 + $0x20] sm:$0x1] %v3837
      %v3839 = vld [vmem:[#allocation3 + $0x24] sm:$0xf]
      %v3840 = vsel %vm2227, %v3675, %v3839
      %3841 = vst [vmem:[#allocation3 + $0x24] sm:$0xf] %v3840
      %3842 = vst.msk [vmem:[#allocation3 + $0x28] sm:$0xf] %vm2231, %v3684
      %v3843 = vld [vmem:[#allocation3 + $0x2c] sm:$0x1]
      %v3844 = vsel %vm1849, %v3685, %v3843
      %3845 = vst [vmem:[#allocation3 + $0x2c] sm:$0x1] %v3844
      %v3846 = vld [vmem:[#allocation3 + $0x30] sm:$0xf]
      %v3847 = vsel %vm2227, %v3692, %v3846
      %3848 = vst [vmem:[#allocation3 + $0x30] sm:$0xf] %v3847
      %3849 = vst.msk [vmem:[#allocation3 + $0x34] sm:$0xf] %vm2231, %v3701
      %v3850 = vld [vmem:[#allocation3 + $0x38] sm:$0x1]
      %v3851 = vsel %vm1849, %v3702, %v3850
      %3852 = vst [vmem:[#allocation3 + $0x38] sm:$0x1] %v3851
      %v3853 = vld [vmem:[#allocation3 + $0x3c] sm:$0xf]
      %v3854 = vsel %vm2227, %v3709, %v3853
      %3855 = vst [vmem:[#allocation3 + $0x3c] sm:$0xf] %v3854
      %3856 = vst.msk [vmem:[#allocation3 + $0x40] sm:$0xf] %vm2231, %v3718
      %v3857 = vld [vmem:[#allocation3 + $0x44] sm:$0x1]
      %v3858 = vsel %vm1849, %v3719, %v3857
      %3859 = vst [vmem:[#allocation3 + $0x44] sm:$0x1] %v3858
      %v3860 = vld [vmem:[#allocation3 + $0x48] sm:$0xf]
      %v3861 = vsel %vm2227, %v3726, %v3860
      %3862 = vst [vmem:[#allocation3 + $0x48] sm:$0xf] %v3861
      %3863 = vst.msk [vmem:[#allocation3 + $0x4c] sm:$0xf] %vm2231, %v3735
      %v3864 = vld [vmem:[#allocation3 + $0x50] sm:$0x1]
      %v3865 = vsel %vm1849, %v3736, %v3864
      %3866 = vst [vmem:[#allocation3 + $0x50] sm:$0x1] %v3865
      %v3867 = vld [vmem:[#allocation3 + $0x54] sm:$0xf]
      %v3868 = vsel %vm2227, %v3743, %v3867
      %3869 = vst [vmem:[#allocation3 + $0x54] sm:$0xf] %v3868
      %3870 = vst.msk [vmem:[#allocation3 + $0x58] sm:$0xf] %vm2231, %v3752
      %v3871 = vld [vmem:[#allocation3 + $0x5c] sm:$0x1]
      %v3872 = vsel %vm1849, %v3753, %v3871
      %3873 = vst [vmem:[#allocation3 + $0x5c] sm:$0x1] %v3872
      %v3874 = vld [vmem:[#allocation3 + $0x60] sm:$0xf]
      %v3875 = vsel %vm2227, %v3760, %v3874
      %3876 = vst [vmem:[#allocation3 + $0x60] sm:$0xf] %v3875
      %3877 = vst.msk [vmem:[#allocation3 + $0x64] sm:$0xf] %vm2231, %v3769
      %v3878 = vld [vmem:[#allocation3 + $0x68] sm:$0x1]
      %v3879 = vsel %vm1849, %v3770, %v3878
      %3880 = vst [vmem:[#allocation3 + $0x68] sm:$0x1] %v3879
      %v3881 = vld [vmem:[#allocation3 + $0x6c] sm:$0xf]
      %v3882 = vsel %vm2227, %v3777, %v3881
      %3883 = vst [vmem:[#allocation3 + $0x6c] sm:$0xf] %v3882
      %3884 = vst.msk [vmem:[#allocation3 + $0x70] sm:$0xf] %vm2231, %v3786
      %v3885 = vld [vmem:[#allocation3 + $0x74] sm:$0x1]
      %v3886 = vsel %vm1849, %v3787, %v3885
      %3887 = vst [vmem:[#allocation3 + $0x74] sm:$0x1] %v3886
      %v3888 = vld [vmem:[#allocation3] sm:$0xf]
      %v3889 = vld [vmem:[#allocation3 + $0x4] sm:$0xf]
      %v3890 = vld [vmem:[#allocation3 + $0x8] sm:$0x1]
      %v3891 = vld [vmem:[#allocation3 + $0xc] sm:$0xf]
      %v3892 = vld [vmem:[#allocation3 + $0x10] sm:$0xf]
      %v3893 = vld [vmem:[#allocation3 + $0x14] sm:$0x1]
      %v3894 = vld [vmem:[#allocation3 + $0x18] sm:$0xf]
      %v3895 = vld [vmem:[#allocation3 + $0x1c] sm:$0xf]
      %v3896 = vld [vmem:[#allocation3 + $0x20] sm:$0x1]
      %v3897 = vld [vmem:[#allocation3 + $0x24] sm:$0xf]
      %v3898 = vld [vmem:[#allocation3 + $0x28] sm:$0xf]
      %v3899 = vld [vmem:[#allocation3 + $0x2c] sm:$0x1]
      %v3900 = vld [vmem:[#allocation3 + $0x30] sm:$0xf]
      %v3901 = vld [vmem:[#allocation3 + $0x34] sm:$0xf]
      %v3902 = vld [vmem:[#allocation3 + $0x38] sm:$0x1]
      %v3903 = vld [vmem:[#allocation3 + $0x3c] sm:$0xf]
      %v3904 = vld [vmem:[#allocation3 + $0x40] sm:$0xf]
      %v3905 = vld [vmem:[#allocation3 + $0x44] sm:$0x1]
      %v3906 = vld [vmem:[#allocation3 + $0x48] sm:$0xf]
      %v3907 = vld [vmem:[#allocation3 + $0x4c] sm:$0xf]
      %v3908 = vld [vmem:[#allocation3 + $0x50] sm:$0x1]
      %v3909 = vld [vmem:[#allocation3 + $0x54] sm:$0xf]
      %v3910 = vld [vmem:[#allocation3 + $0x58] sm:$0xf]
      %v3911 = vld [vmem:[#allocation3 + $0x5c] sm:$0x1]
      %v3912 = vld [vmem:[#allocation3 + $0x60] sm:$0xf]
      %v3913 = vld [vmem:[#allocation3 + $0x64] sm:$0xf]
      %v3914 = vld [vmem:[#allocation3 + $0x68] sm:$0x1]
      %v3915 = vld [vmem:[#allocation3 + $0x6c] sm:$0xf]
      %v3916 = vld [vmem:[#allocation3 + $0x70] sm:$0xf]
      %v3917 = vld [vmem:[#allocation3 + $0x74] sm:$0x1]
      %v3934 = vunpack.c.l.b16 %v3888
      %v3935 = vunpack.c.l.b16 %v3889
      %v3936 = vunpack.c.l.b16 %v3891
      %v3937 = vunpack.c.l.b16 %v3892
      %v3938 = vunpack.c.l.b16 %v3894
      %v3939 = vunpack.c.l.b16 %v3895
      %v3940 = vunpack.c.l.b16 %v3897
      %v3941 = vunpack.c.l.b16 %v3898
      %v3942 = vunpack.c.l.b16 %v3900
      %v3943 = vunpack.c.l.b16 %v3901
      %v3944 = vunpack.c.l.b16 %v3903
      %v3945 = vunpack.c.l.b16 %v3904
      %v3946 = vunpack.c.l.b16 %v3906
      %v3947 = vunpack.c.l.b16 %v3907
      %v3948 = vunpack.c.l.b16 %v3909
      %v3949 = vunpack.c.l.b16 %v3910
      %v3950 = vpack.c.b16 %v3935, %v3934
      %v3951 = vpack.c.b16 %v3937, %v3936
      %v3952 = vpack.c.b16 %v3939, %v3938
      %v3953 = vpack.c.b16 %v3941, %v3940
      %v3954 = vpack.c.b16 %v3943, %v3942
      %v3955 = vpack.c.b16 %v3945, %v3944
      %v3956 = vpack.c.b16 %v3947, %v3946
      %v3957 = vpack.c.b16 %v3949, %v3948
      %3966 = vst.msk [vmem:[#allocation4] sm:$0xff] %vm538, %v3950
      %3967 = vst.msk [vmem:[#allocation4 + $0x10] sm:$0xff] %vm538, %v3951
      %3968 = vst.msk [vmem:[#allocation4 + $0x20] sm:$0xff] %vm538, %v3952
      %3969 = vst.msk [vmem:[#allocation4 + $0x30] sm:$0xff] %vm538, %v3953
      %3970 = vst.msk [vmem:[#allocation4 + $0x40] sm:$0xff] %vm538, %v3954
      %3971 = vst.msk [vmem:[#allocation4 + $0x50] sm:$0xff] %vm538, %v3955
      %3972 = vst.msk [vmem:[#allocation4 + $0x60] sm:$0xff] %vm538, %v3956
      %3973 = vst.msk [vmem:[#allocation4 + $0x70] sm:$0xff] %vm538, %v3957
      %v3975 = vshrl.u32 %v3888, 16
      %v3977 = vrot.slane %v3975, 4
      %v3978 = vshll.u32 %v3888, 16
      %v3980 = vrot.slane %v3978, 5
      %v3981 = vor.u32 %v3977, %v3980
      %v3982 = vrot.slane %v3981, 4
      %v3984 = vshll.u32 %v3889, 16
      %v3986 = vrot.slane %v3984, 5
      %v3987 = vsel %vm553, %v3982, %v3986
      %v3988 = vshrl.u32 %v3889, 16
      %v3990 = vrot.slane %v3988, 4
      %v3991 = vor.u32 %v3990, %v3986
      %v3992 = vrot.slane %v3991, 4
      %v3994 = vshll.u32 %v3890, 16
      %v3996 = vrot.slane %v3994, 5
      %v3997 = vsel %vm553, %v3992, %v3996
      %v3999 = vshrl.u32 %v3891, 16
      %v4001 = vrot.slane %v3999, 4
      %v4002 = vshll.u32 %v3891, 16
      %v4004 = vrot.slane %v4002, 5
      %v4005 = vor.u32 %v4001, %v4004
      %v4006 = vrot.slane %v4005, 4
      %v4008 = vshll.u32 %v3892, 16
      %v4010 = vrot.slane %v4008, 5
      %v4011 = vsel %vm553, %v4006, %v4010
      %v4012 = vshrl.u32 %v3892, 16
      %v4014 = vrot.slane %v4012, 4
      %v4015 = vor.u32 %v4014, %v4010
      %v4016 = vrot.slane %v4015, 4
      %v4018 = vshll.u32 %v3893, 16
      %v4020 = vrot.slane %v4018, 5
      %v4021 = vsel %vm553, %v4016, %v4020
      %v4023 = vshrl.u32 %v3894, 16
      %v4025 = vrot.slane %v4023, 4
      %v4026 = vshll.u32 %v3894, 16
      %v4028 = vrot.slane %v4026, 5
      %v4029 = vor.u32 %v4025, %v4028
      %v4030 = vrot.slane %v4029, 4
      %v4032 = vshll.u32 %v3895, 16
      %v4034 = vrot.slane %v4032, 5
      %v4035 = vsel %vm553, %v4030, %v4034
      %v4036 = vshrl.u32 %v3895, 16
      %v4038 = vrot.slane %v4036, 4
      %v4039 = vor.u32 %v4038, %v4034
      %v4040 = vrot.slane %v4039, 4
      %v4042 = vshll.u32 %v3896, 16
      %v4044 = vrot.slane %v4042, 5
      %v4045 = vsel %vm553, %v4040, %v4044
      %v4047 = vshrl.u32 %v3897, 16
      %v4049 = vrot.slane %v4047, 4
      %v4050 = vshll.u32 %v3897, 16
      %v4052 = vrot.slane %v4050, 5
      %v4053 = vor.u32 %v4049, %v4052
      %v4054 = vrot.slane %v4053, 4
      %v4056 = vshll.u32 %v3898, 16
      %v4058 = vrot.slane %v4056, 5
      %v4059 = vsel %vm553, %v4054, %v4058
      %v4060 = vshrl.u32 %v3898, 16
      %v4062 = vrot.slane %v4060, 4
      %v4063 = vor.u32 %v4062, %v4058
      %v4064 = vrot.slane %v4063, 4
      %v4066 = vshll.u32 %v3899, 16
      %v4068 = vrot.slane %v4066, 5
      %v4069 = vsel %vm553, %v4064, %v4068
      %v4071 = vshrl.u32 %v3900, 16
      %v4073 = vrot.slane %v4071, 4
      %v4074 = vshll.u32 %v3900, 16
      %v4076 = vrot.slane %v4074, 5
      %v4077 = vor.u32 %v4073, %v4076
      %v4078 = vrot.slane %v4077, 4
      %v4080 = vshll.u32 %v3901, 16
      %v4082 = vrot.slane %v4080, 5
      %v4083 = vsel %vm553, %v4078, %v4082
      %v4084 = vshrl.u32 %v3901, 16
      %v4086 = vrot.slane %v4084, 4
      %v4087 = vor.u32 %v4086, %v4082
      %v4088 = vrot.slane %v4087, 4
      %v4090 = vshll.u32 %v3902, 16
      %v4092 = vrot.slane %v4090, 5
      %v4093 = vsel %vm553, %v4088, %v4092
      %v4095 = vshrl.u32 %v3903, 16
      %v4097 = vrot.slane %v4095, 4
      %v4098 = vshll.u32 %v3903, 16
      %v4100 = vrot.slane %v4098, 5
      %v4101 = vor.u32 %v4097, %v4100
      %v4102 = vrot.slane %v4101, 4
      %v4104 = vshll.u32 %v3904, 16
      %v4106 = vrot.slane %v4104, 5
      %v4107 = vsel %vm553, %v4102, %v4106
      %v4108 = vshrl.u32 %v3904, 16
      %v4110 = vrot.slane %v4108, 4
      %v4111 = vor.u32 %v4110, %v4106
      %v4112 = vrot.slane %v4111, 4
      %v4114 = vshll.u32 %v3905, 16
      %v4116 = vrot.slane %v4114, 5
      %v4117 = vsel %vm553, %v4112, %v4116
      %v4119 = vshrl.u32 %v3906, 16
      %v4121 = vrot.slane %v4119, 4
      %v4122 = vshll.u32 %v3906, 16
      %v4124 = vrot.slane %v4122, 5
      %v4125 = vor.u32 %v4121, %v4124
      %v4126 = vrot.slane %v4125, 4
      %v4128 = vshll.u32 %v3907, 16
      %v4130 = vrot.slane %v4128, 5
      %v4131 = vsel %vm553, %v4126, %v4130
      %v4132 = vshrl.u32 %v3907, 16
      %v4134 = vrot.slane %v4132, 4
      %v4135 = vor.u32 %v4134, %v4130
      %v4136 = vrot.slane %v4135, 4
      %v4138 = vshll.u32 %v3908, 16
      %v4140 = vrot.slane %v4138, 5
      %v4141 = vsel %vm553, %v4136, %v4140
      %v4143 = vshrl.u32 %v3909, 16
      %v4145 = vrot.slane %v4143, 4
      %v4146 = vshll.u32 %v3909, 16
      %v4148 = vrot.slane %v4146, 5
      %v4149 = vor.u32 %v4145, %v4148
      %v4150 = vrot.slane %v4149, 4
      %v4152 = vshll.u32 %v3910, 16
      %v4154 = vrot.slane %v4152, 5
      %v4155 = vsel %vm553, %v4150, %v4154
      %v4156 = vshrl.u32 %v3910, 16
      %v4158 = vrot.slane %v4156, 4
      %v4159 = vor.u32 %v4158, %v4154
      %v4160 = vrot.slane %v4159, 4
      %v4162 = vshll.u32 %v3911, 16
      %v4164 = vrot.slane %v4162, 5
      %v4165 = vsel %vm553, %v4160, %v4164
      %v4166 = vunpack.c.l.b16 %v3987
      %v4167 = vunpack.c.l.b16 %v3997
      %v4168 = vunpack.c.l.b16 %v4011
      %v4169 = vunpack.c.l.b16 %v4021
      %v4170 = vunpack.c.l.b16 %v4035
      %v4171 = vunpack.c.l.b16 %v4045
      %v4172 = vunpack.c.l.b16 %v4059
      %v4173 = vunpack.c.l.b16 %v4069
      %v4174 = vunpack.c.l.b16 %v4083
      %v4175 = vunpack.c.l.b16 %v4093
      %v4176 = vunpack.c.l.b16 %v4107
      %v4177 = vunpack.c.l.b16 %v4117
      %v4178 = vunpack.c.l.b16 %v4131
      %v4179 = vunpack.c.l.b16 %v4141
      %v4180 = vunpack.c.l.b16 %v4155
      %v4181 = vunpack.c.l.b16 %v4165
      %v4182 = vpack.c.b16 %v4167, %v4166
      %v4183 = vpack.c.b16 %v4169, %v4168
      %v4184 = vpack.c.b16 %v4171, %v4170
      %v4185 = vpack.c.b16 %v4173, %v4172
      %v4186 = vpack.c.b16 %v4175, %v4174
      %v4187 = vpack.c.b16 %v4177, %v4176
      %v4188 = vpack.c.b16 %v4179, %v4178
      %v4189 = vpack.c.b16 %v4181, %v4180
      %4190 = vrot.lane.b32.xlu0 %v4182, 16
      %v4191 = vpop.permute.xlu0 %4190
      %4192 = vrot.lane.b32.xlu0 %v4183, 16
      %v4193 = vpop.permute.xlu0 %4192
      %4194 = vrot.lane.b32.xlu0 %v4184, 16
      %v4195 = vpop.permute.xlu0 %4194
      %4196 = vrot.lane.b32.xlu0 %v4185, 16
      %v4197 = vpop.permute.xlu0 %4196
      %4198 = vrot.lane.b32.xlu0 %v4186, 16
      %v4199 = vpop.permute.xlu0 %4198
      %4200 = vrot.lane.b32.xlu0 %v4187, 16
      %v4201 = vpop.permute.xlu0 %4200
      %4202 = vrot.lane.b32.xlu0 %v4188, 16
      %v4203 = vpop.permute.xlu0 %4202
      %4204 = vrot.lane.b32.xlu0 %v4189, 16
      %v4205 = vpop.permute.xlu0 %4204
      %4214 = vst.msk [vmem:[#allocation4] sm:$0xff] %vm914, %v4191
      %4215 = vst.msk [vmem:[#allocation4 + $0x10] sm:$0xff] %vm914, %v4193
      %4216 = vst.msk [vmem:[#allocation4 + $0x20] sm:$0xff] %vm914, %v4195
      %4217 = vst.msk [vmem:[#allocation4 + $0x30] sm:$0xff] %vm914, %v4197
      %4218 = vst.msk [vmem:[#allocation4 + $0x40] sm:$0xff] %vm914, %v4199
      %4219 = vst.msk [vmem:[#allocation4 + $0x50] sm:$0xff] %vm914, %v4201
      %4220 = vst.msk [vmem:[#allocation4 + $0x60] sm:$0xff] %vm914, %v4203
      %4221 = vst.msk [vmem:[#allocation4 + $0x70] sm:$0xff] %vm914, %v4205
      %v4230 = vrot.slane %v3888, 5
      %v4231 = vrot.slane %v4230, 4
      %v4232 = vrot.slane %v3889, 5
      %v4233 = vsel %vm941, %v4231, %v4232
      %v4234 = vrot.slane %v4232, 4
      %v4235 = vrot.slane %v3890, 5
      %v4236 = vsel %vm941, %v4234, %v4235
      %v4237 = vrot.slane %v3891, 5
      %v4238 = vrot.slane %v4237, 4
      %v4239 = vrot.slane %v3892, 5
      %v4240 = vsel %vm941, %v4238, %v4239
      %v4241 = vrot.slane %v4239, 4
      %v4242 = vrot.slane %v3893, 5
      %v4243 = vsel %vm941, %v4241, %v4242
      %v4244 = vrot.slane %v3894, 5
      %v4245 = vrot.slane %v4244, 4
      %v4246 = vrot.slane %v3895, 5
      %v4247 = vsel %vm941, %v4245, %v4246
      %v4248 = vrot.slane %v4246, 4
      %v4249 = vrot.slane %v3896, 5
      %v4250 = vsel %vm941, %v4248, %v4249
      %v4251 = vrot.slane %v3897, 5
      %v4252 = vrot.slane %v4251, 4
      %v4253 = vrot.slane %v3898, 5
      %v4254 = vsel %vm941, %v4252, %v4253
      %v4255 = vrot.slane %v4253, 4
      %v4256 = vrot.slane %v3899, 5
      %v4257 = vsel %vm941, %v4255, %v4256
      %v4258 = vrot.slane %v3900, 5
      %v4259 = vrot.slane %v4258, 4
      %v4260 = vrot.slane %v3901, 5
      %v4261 = vsel %vm941, %v4259, %v4260
      %v4262 = vrot.slane %v4260, 4
      %v4263 = vrot.slane %v3902, 5
      %v4264 = vsel %vm941, %v4262, %v4263
      %v4265 = vrot.slane %v3903, 5
      %v4266 = vrot.slane %v4265, 4
      %v4267 = vrot.slane %v3904, 5
      %v4268 = vsel %vm941, %v4266, %v4267
      %v4269 = vrot.slane %v4267, 4
      %v4270 = vrot.slane %v3905, 5
      %v4271 = vsel %vm941, %v4269, %v4270
      %v4272 = vrot.slane %v3906, 5
      %v4273 = vrot.slane %v4272, 4
      %v4274 = vrot.slane %v3907, 5
      %v4275 = vsel %vm941, %v4273, %v4274
      %v4276 = vrot.slane %v4274, 4
      %v4277 = vrot.slane %v3908, 5
      %v4278 = vsel %vm941, %v4276, %v4277
      %v4279 = vrot.slane %v3909, 5
      %v4280 = vrot.slane %v4279, 4
      %v4281 = vrot.slane %v3910, 5
      %v4282 = vsel %vm941, %v4280, %v4281
      %v4283 = vrot.slane %v4281, 4
      %v4284 = vrot.slane %v3911, 5
      %v4285 = vsel %vm941, %v4283, %v4284
      %v4286 = vunpack.c.l.b16 %v4233
      %v4287 = vunpack.c.l.b16 %v4236
      %v4288 = vunpack.c.l.b16 %v4240
      %v4289 = vunpack.c.l.b16 %v4243
      %v4290 = vunpack.c.l.b16 %v4247
      %v4291 = vunpack.c.l.b16 %v4250
      %v4292 = vunpack.c.l.b16 %v4254
      %v4293 = vunpack.c.l.b16 %v4257
      %v4294 = vunpack.c.l.b16 %v4261
      %v4295 = vunpack.c.l.b16 %v4264
      %v4296 = vunpack.c.l.b16 %v4268
      %v4297 = vunpack.c.l.b16 %v4271
      %v4298 = vunpack.c.l.b16 %v4275
      %v4299 = vunpack.c.l.b16 %v4278
      %v4300 = vunpack.c.l.b16 %v4282
      %v4301 = vunpack.c.l.b16 %v4285
      %v4302 = vpack.c.b16 %v4287, %v4286
      %v4303 = vpack.c.b16 %v4289, %v4288
      %v4304 = vpack.c.b16 %v4291, %v4290
      %v4305 = vpack.c.b16 %v4293, %v4292
      %v4306 = vpack.c.b16 %v4295, %v4294
      %v4307 = vpack.c.b16 %v4297, %v4296
      %v4308 = vpack.c.b16 %v4299, %v4298
      %v4309 = vpack.c.b16 %v4301, %v4300
      %4310 = vrot.lane.b32.xlu0 %v4302, 32
      %v4311 = vpop.permute.xlu0 %4310
      %4312 = vrot.lane.b32.xlu0 %v4303, 32
      %v4313 = vpop.permute.xlu0 %4312
      %4314 = vrot.lane.b32.xlu0 %v4304, 32
      %v4315 = vpop.permute.xlu0 %4314
      %4316 = vrot.lane.b32.xlu0 %v4305, 32
      %v4317 = vpop.permute.xlu0 %4316
      %4318 = vrot.lane.b32.xlu0 %v4306, 32
      %v4319 = vpop.permute.xlu0 %4318
      %4320 = vrot.lane.b32.xlu0 %v4307, 32
      %v4321 = vpop.permute.xlu0 %4320
      %4322 = vrot.lane.b32.xlu0 %v4308, 32
      %v4323 = vpop.permute.xlu0 %4322
      %4324 = vrot.lane.b32.xlu0 %v4309, 32
      %v4325 = vpop.permute.xlu0 %4324
      %4334 = vst.msk [vmem:[#allocation4] sm:$0xff] %vm1098, %v4311
      %4335 = vst.msk [vmem:[#allocation4 + $0x10] sm:$0xff] %vm1098, %v4313
      %4336 = vst.msk [vmem:[#allocation4 + $0x20] sm:$0xff] %vm1098, %v4315
      %4337 = vst.msk [vmem:[#allocation4 + $0x30] sm:$0xff] %vm1098, %v4317
      %4338 = vst.msk [vmem:[#allocation4 + $0x40] sm:$0xff] %vm1098, %v4319
      %4339 = vst.msk [vmem:[#allocation4 + $0x50] sm:$0xff] %vm1098, %v4321
      %4340 = vst.msk [vmem:[#allocation4 + $0x60] sm:$0xff] %vm1098, %v4323
      %4341 = vst.msk [vmem:[#allocation4 + $0x70] sm:$0xff] %vm1098, %v4325
      %v4344 = vunpack.c.l.b16 %v3912
      %v4345 = vunpack.c.l.b16 %v3913
      %v4346 = vpack.c.b16 %v4345, %v4344
      %4347 = vrot.lane.b32.xlu0 %v3951, 48
      %v4348 = vpop.permute.xlu0 %4347
      %4349 = vrot.lane.b32.xlu0 %v3952, 48
      %v4350 = vpop.permute.xlu0 %4349
      %4351 = vrot.lane.b32.xlu0 %v3953, 48
      %v4352 = vpop.permute.xlu0 %4351
      %4353 = vrot.lane.b32.xlu0 %v3954, 48
      %v4354 = vpop.permute.xlu0 %4353
      %4355 = vrot.lane.b32.xlu0 %v3955, 48
      %v4356 = vpop.permute.xlu0 %4355
      %4357 = vrot.lane.b32.xlu0 %v3956, 48
      %v4358 = vpop.permute.xlu0 %4357
      %4359 = vrot.lane.b32.xlu0 %v3957, 48
      %v4360 = vpop.permute.xlu0 %4359
      %4361 = vrot.lane.b32.xlu0 %v4346, 48
      %v4362 = vpop.permute.xlu0 %4361
      %4371 = vst.msk [vmem:[#allocation4] sm:$0xff] %vm1152, %v4348
      %4372 = vst.msk [vmem:[#allocation4 + $0x10] sm:$0xff] %vm1152, %v4350
      %4373 = vst.msk [vmem:[#allocation4 + $0x20] sm:$0xff] %vm1152, %v4352
      %4374 = vst.msk [vmem:[#allocation4 + $0x30] sm:$0xff] %vm1152, %v4354
      %4375 = vst.msk [vmem:[#allocation4 + $0x40] sm:$0xff] %vm1152, %v4356
      %4376 = vst.msk [vmem:[#allocation4 + $0x50] sm:$0xff] %vm1152, %v4358
      %4377 = vst.msk [vmem:[#allocation4 + $0x60] sm:$0xff] %vm1152, %v4360
      %4378 = vst.msk [vmem:[#allocation4 + $0x70] sm:$0xff] %vm1152, %v4362
      %v4380 = vshrl.u32 %v3912, 16
      %v4382 = vrot.slane %v4380, 4
      %v4383 = vshll.u32 %v3912, 16
      %v4385 = vrot.slane %v4383, 5
      %v4386 = vor.u32 %v4382, %v4385
      %v4387 = vrot.slane %v4386, 4
      %v4389 = vshll.u32 %v3913, 16
      %v4391 = vrot.slane %v4389, 5
      %v4392 = vsel %vm553, %v4387, %v4391
      %v4393 = vshrl.u32 %v3913, 16
      %v4395 = vrot.slane %v4393, 4
      %v4396 = vor.u32 %v4395, %v4391
      %v4397 = vrot.slane %v4396, 4
      %v4399 = vshll.u32 %v3914, 16
      %v4401 = vrot.slane %v4399, 5
      %v4402 = vsel %vm553, %v4397, %v4401
      %v4403 = vunpack.c.l.b16 %v4392
      %v4404 = vunpack.c.l.b16 %v4402
      %v4405 = vpack.c.b16 %v4404, %v4403
      %4406 = vrot.lane.b32.xlu0 %v4183, 64
      %v4407 = vpop.permute.xlu0 %4406
      %4408 = vrot.lane.b32.xlu0 %v4184, 64
      %v4409 = vpop.permute.xlu0 %4408
      %4410 = vrot.lane.b32.xlu0 %v4185, 64
      %v4411 = vpop.permute.xlu0 %4410
      %4412 = vrot.lane.b32.xlu0 %v4186, 64
      %v4413 = vpop.permute.xlu0 %4412
      %4414 = vrot.lane.b32.xlu0 %v4187, 64
      %v4415 = vpop.permute.xlu0 %4414
      %4416 = vrot.lane.b32.xlu0 %v4188, 64
      %v4417 = vpop.permute.xlu0 %4416
      %4418 = vrot.lane.b32.xlu0 %v4189, 64
      %v4419 = vpop.permute.xlu0 %4418
      %4420 = vrot.lane.b32.xlu0 %v4405, 64
      %v4421 = vpop.permute.xlu0 %4420
      %4430 = vst.msk [vmem:[#allocation4] sm:$0xff] %vm1228, %v4407
      %4431 = vst.msk [vmem:[#allocation4 + $0x10] sm:$0xff] %vm1228, %v4409
      %4432 = vst.msk [vmem:[#allocation4 + $0x20] sm:$0xff] %vm1228, %v4411
      %4433 = vst.msk [vmem:[#allocation4 + $0x30] sm:$0xff] %vm1228, %v4413
      %4434 = vst.msk [vmem:[#allocation4 + $0x40] sm:$0xff] %vm1228, %v4415
      %4435 = vst.msk [vmem:[#allocation4 + $0x50] sm:$0xff] %vm1228, %v4417
      %4436 = vst.msk [vmem:[#allocation4 + $0x60] sm:$0xff] %vm1228, %v4419
      %4437 = vst.msk [vmem:[#allocation4 + $0x70] sm:$0xff] %vm1228, %v4421
      %v4439 = vrot.slane %v3912, 5
      %v4440 = vrot.slane %v4439, 4
      %v4441 = vrot.slane %v3913, 5
      %v4442 = vsel %vm941, %v4440, %v4441
      %v4443 = vrot.slane %v4441, 4
      %v4444 = vrot.slane %v3914, 5
      %v4445 = vsel %vm941, %v4443, %v4444
      %v4446 = vunpack.c.l.b16 %v4442
      %v4447 = vunpack.c.l.b16 %v4445
      %v4448 = vpack.c.b16 %v4447, %v4446
      %4449 = vrot.lane.b32.xlu0 %v4303, 80
      %v4450 = vpop.permute.xlu0 %4449
      %4451 = vrot.lane.b32.xlu0 %v4304, 80
      %v4452 = vpop.permute.xlu0 %4451
      %4453 = vrot.lane.b32.xlu0 %v4305, 80
      %v4454 = vpop.permute.xlu0 %4453
      %4455 = vrot.lane.b32.xlu0 %v4306, 80
      %v4456 = vpop.permute.xlu0 %4455
      %4457 = vrot.lane.b32.xlu0 %v4307, 80
      %v4458 = vpop.permute.xlu0 %4457
      %4459 = vrot.lane.b32.xlu0 %v4308, 80
      %v4460 = vpop.permute.xlu0 %4459
      %4461 = vrot.lane.b32.xlu0 %v4309, 80
      %v4462 = vpop.permute.xlu0 %4461
      %4463 = vrot.lane.b32.xlu0 %v4448, 80
      %v4464 = vpop.permute.xlu0 %4463
      %4473 = vst.msk [vmem:[#allocation4] sm:$0xff] %vm1288, %v4450
      %4474 = vst.msk [vmem:[#allocation4 + $0x10] sm:$0xff] %vm1288, %v4452
      %4475 = vst.msk [vmem:[#allocation4 + $0x20] sm:$0xff] %vm1288, %v4454
      %4476 = vst.msk [vmem:[#allocation4 + $0x30] sm:$0xff] %vm1288, %v4456
      %4477 = vst.msk [vmem:[#allocation4 + $0x40] sm:$0xff] %vm1288, %v4458
      %4478 = vst.msk [vmem:[#allocation4 + $0x50] sm:$0xff] %vm1288, %v4460
      %4479 = vst.msk [vmem:[#allocation4 + $0x60] sm:$0xff] %vm1288, %v4462
      %4480 = vst.msk [vmem:[#allocation4 + $0x70] sm:$0xff] %vm1288, %v4464
      %v4483 = vunpack.c.l.b16 %v3915
      %v4484 = vunpack.c.l.b16 %v3916
      %v4485 = vpack.c.b16 %v4484, %v4483
      %4486 = vrot.lane.b32.xlu0 %v3952, 96
      %v4487 = vpop.permute.xlu0 %4486
      %4488 = vrot.lane.b32.xlu0 %v3953, 96
      %v4489 = vpop.permute.xlu0 %4488
      %4490 = vrot.lane.b32.xlu0 %v3954, 96
      %v4491 = vpop.permute.xlu0 %4490
      %4492 = vrot.lane.b32.xlu0 %v3955, 96
      %v4493 = vpop.permute.xlu0 %4492
      %4494 = vrot.lane.b32.xlu0 %v3956, 96
      %v4495 = vpop.permute.xlu0 %4494
      %4496 = vrot.lane.b32.xlu0 %v3957, 96
      %v4497 = vpop.permute.xlu0 %4496
      %4498 = vrot.lane.b32.xlu0 %v4346, 96
      %v4499 = vpop.permute.xlu0 %4498
      %4500 = vrot.lane.b32.xlu0 %v4485, 96
      %v4501 = vpop.permute.xlu0 %4500
      %4510 = vst.msk [vmem:[#allocation4] sm:$0xff] %vm1342, %v4487
      %4511 = vst.msk [vmem:[#allocation4 + $0x10] sm:$0xff] %vm1342, %v4489
      %4512 = vst.msk [vmem:[#allocation4 + $0x20] sm:$0xff] %vm1342, %v4491
      %4513 = vst.msk [vmem:[#allocation4 + $0x30] sm:$0xff] %vm1342, %v4493
      %4514 = vst.msk [vmem:[#allocation4 + $0x40] sm:$0xff] %vm1342, %v4495
      %4515 = vst.msk [vmem:[#allocation4 + $0x50] sm:$0xff] %vm1342, %v4497
      %4516 = vst.msk [vmem:[#allocation4 + $0x60] sm:$0xff] %vm1342, %v4499
      %4517 = vst.msk [vmem:[#allocation4 + $0x70] sm:$0xff] %vm1342, %v4501
      %v4519 = vshrl.u32 %v3915, 16
      %v4521 = vrot.slane %v4519, 4
      %v4522 = vshll.u32 %v3915, 16
      %v4524 = vrot.slane %v4522, 5
      %v4525 = vor.u32 %v4521, %v4524
      %v4526 = vrot.slane %v4525, 4
      %v4528 = vshll.u32 %v3916, 16
      %v4530 = vrot.slane %v4528, 5
      %v4531 = vsel %vm553, %v4526, %v4530
      %v4532 = vshrl.u32 %v3916, 16
      %v4534 = vrot.slane %v4532, 4
      %v4535 = vor.u32 %v4534, %v4530
      %v4536 = vrot.slane %v4535, 4
      %v4538 = vshll.u32 %v3917, 16
      %v4540 = vrot.slane %v4538, 5
      %v4541 = vsel %vm553, %v4536, %v4540
      %v4542 = vunpack.c.l.b16 %v4531
      %v4543 = vunpack.c.l.b16 %v4541
      %v4544 = vpack.c.b16 %v4543, %v4542
      %4545 = vrot.lane.b32.xlu0 %v4184, 112
      %v4546 = vpop.permute.xlu0 %4545
      %4547 = vrot.lane.b32.xlu0 %v4185, 112
      %v4548 = vpop.permute.xlu0 %4547
      %4549 = vrot.lane.b32.xlu0 %v4186, 112
      %v4550 = vpop.permute.xlu0 %4549
      %4551 = vrot.lane.b32.xlu0 %v4187, 112
      %v4552 = vpop.permute.xlu0 %4551
      %4553 = vrot.lane.b32.xlu0 %v4188, 112
      %v4554 = vpop.permute.xlu0 %4553
      %4555 = vrot.lane.b32.xlu0 %v4189, 112
      %v4556 = vpop.permute.xlu0 %4555
      %4557 = vrot.lane.b32.xlu0 %v4405, 112
      %v4558 = vpop.permute.xlu0 %4557
      %4559 = vrot.lane.b32.xlu0 %v4544, 112
      %v4560 = vpop.permute.xlu0 %4559
      %4569 = vst.msk [vmem:[#allocation4] sm:$0xff] %vm1418, %v4546
      %4570 = vst.msk [vmem:[#allocation4 + $0x10] sm:$0xff] %vm1418, %v4548
      %4571 = vst.msk [vmem:[#allocation4 + $0x20] sm:$0xff] %vm1418, %v4550
      %4572 = vst.msk [vmem:[#allocation4 + $0x30] sm:$0xff] %vm1418, %v4552
      %4573 = vst.msk [vmem:[#allocation4 + $0x40] sm:$0xff] %vm1418, %v4554
      %4574 = vst.msk [vmem:[#allocation4 + $0x50] sm:$0xff] %vm1418, %v4556
      %4575 = vst.msk [vmem:[#allocation4 + $0x60] sm:$0xff] %vm1418, %v4558
      %4576 = vst.msk [vmem:[#allocation4 + $0x70] sm:$0xff] %vm1418, %v4560
      %v4578 = vrot.slane %v3915, 5
      %v4579 = vrot.slane %v4578, 4
      %v4580 = vrot.slane %v3916, 5
      %v4581 = vsel %vm941, %v4579, %v4580
      %v4582 = vrot.slane %v4580, 4
      %v4583 = vrot.slane %v3917, 5
      %v4584 = vsel %vm941, %v4582, %v4583
      %v4585 = vunpack.c.l.b16 %v4581
      %v4586 = vunpack.c.l.b16 %v4584
      %v4587 = vpack.c.b16 %v4586, %v4585
      %4596 = vst.msk [vmem:[#allocation4 + $0x8] sm:$0xff] %vm538, %v4304
      %4597 = vst.msk [vmem:[#allocation4 + $0x18] sm:$0xff] %vm538, %v4305
      %4598 = vst.msk [vmem:[#allocation4 + $0x28] sm:$0xff] %vm538, %v4306
      %4599 = vst.msk [vmem:[#allocation4 + $0x38] sm:$0xff] %vm538, %v4307
      %4600 = vst.msk [vmem:[#allocation4 + $0x48] sm:$0xff] %vm538, %v4308
      %4601 = vst.msk [vmem:[#allocation4 + $0x58] sm:$0xff] %vm538, %v4309
      %4602 = vst.msk [vmem:[#allocation4 + $0x68] sm:$0xff] %vm538, %v4448
      %4603 = vst.msk [vmem:[#allocation4 + $0x78] sm:$0xff] %vm538, %v4587
      %v4604 = vld [vmem:[#allocation4] sm:$0xff]
      %v4605 = vld [vmem:[#allocation4 + $0x8] sm:$0xff]
      %v4606 = vld [vmem:[#allocation4 + $0x10] sm:$0xff]
      %v4607 = vld [vmem:[#allocation4 + $0x18] sm:$0xff]
      %v4608 = vld [vmem:[#allocation4 + $0x20] sm:$0xff]
      %v4609 = vld [vmem:[#allocation4 + $0x28] sm:$0xff]
      %v4610 = vld [vmem:[#allocation4 + $0x30] sm:$0xff]
      %v4611 = vld [vmem:[#allocation4 + $0x38] sm:$0xff]
      %v4612 = vld [vmem:[#allocation4 + $0x40] sm:$0xff]
      %v4613 = vld [vmem:[#allocation4 + $0x48] sm:$0xff]
      %v4614 = vld [vmem:[#allocation4 + $0x50] sm:$0xff]
      %v4615 = vld [vmem:[#allocation4 + $0x58] sm:$0xff]
      %v4616 = vld [vmem:[#allocation4 + $0x60] sm:$0xff]
      %v4617 = vld [vmem:[#allocation4 + $0x68] sm:$0xff]
      %v4618 = vld [vmem:[#allocation4 + $0x70] sm:$0xff]
      %v4619 = vld [vmem:[#allocation4 + $0x78] sm:$0xff]
      %v4621 = vlaneseq
      %v4622 = vshrl.u32 %v4621, 7
      %v4623 = vsub.s32 0, %v4622
      %v4624 = vrot.slane %v465, %v4623
      %v4644 = vunpack.c.l.b16 %v445
      %v4645 = vunpack.c.l.b16 %v446
      %v4646 = vunpack.c.l.b16 %v447
      %v4647 = vunpack.c.l.b16 %v448
      %v4648 = vunpack.c.l.b16 %v449
      %v4649 = vunpack.c.l.b16 %v450
      %v4650 = vunpack.c.l.b16 %v451
      %v4651 = vunpack.c.l.b16 %v452
      %v4652 = vunpack.c.l.b16 %v453
      %v4653 = vunpack.c.l.b16 %v454
      %v4654 = vunpack.c.l.b16 %v455
      %v4655 = vunpack.c.l.b16 %v456
      %v4656 = vunpack.c.l.b16 %v457
      %v4657 = vunpack.c.l.b16 %v458
      %v4658 = vunpack.c.l.b16 %v459
      %v4659 = vunpack.c.l.b16 %v460
      %v4660 = vunpack.c.l.b16 %v461
      %v4661 = vunpack.c.l.b16 %v462
      %v4662 = vpack.c.b16 %v4645, %v4644
      %v4663 = vpack.c.b16 %v4647, %v4646
      %v4664 = vpack.c.b16 %v4649, %v4648
      %v4665 = vpack.c.b16 %v4651, %v4650
      %v4666 = vpack.c.b16 %v4653, %v4652
      %v4667 = vpack.c.b16 %v4655, %v4654
      %v4668 = vpack.c.b16 %v4657, %v4656
      %v4669 = vpack.c.b16 %v4659, %v4658
      %v4670 = vpack.c.b16 %v4661, %v4660
      %v4681 = vsel %vm538, %v4605, 0
      %v4684 = vsel %vm538, %v4607, 0
      %v4687 = vsel %vm538, %v4609, 0
      %v4690 = vsel %vm538, %v4611, 0
      %v4693 = vsel %vm538, %v4613, 0
      %v4696 = vsel %vm538, %v4615, 0
      %v4699 = vsel %vm538, %v4617, 0
      %v4702 = vsel %vm538, %v4619, 0
      %4704 = vmatprep.subr.bf16.mxu0 0
      %4705 = vmatpush1.bf16.msra.mxu0 %v4662
      %4706 = vmatprep.subr.bf16.mxu0 0
      %4707 = vmatpush1.bf16.msra.mxu0 %v4663
      %4708 = vmatprep.subr.bf16.mxu0 0
      %4709 = vmatpush1.bf16.msra.mxu0 %v4664
      %4710 = vmatprep.subr.bf16.mxu0 0
      %4711 = vmatpush1.bf16.msra.mxu0 %v4665
      %4712 = vmatprep.subr.bf16.mxu0 0
      %4713 = vmatpush1.bf16.msra.mxu0 %v4666
      %4714 = vmatprep.subr.bf16.mxu0 0
      %4715 = vmatpush1.bf16.msra.mxu0 %v4667
      %4716 = vmatprep.subr.bf16.mxu0 0
      %4717 = vmatpush1.bf16.msra.mxu0 %v4668
      %4718 = vmatprep.subr.bf16.mxu0 0
      %4719 = vmatpush1.bf16.msra.mxu0 %v4669
      %4720 = vmatprep.subr.bf16.mxu0 0
      %4721 = vmatpush1.bf16.msra.mxu0 %v4670
      %4722 = vmatprep.subr.bf16.mxu0 0
      %4723 = vmatpush1.bf16.msra.mxu0 0
      %4724 = vmatprep.subr.bf16.mxu0 0
      %4725 = vmatpush1.bf16.msra.mxu0 0
      %4726 = vmatprep.subr.bf16.mxu0 0
      %4727 = vmatpush1.bf16.msra.mxu0 0
      %4728 = vmatprep.subr.bf16.mxu0 0
      %4729 = vmatpush1.bf16.msra.mxu0 0
      %4730 = vmatprep.subr.bf16.mxu0 0
      %4731 = vmatpush1.bf16.msra.mxu0 0
      %4732 = vmatprep.subr.bf16.mxu0 0
      %4733 = vmatpush1.bf16.msra.mxu0 0
      %4734 = vmatprep.subr.bf16.mxu0 0
      %4735 = vmatpush1.bf16.msra.mxu0 0
      %4736 = vmatprep.mubr.bf16.mxu0 %v4681
      %4737 = vmatmul.mubr.bf16.gmra.mrb[0].mxu0 %v4604
      %v4738 = vpop.f32.mrb[0].mxu0
      %v4739 = vadd.f32 %v4624, %v4738
      %v4740 = vpop.f32.mrb[0].mxu0
      %v4741 = vpop.f32.mrb[0].mxu0
      %v4742 = vadd.f32 %v4624, %v4741
      %v4743 = vpop.f32.mrb[0].mxu0
      %4744 = vmatprep.mubr.bf16.mxu0 %v4684
      %4745 = vmatmul.mubr.bf16.gmra.mrb[0].mxu0 %v4606
      %v4746 = vpop.f32.mrb[0].mxu0
      %v4747 = vadd.f32 %v4624, %v4746
      %v4748 = vpop.f32.mrb[0].mxu0
      %v4749 = vpop.f32.mrb[0].mxu0
      %v4750 = vadd.f32 %v4624, %v4749
      %v4751 = vpop.f32.mrb[0].mxu0
      %4752 = vmatprep.mubr.bf16.mxu0 %v4687
      %4753 = vmatmul.mubr.bf16.gmra.mrb[0].mxu0 %v4608
      %v4754 = vpop.f32.mrb[0].mxu0
      %v4755 = vadd.f32 %v4624, %v4754
      %v4756 = vpop.f32.mrb[0].mxu0
      %v4757 = vpop.f32.mrb[0].mxu0
      %v4758 = vadd.f32 %v4624, %v4757
      %v4759 = vpop.f32.mrb[0].mxu0
      %4760 = vmatprep.mubr.bf16.mxu0 %v4690
      %4761 = vmatmul.mubr.bf16.gmra.mrb[0].mxu0 %v4610
      %v4762 = vpop.f32.mrb[0].mxu0
      %v4763 = vadd.f32 %v4624, %v4762
      %v4764 = vpop.f32.mrb[0].mxu0
      %v4765 = vpop.f32.mrb[0].mxu0
      %v4766 = vadd.f32 %v4624, %v4765
      %v4767 = vpop.f32.mrb[0].mxu0
      %4768 = vmatprep.mubr.bf16.mxu0 %v4693
      %4769 = vmatmul.mubr.bf16.gmra.mrb[0].mxu0 %v4612
      %v4770 = vpop.f32.mrb[0].mxu0
      %v4771 = vadd.f32 %v4624, %v4770
      %v4772 = vpop.f32.mrb[0].mxu0
      %v4773 = vpop.f32.mrb[0].mxu0
      %v4774 = vadd.f32 %v4624, %v4773
      %v4775 = vpop.f32.mrb[0].mxu0
      %4776 = vmatprep.mubr.bf16.mxu0 %v4696
      %4777 = vmatmul.mubr.bf16.gmra.mrb[0].mxu0 %v4614
      %v4778 = vpop.f32.mrb[0].mxu0
      %v4779 = vadd.f32 %v4624, %v4778
      %v4780 = vpop.f32.mrb[0].mxu0
      %v4781 = vpop.f32.mrb[0].mxu0
      %v4782 = vadd.f32 %v4624, %v4781
      %v4783 = vpop.f32.mrb[0].mxu0
      %4784 = vmatprep.mubr.bf16.mxu0 %v4699
      %4785 = vmatmul.mubr.bf16.gmra.mrb[0].mxu0 %v4616
      %v4786 = vpop.f32.mrb[0].mxu0
      %v4787 = vadd.f32 %v4624, %v4786
      %v4788 = vpop.f32.mrb[0].mxu0
      %v4789 = vpop.f32.mrb[0].mxu0
      %v4790 = vadd.f32 %v4624, %v4789
      %v4791 = vpop.f32.mrb[0].mxu0
      %4792 = vmatprep.mubr.bf16.mxu0 %v4702
      %4793 = vmatmul.mubr.bf16.gmra.mrb[0].mxu0 %v4618
      %v4794 = vpop.f32.mrb[0].mxu0
      %v4795 = vadd.f32 %v4624, %v4794
      %v4796 = vpop.f32.mrb[0].mxu0
      %v4797 = vpop.f32.mrb[0].mxu0
      %v4798 = vadd.f32 %v4624, %v4797
      %v4799 = vpop.f32.mrb[0].mxu0
      %4800 = vdwg.mxu0
      %v4801 = vand.u32 2147483647, %v4739
      %v4802 = vand.u32 2147483647, %v4742
      %v4803 = vand.u32 2147483647, %v4747
      %v4804 = vand.u32 2147483647, %v4750
      %v4805 = vand.u32 2147483647, %v4755
      %v4806 = vand.u32 2147483647, %v4758
      %v4807 = vand.u32 2147483647, %v4763
      %v4808 = vand.u32 2147483647, %v4766
      %v4809 = vand.u32 2147483647, %v4771
      %v4810 = vand.u32 2147483647, %v4774
      %v4811 = vand.u32 2147483647, %v4779
      %v4812 = vand.u32 2147483647, %v4782
      %v4813 = vand.u32 2147483647, %v4787
      %v4814 = vand.u32 2147483647, %v4790
      %v4815 = vand.u32 2147483647, %v4795
      %v4816 = vand.u32 2147483647, %v4798
      %v4817 = vsub.f32 0.0, %v4801
      %v4818 = vsub.f32 0.0, %v4802
      %v4819 = vsub.f32 0.0, %v4803
      %v4820 = vsub.f32 0.0, %v4804
      %v4821 = vsub.f32 0.0, %v4805
      %v4822 = vsub.f32 0.0, %v4806
      %v4823 = vsub.f32 0.0, %v4807
      %v4824 = vsub.f32 0.0, %v4808
      %v4825 = vsub.f32 0.0, %v4809
      %v4826 = vsub.f32 0.0, %v4810
      %v4827 = vsub.f32 0.0, %v4811
      %v4828 = vsub.f32 0.0, %v4812
      %v4829 = vsub.f32 0.0, %v4813
      %v4830 = vsub.f32 0.0, %v4814
      %v4831 = vsub.f32 0.0, %v4815
      %v4832 = vsub.f32 0.0, %v4816
      %v4833 = vmul.f32 %v4817, 1.442695
      %v4834 = vpow.pop %v4833
      %v4835 = vmul.f32 %v4818, 1.442695
      %v4836 = vpow.pop %v4835
      %v4837 = vmul.f32 %v4819, 1.442695
      %v4838 = vpow.pop %v4837
      %v4839 = vmul.f32 %v4820, 1.442695
      %v4840 = vpow.pop %v4839
      %v4841 = vmul.f32 %v4821, 1.442695
      %v4842 = vpow.pop %v4841
      %v4843 = vmul.f32 %v4822, 1.442695
      %v4844 = vpow.pop %v4843
      %v4845 = vmul.f32 %v4823, 1.442695
      %v4846 = vpow.pop %v4845
      %v4847 = vmul.f32 %v4824, 1.442695
      %v4848 = vpow.pop %v4847
      %v4849 = vmul.f32 %v4825, 1.442695
      %v4850 = vpow.pop %v4849
      %v4851 = vmul.f32 %v4826, 1.442695
      %v4852 = vpow.pop %v4851
      %v4853 = vmul.f32 %v4827, 1.442695
      %v4854 = vpow.pop %v4853
      %v4855 = vmul.f32 %v4828, 1.442695
      %v4856 = vpow.pop %v4855
      %v4857 = vmul.f32 %v4829, 1.442695
      %v4858 = vpow.pop %v4857
      %v4859 = vmul.f32 %v4830, 1.442695
      %v4860 = vpow.pop %v4859
      %v4861 = vmul.f32 %v4831, 1.442695
      %v4862 = vpow.pop %v4861
      %v4863 = vmul.f32 %v4832, 1.442695
      %v4864 = vpow.pop %v4863
      %v4865 = vadd.f32 %v4834, 1.0
      %v4866 = vadd.f32 %v4836, 1.0
      %v4867 = vadd.f32 %v4838, 1.0
      %v4868 = vadd.f32 %v4840, 1.0
      %v4869 = vadd.f32 %v4842, 1.0
      %v4870 = vadd.f32 %v4844, 1.0
      %v4871 = vadd.f32 %v4846, 1.0
      %v4872 = vadd.f32 %v4848, 1.0
      %v4873 = vadd.f32 %v4850, 1.0
      %v4874 = vadd.f32 %v4852, 1.0
      %v4875 = vadd.f32 %v4854, 1.0
      %v4876 = vadd.f32 %v4856, 1.0
      %v4877 = vadd.f32 %v4858, 1.0
      %v4878 = vadd.f32 %v4860, 1.0
      %v4879 = vadd.f32 %v4862, 1.0
      %v4880 = vadd.f32 %v4864, 1.0
      %v4881 = vrcp.pop %v4865
      %v4882 = vmul.f32 1.0, %v4881
      %v4883 = vrcp.pop %v4866
      %v4884 = vmul.f32 1.0, %v4883
      %v4885 = vrcp.pop %v4867
      %v4886 = vmul.f32 1.0, %v4885
      %v4887 = vrcp.pop %v4868
      %v4888 = vmul.f32 1.0, %v4887
      %v4889 = vrcp.pop %v4869
      %v4890 = vmul.f32 1.0, %v4889
      %v4891 = vrcp.pop %v4870
      %v4892 = vmul.f32 1.0, %v4891
      %v4893 = vrcp.pop %v4871
      %v4894 = vmul.f32 1.0, %v4893
      %v4895 = vrcp.pop %v4872
      %v4896 = vmul.f32 1.0, %v4895
      %v4897 = vrcp.pop %v4873
      %v4898 = vmul.f32 1.0, %v4897
      %v4899 = vrcp.pop %v4874
      %v4900 = vmul.f32 1.0, %v4899
      %v4901 = vrcp.pop %v4875
      %v4902 = vmul.f32 1.0, %v4901
      %v4903 = vrcp.pop %v4876
      %v4904 = vmul.f32 1.0, %v4903
      %v4905 = vrcp.pop %v4877
      %v4906 = vmul.f32 1.0, %v4905
      %v4907 = vrcp.pop %v4878
      %v4908 = vmul.f32 1.0, %v4907
      %v4909 = vrcp.pop %v4879
      %v4910 = vmul.f32 1.0, %v4909
      %v4911 = vrcp.pop %v4880
      %v4912 = vmul.f32 1.0, %v4911
      %vm4913 = vcmp.ge.f32.partialorder %v4739, 0.0
      %vm4914 = vcmp.ge.f32.partialorder %v4742, 0.0
      %vm4915 = vcmp.ge.f32.partialorder %v4747, 0.0
      %vm4916 = vcmp.ge.f32.partialorder %v4750, 0.0
      %vm4917 = vcmp.ge.f32.partialorder %v4755, 0.0
      %vm4918 = vcmp.ge.f32.partialorder %v4758, 0.0
      %vm4919 = vcmp.ge.f32.partialorder %v4763, 0.0
      %vm4920 = vcmp.ge.f32.partialorder %v4766, 0.0
      %vm4921 = vcmp.ge.f32.partialorder %v4771, 0.0
      %vm4922 = vcmp.ge.f32.partialorder %v4774, 0.0
      %vm4923 = vcmp.ge.f32.partialorder %v4779, 0.0
      %vm4924 = vcmp.ge.f32.partialorder %v4782, 0.0
      %vm4925 = vcmp.ge.f32.partialorder %v4787, 0.0
      %vm4926 = vcmp.ge.f32.partialorder %v4790, 0.0
      %vm4927 = vcmp.ge.f32.partialorder %v4795, 0.0
      %vm4928 = vcmp.ge.f32.partialorder %v4798, 0.0
      %v4929 = vmul.f32 %v4834, %v4882
      %v4930 = vmul.f32 %v4836, %v4884
      %v4931 = vmul.f32 %v4838, %v4886
      %v4932 = vmul.f32 %v4840, %v4888
      %v4933 = vmul.f32 %v4842, %v4890
      %v4934 = vmul.f32 %v4844, %v4892
      %v4935 = vmul.f32 %v4846, %v4894
      %v4936 = vmul.f32 %v4848, %v4896
      %v4937 = vmul.f32 %v4850, %v4898
      %v4938 = vmul.f32 %v4852, %v4900
      %v4939 = vmul.f32 %v4854, %v4902
      %v4940 = vmul.f32 %v4856, %v4904
      %v4941 = vmul.f32 %v4858, %v4906
      %v4942 = vmul.f32 %v4860, %v4908
      %v4943 = vmul.f32 %v4862, %v4910
      %v4944 = vmul.f32 %v4864, %v4912
      %v4945 = vsel %vm4913, %v4882, %v4929
      %v4946 = vsel %vm4914, %v4884, %v4930
      %v4947 = vsel %vm4915, %v4886, %v4931
      %v4948 = vsel %vm4916, %v4888, %v4932
      %v4949 = vsel %vm4917, %v4890, %v4933
      %v4950 = vsel %vm4918, %v4892, %v4934
      %v4951 = vsel %vm4919, %v4894, %v4935
      %v4952 = vsel %vm4920, %v4896, %v4936
      %v4953 = vsel %vm4921, %v4898, %v4937
      %v4954 = vsel %vm4922, %v4900, %v4938
      %v4955 = vsel %vm4923, %v4902, %v4939
      %v4956 = vsel %vm4924, %v4904, %v4940
      %v4957 = vsel %vm4925, %v4906, %v4941
      %v4958 = vsel %vm4926, %v4908, %v4942
      %v4959 = vsel %vm4927, %v4910, %v4943
      %v4960 = vsel %vm4928, %v4912, %v4944
      %vm4961 = vcmask 23552
      %4962 = vst.msk [vmem:[%s360] sm:$0xff] %vm4961, %v4945
      %4963 = vst.msk [vmem:[%s360 + $0x8] sm:$0xff] %vm4961, %v4946
      %4964 = vst.msk [vmem:[%s360 + $0x10] sm:$0xff] %vm4961, %v4947
      %4965 = vst.msk [vmem:[%s360 + $0x18] sm:$0xff] %vm4961, %v4948
      %4966 = vst.msk [vmem:[%s360 + $0x20] sm:$0xff] %vm4961, %v4949
      %4967 = vst.msk [vmem:[%s360 + $0x28] sm:$0xff] %vm4961, %v4950
      %4968 = vst.msk [vmem:[%s360 + $0x30] sm:$0xff] %vm4961, %v4951
      %4969 = vst.msk [vmem:[%s360 + $0x38] sm:$0xff] %vm4961, %v4952
      %4970 = vst.msk [vmem:[%s360 + $0x40] sm:$0xff] %vm4961, %v4953
      %4971 = vst.msk [vmem:[%s360 + $0x48] sm:$0xff] %vm4961, %v4954
      %4972 = vst.msk [vmem:[%s360 + $0x50] sm:$0xff] %vm4961, %v4955
      %4973 = vst.msk [vmem:[%s360 + $0x58] sm:$0xff] %vm4961, %v4956
      %4974 = vst.msk [vmem:[%s360 + $0x60] sm:$0xff] %vm4961, %v4957
      %4975 = vst.msk [vmem:[%s360 + $0x68] sm:$0xff] %vm4961, %v4958
      %4976 = vst.msk [vmem:[%s360 + $0x70] sm:$0xff] %vm4961, %v4959
      %4977 = vst.msk [vmem:[%s360 + $0x78] sm:$0xff] %vm4961, %v4960
      %v4978 = vld [vmem:[%s354] sm:$0xff]
      %v4979 = vld [vmem:[%s354 + $0x8] sm:$0xff]
      %v4980 = vld [vmem:[%s354 + $0x10] sm:$0xff]
      %v4981 = vld [vmem:[%s354 + $0x18] sm:$0xff]
      %v4982 = vld [vmem:[%s354 + $0x20] sm:$0xff]
      %v4983 = vld [vmem:[%s354 + $0x28] sm:$0xff]
      %v4984 = vld [vmem:[%s354 + $0x30] sm:$0xff]
      %v4985 = vld [vmem:[%s354 + $0x38] sm:$0xff]
      %v4986 = vld [vmem:[%s354 + $0x40] sm:$0xff]
      %v4987 = vld [vmem:[%s354 + $0x48] sm:$0xff]
      %v4988 = vld [vmem:[%s354 + $0x50] sm:$0xff]
      %v4989 = vld [vmem:[%s354 + $0x58] sm:$0xff]
      %v4990 = vld [vmem:[%s354 + $0x60] sm:$0xff]
      %v4991 = vld [vmem:[%s354 + $0x68] sm:$0xff]
      %v4992 = vld [vmem:[%s354 + $0x70] sm:$0xff]
      %v4993 = vld [vmem:[%s354 + $0x78] sm:$0xff]
      %v4994 = vsub.f32 %v4945, %v4978
      %v4995 = vsub.f32 %v4946, %v4979
      %v4996 = vsub.f32 %v4947, %v4980
      %v4997 = vsub.f32 %v4948, %v4981
      %v4998 = vsub.f32 %v4949, %v4982
      %v4999 = vsub.f32 %v4950, %v4983
      %v5000 = vsub.f32 %v4951, %v4984
      %v5001 = vsub.f32 %v4952, %v4985
      %v5002 = vsub.f32 %v4953, %v4986
      %v5003 = vsub.f32 %v4954, %v4987
      %v5004 = vsub.f32 %v4955, %v4988
      %v5005 = vsub.f32 %v4956, %v4989
      %v5006 = vsub.f32 %v4957, %v4990
      %v5007 = vsub.f32 %v4958, %v4991
      %v5008 = vsub.f32 %v4959, %v4992
      %v5009 = vsub.f32 %v4960, %v4993
      %v5010 = vmul.f32 %v4994, %v4994
      %v5011 = vmul.f32 %v4995, %v4995
      %v5012 = vmul.f32 %v4996, %v4996
      %v5013 = vmul.f32 %v4997, %v4997
      %v5014 = vmul.f32 %v4998, %v4998
      %v5015 = vmul.f32 %v4999, %v4999
      %v5016 = vmul.f32 %v5000, %v5000
      %v5017 = vmul.f32 %v5001, %v5001
      %v5018 = vmul.f32 %v5002, %v5002
      %v5019 = vmul.f32 %v5003, %v5003
      %v5020 = vmul.f32 %v5004, %v5004
      %v5021 = vmul.f32 %v5005, %v5005
      %v5022 = vmul.f32 %v5006, %v5006
      %v5023 = vmul.f32 %v5007, %v5007
      %v5024 = vmul.f32 %v5008, %v5008
      %v5025 = vmul.f32 %v5009, %v5009
      %v5026 = vsel %vm4961, %v5010, 0.0
      %v5027 = vsel %vm4961, %v5011, 0.0
      %v5028 = vadd.f32 %v5026, %v5027
      %v5029 = vsel %vm4961, %v5012, 0.0
      %v5030 = vadd.f32 %v5028, %v5029
      %v5031 = vsel %vm4961, %v5013, 0.0
      %v5032 = vadd.f32 %v5030, %v5031
      %v5033 = vsel %vm4961, %v5014, 0.0
      %v5034 = vadd.f32 %v5032, %v5033
      %v5035 = vsel %vm4961, %v5015, 0.0
      %v5036 = vadd.f32 %v5034, %v5035
      %v5037 = vsel %vm4961, %v5016, 0.0
      %v5038 = vadd.f32 %v5036, %v5037
      %v5039 = vsel %vm4961, %v5017, 0.0
      %v5040 = vadd.f32 %v5038, %v5039
      %v5041 = vsel %vm4961, %v5018, 0.0
      %v5042 = vadd.f32 %v5040, %v5041
      %v5043 = vsel %vm4961, %v5019, 0.0
      %v5044 = vadd.f32 %v5042, %v5043
      %v5045 = vsel %vm4961, %v5020, 0.0
      %v5046 = vadd.f32 %v5044, %v5045
      %v5047 = vsel %vm4961, %v5021, 0.0
      %v5048 = vadd.f32 %v5046, %v5047
      %v5049 = vsel %vm4961, %v5022, 0.0
      %v5050 = vadd.f32 %v5048, %v5049
      %v5051 = vsel %vm4961, %v5023, 0.0
      %v5052 = vadd.f32 %v5050, %v5051
      %v5053 = vsel %vm4961, %v5024, 0.0
      %v5054 = vadd.f32 %v5052, %v5053
      %v5055 = vsel %vm4961, %v5025, 0.0
      %v5056 = vadd.f32 %v5054, %v5055
      %5057 = vadd.xlane.f32.xlu0 %v5056
      %v5058 = vpop.xlane.xlu0 %5057
      %v5059 = vrot.slane %v5058, 4
      %v5060 = vadd.f32 %v5058, %v5059
      %v5061 = vrot.slane %v5060, 2
      %v5062 = vadd.f32 %v5060, %v5061
      %v5063 = vrot.slane %v5062, 1
      %v5064 = vadd.f32 %v5062, %v5063
      %s5065 = vtos %v5064
      %v5066 = vstv %s5065
      %5067 = vst [vmem:[%s364] sm:$0x1] %v5066
      %s5068 = smul.u32 16, %s21
      %p5069 = scmp.lt.s32.totalorder %s5068, 31
      %s5070 = scalar_select %p5069, %s5068, 31
      %s5071 = smul.addr %s5070, 8
      %s5072 = scalar_lea.vmem %s8, %s5071
      %p5073 = scmp.lt.s32.totalorder %s21, 1
      %s5074 = scalar_select %p5073, %s21, 1
      %s5075 = scalar_lea.vmem %s9, %s5074
      // Predicated region
      $region53: #{create_img_dendritic_forward.3} parent=51 // pred_check
        %p5076 = pneg %p217
      $region54: #{create_img_dendritic_forward.3} parent=51 // pred_check_branch
        %5078 = sbr.rel (%p5076) target = $region56
      $region55: #{create_img_dendritic_forward.3} parent=51 // pred_region
        %s5079 = smul.u32 16, %s21
      $region56: #{create_img_dendritic_forward.3} parent=51 // pred_fallthru
        _
      // Predicated region
      $region57: #{create_img_dendritic_forward.3} parent=51 // pred_check
        %p5080 = pneg %p243
      $region58: #{create_img_dendritic_forward.3} parent=51 // pred_check_branch
        %5082 = sbr.rel (%p5080) target = $region60
      $region59: #{create_img_dendritic_forward.3} parent=51 // pred_region
        _
      $region60: #{create_img_dendritic_forward.3} parent=51 // pred_fallthru
        _
    $region52: #{create_img_dendritic_forward.3} parent=5 // pred_fallthru
      _
    %p5083 = scmp.le.s32.totalorder 2, %s16
    // Predicated region
    $region61: #{create_img_dendritic_forward.3} parent=5 // pred_check
      %p5084 = pneg %p5083
    $region62: #{create_img_dendritic_forward.3} parent=5 // pred_check_branch
      %5086 = sbr.rel (%p5084) target = $region64
    $region63: #{create_img_dendritic_forward.3} parent=5 // pred_region
      %s5087 = ssub.s32 %s16, 2
      // Predicated region
      $region65: #{create_img_dendritic_forward.3} parent=63 // pred_check
        %p5088 = pneg %p223
      $region66: #{create_img_dendritic_forward.3} parent=63 // pred_check_branch
        %5090 = sbr.rel (%p5088) target = $region68
      $region67: #{create_img_dendritic_forward.3} parent=63 // pred_region
        %s5091 = smul.u32 16, %s22
        %p5092 = scmp.lt.s32.totalorder %s5091, 31
        %s5093 = scalar_select %p5092, %s5091, 31
        %s5094 = smul.addr %s5093, 8
        %s5095 = scalar_lea.vmem %s8, %s5094
      $region68: #{create_img_dendritic_forward.3} parent=63 // pred_fallthru
        _
      // Predicated region
      $region69: #{create_img_dendritic_forward.3} parent=63 // pred_check
        %p5096 = pneg %p249
      $region70: #{create_img_dendritic_forward.3} parent=63 // pred_check_branch
        %5098 = sbr.rel (%p5096) target = $region72
      $region71: #{create_img_dendritic_forward.3} parent=63 // pred_region
        %p5099 = scmp.lt.s32.totalorder %s22, 1
        %s5100 = scalar_select %p5099, %s22, 1
        %s5101 = scalar_lea.vmem %s9, %s5100
      $region72: #{create_img_dendritic_forward.3} parent=63 // pred_fallthru
        _
    $region64: #{create_img_dendritic_forward.3} parent=5 // pred_fallthru
      _
  $region6: #{create_img_dendritic_forward.3} parent=0 // loop_footer
    %s20 = sadd.s32 1, %s16
  $region7: #{create_img_dendritic_forward.3} parent=0 // loop_footer_branch
    %15 = sbr.rel target = $region3
  $region8: #{create_img_dendritic_forward.3} parent=0 // loop_exit
    _

</llo_original>
